<compile_context>
chip_gen: v7x
topology: tpu7x:2x2x1
jax: 0.10.0
libtpu: 0.0.40
codegen_flags: <defaults>
</compile_context>

<pallas_src>
import jax
import jax.numpy as jnp
from jax.experimental import pallas as pl
from jax.experimental.pallas import tpu as pltpu

EPS = 1e-5


def _conv1x1(x, w):
    """x: [Cin, P], w: [Cout, Cin] -> [Cout, P].

    Exact-f32 VPU broadcast-MAC; avoids feeding the MXU 4..32-wide contractions.
    """
    cin = w.shape[1]
    y = w[:, 0:1] * x[0:1, :]
    for ci in range(1, cin):
        y = y + w[:, ci:ci + 1] * x[ci:ci + 1, :]
    return y


def _bn_relu(y, gamma, beta):
    """Training-mode BatchNorm (batch stats over the lane axis, biased var) + ReLU.

    y: [C, P]; gamma/beta: [C, 1].  Fused sum/sumsq statistics, folded scale/shift.
    """
    inv_n = 1.0 / y.shape[1]
    mean = jnp.sum(y, axis=1, keepdims=True) * inv_n
    mean_sq = jnp.sum(y * y, axis=1, keepdims=True) * inv_n
    var = jnp.maximum(mean_sq - mean * mean, 0.0)
    scale = gamma * jax.lax.rsqrt(var + EPS)
    shift = beta - mean * scale
    return jnp.maximum(y * scale + shift, 0.0)


def _pointblock_kernel(x_ref, w1_ref, g1_ref, b1_ref,
                       w2_ref, g2_ref, b2_ref,
                       w3_ref, g3_ref, b3_ref, o_ref):
    x = x_ref[...]                                                       # [Cin, P]
    h = _bn_relu(_conv1x1(x, w1_ref[...]), g1_ref[...], b1_ref[...])     # [C1, P]
    h = _bn_relu(_conv1x1(h, w2_ref[...]), g2_ref[...], b2_ref[...])     # [C2, P]
    h = _bn_relu(_conv1x1(h, w3_ref[...]), g3_ref[...], b3_ref[...])     # [C3, P]
    o_ref[...] = h.astype(o_ref.dtype)


def pointblock_pallas(x_nchw, params):
    """x_nchw: [N, Cin, H, W] float32. Returns [N, 4*base_channel, H, W] float32."""
    (w1, _cb1, g1, b1, w2, _cb2, g2, b2, w3, _cb3, g3, b3) = params
    # Conv biases (_cb*) are intentionally NOT passed to the kernel: training-mode
    # BatchNorm cancels a per-channel constant exactly (zero numerical change).
    N, cin, H, W = x_nchw.shape
    c3 = w3.shape[0]
    p = N * H * W

    # Channels-on-sublanes layout: [Cin, N*H*W]; the spatial axis is lane-dense.
    x_cp = jnp.transpose(x_nchw, (1, 0, 2, 3)).reshape(cin, p).astype(jnp.float32)

    def col(v):  # per-channel vector -> [C, 1] column for sublane-wise broadcast
        return v.reshape(-1, 1).astype(jnp.float32)

    vmem = pl.BlockSpec(memory_space=pltpu.MemorySpace.VMEM)
    out_flat = pl.pallas_call(
        _pointblock_kernel,
        out_shape=jax.ShapeDtypeStruct((c3, p), jnp.float32),
        in_specs=[vmem] * 10,
        out_specs=vmem,
    )(
        x_cp,
        w1.astype(jnp.float32), col(g1), col(b1),
        w2.astype(jnp.float32), col(g2), col(b2),
        w3.astype(jnp.float32), col(g3), col(b3),
    )
    return jnp.transpose(out_flat.reshape(c3, N, H, W), (1, 0, 2, 3))


def pointblock_reference(x_nchw, params):
    """Pure-JAX reference matching the PyTorch module (train-mode BN, conv bias kept)."""
    (w1, cb1, g1, b1, w2, cb2, g2, b2, w3, cb3, g3, b3) = params
    hp = jax.lax.Precision.HIGHEST

    def conv1x1(h, w, cb):  # w: [Cout, Cin]
        y = jnp.einsum("oc,nchw->nohw", w, h, precision=hp)
        return y + cb[None, :, None, None]

    def bn(h, g, b):
        m = jnp.mean(h, axis=(0, 2, 3), keepdims=True)
        v = jnp.mean((h - m) ** 2, axis=(0, 2, 3), keepdims=True)
        return (h - m) * jax.lax.rsqrt(v + EPS) * g[None, :, None, None] + b[None, :, None, None]

    h = jax.nn.relu(bn(conv1x1(x_nchw, w1, cb1), g1, b1))
    h = jax.nn.relu(bn(conv1x1(h, w2, cb2), g2, b2))
    h = jax.nn.relu(bn(conv1x1(h, w3, cb3), g3, b3))
    return h


def make_params(key, input_channel=4, base_channel=16):
    """Deterministic synthetic parameters.

    Conv weights stored as [Cout, Cin] (1x1 spatial dims squeezed); each stage is
    (conv_w, conv_b, bn_gamma, bn_beta).
    """
    c1, c2, c3 = base_channel, 2 * base_channel, 4 * base_channel
    ks = jax.random.split(key, 12)

    def w(k, co, ci):
        return 0.1 * jax.random.normal(k, (co, ci), jnp.float32)

    def v(k, c, s=0.05):
        return s * jax.random.normal(k, (c,), jnp.float32)

    w1, cb1 = w(ks[0], c1, input_channel), v(ks[1], c1)
    g1, b1 = 1.0 + v(ks[2], c1, 0.1), v(ks[3], c1)
    w2, cb2 = w(ks[4], c2, c1), v(ks[5], c2)
    g2, b2 = 1.0 + v(ks[6], c2, 0.1), v(ks[7], c2)
    w3, cb3 = w(ks[8], c3, c2), v(ks[9], c3)
    g3, b3 = 1.0 + v(ks[10], c3, 0.1), v(ks[11], c3)
    return (w1, cb1, g1, b1, w2, cb2, g2, b2, w3, cb3, g3, b3)


if __name__ == "__main__":
    key = jax.random.PRNGKey(0)
    kx, kp = jax.random.split(key)

    N, C, H, W = 2, 4, 16, 16          # PointBlock defaults: input_channel=4
    base = 16                          # -> output channels = 4 * base = 64
    x = jax.random.normal(kx, (N, C, H, W), jnp.float32)
    params = make_params(kp, input_channel=C, base_channel=base)

    out = jax.block_until_ready(pointblock_pallas(x, params))
    ref = jax.block_until_ready(pointblock_reference(x, params))

    assert out.shape == (N, 4 * base, H, W)
    err = float(jnp.max(jnp.abs(out - ref)))
    # Tolerance accounts for the (mathematically exact) conv-bias cancellation and the
    # fused one-pass variance vs the reference's two-pass variance.
    assert err < 5e-4, f"Pallas kernel mismatch vs reference (max abs err {err:.3e})"
    print("KERNEL_OK")
</pallas_src>

<mosaic_0001>
module attributes {stable_mosaic.version = 11 : i64} {
  func.func @_pointblock_kernel(%arg0: memref<4x512xf32, #tpu.memory_space<vmem>>, %arg1: memref<16x4xf32, #tpu.memory_space<vmem>>, %arg2: memref<16x1xf32, #tpu.memory_space<vmem>>, %arg3: memref<16x1xf32, #tpu.memory_space<vmem>>, %arg4: memref<32x16xf32, #tpu.memory_space<vmem>>, %arg5: memref<32x1xf32, #tpu.memory_space<vmem>>, %arg6: memref<32x1xf32, #tpu.memory_space<vmem>>, %arg7: memref<64x32xf32, #tpu.memory_space<vmem>>, %arg8: memref<64x1xf32, #tpu.memory_space<vmem>>, %arg9: memref<64x1xf32, #tpu.memory_space<vmem>>, %arg10: memref<64x512xf32, #tpu.memory_space<vmem>>) attributes {dimension_semantics = [], scalar_prefetch = 0 : i64, scratch_operands = 0 : i64, tpu.core_type = #tpu.core_type<tc>} {
    %c0 = arith.constant 0 : index
    %c0_0 = arith.constant 0 : index
    %0 = vector.load %arg0[%c0, %c0_0] : memref<4x512xf32, #tpu.memory_space<vmem>>, vector<4x512xf32>
    %c0_1 = arith.constant 0 : index
    %c0_2 = arith.constant 0 : index
    %1 = vector.load %arg1[%c0_1, %c0_2] : memref<16x4xf32, #tpu.memory_space<vmem>>, vector<16x4xf32>
    %2 = vector.extract_strided_slice %1 {offsets = [0, 0], sizes = [16, 1], strides = [1, 1]} : vector<16x4xf32> to vector<16x1xf32>
    %3 = vector.extract_strided_slice %0 {offsets = [0, 0], sizes = [1, 512], strides = [1, 1]} : vector<4x512xf32> to vector<1x512xf32>
    %4 = vector.broadcast %2 : vector<16x1xf32> to vector<16x512xf32>
    %5 = vector.broadcast %3 : vector<1x512xf32> to vector<16x512xf32>
    %6 = arith.mulf %4, %5 : vector<16x512xf32>
    %7 = vector.extract_strided_slice %1 {offsets = [0, 1], sizes = [16, 1], strides = [1, 1]} : vector<16x4xf32> to vector<16x1xf32>
    %8 = vector.extract_strided_slice %0 {offsets = [1, 0], sizes = [1, 512], strides = [1, 1]} : vector<4x512xf32> to vector<1x512xf32>
    %9 = vector.broadcast %7 : vector<16x1xf32> to vector<16x512xf32>
    %10 = vector.broadcast %8 : vector<1x512xf32> to vector<16x512xf32>
    %11 = arith.mulf %9, %10 : vector<16x512xf32>
    %12 = arith.addf %6, %11 : vector<16x512xf32>
    %13 = vector.extract_strided_slice %1 {offsets = [0, 2], sizes = [16, 1], strides = [1, 1]} : vector<16x4xf32> to vector<16x1xf32>
    %14 = vector.extract_strided_slice %0 {offsets = [2, 0], sizes = [1, 512], strides = [1, 1]} : vector<4x512xf32> to vector<1x512xf32>
    %15 = vector.broadcast %13 : vector<16x1xf32> to vector<16x512xf32>
    %16 = vector.broadcast %14 : vector<1x512xf32> to vector<16x512xf32>
    %17 = arith.mulf %15, %16 : vector<16x512xf32>
    %18 = arith.addf %12, %17 : vector<16x512xf32>
    %19 = vector.extract_strided_slice %1 {offsets = [0, 3], sizes = [16, 1], strides = [1, 1]} : vector<16x4xf32> to vector<16x1xf32>
    %20 = vector.extract_strided_slice %0 {offsets = [3, 0], sizes = [1, 512], strides = [1, 1]} : vector<4x512xf32> to vector<1x512xf32>
    %21 = vector.broadcast %19 : vector<16x1xf32> to vector<16x512xf32>
    %22 = vector.broadcast %20 : vector<1x512xf32> to vector<16x512xf32>
    %23 = arith.mulf %21, %22 : vector<16x512xf32>
    %24 = arith.addf %18, %23 : vector<16x512xf32>
    %c0_3 = arith.constant 0 : index
    %c0_4 = arith.constant 0 : index
    %25 = vector.load %arg2[%c0_3, %c0_4] : memref<16x1xf32, #tpu.memory_space<vmem>>, vector<16x1xf32>
    %c0_5 = arith.constant 0 : index
    %c0_6 = arith.constant 0 : index
    %26 = vector.load %arg3[%c0_5, %c0_6] : memref<16x1xf32, #tpu.memory_space<vmem>>, vector<16x1xf32>
    %cst = arith.constant dense<0.000000e+00> : vector<16xf32>
    %27 = vector.multi_reduction <add>, %24, %cst [1] : vector<16x512xf32> to vector<16xf32>
    %28 = vector.shape_cast %27 : vector<16xf32> to vector<16x1xf32>
    %cst_7 = arith.constant 0.001953125 : f32
    %29 = vector.broadcast %cst_7 : f32 to vector<16x1xf32>
    %30 = arith.mulf %28, %29 : vector<16x1xf32>
    %31 = arith.mulf %24, %24 : vector<16x512xf32>
    %cst_8 = arith.constant dense<0.000000e+00> : vector<16xf32>
    %32 = vector.multi_reduction <add>, %31, %cst_8 [1] : vector<16x512xf32> to vector<16xf32>
    %33 = vector.shape_cast %32 : vector<16xf32> to vector<16x1xf32>
    %cst_9 = arith.constant 0.001953125 : f32
    %34 = vector.broadcast %cst_9 : f32 to vector<16x1xf32>
    %35 = arith.mulf %33, %34 : vector<16x1xf32>
    %36 = arith.mulf %30, %30 : vector<16x1xf32>
    %37 = arith.subf %35, %36 : vector<16x1xf32>
    %cst_10 = arith.constant 0.000000e+00 : f32
    %38 = vector.broadcast %cst_10 : f32 to vector<16x1xf32>
    %39 = arith.maximumf %37, %38 : vector<16x1xf32>
    %cst_11 = arith.constant 9.99999974E-6 : f32
    %40 = vector.broadcast %cst_11 : f32 to vector<16x1xf32>
    %41 = arith.addf %39, %40 : vector<16x1xf32>
    %42 = math.rsqrt %41 : vector<16x1xf32>
    %43 = arith.mulf %25, %42 : vector<16x1xf32>
    %44 = arith.mulf %30, %43 : vector<16x1xf32>
    %45 = arith.subf %26, %44 : vector<16x1xf32>
    %46 = vector.broadcast %43 : vector<16x1xf32> to vector<16x512xf32>
    %47 = arith.mulf %24, %46 : vector<16x512xf32>
    %48 = vector.broadcast %45 : vector<16x1xf32> to vector<16x512xf32>
    %49 = arith.addf %47, %48 : vector<16x512xf32>
    %cst_12 = arith.constant 0.000000e+00 : f32
    %50 = vector.broadcast %cst_12 : f32 to vector<16x512xf32>
    %51 = arith.maximumf %49, %50 : vector<16x512xf32>
    %c0_13 = arith.constant 0 : index
    %c0_14 = arith.constant 0 : index
    %52 = vector.load %arg4[%c0_13, %c0_14] : memref<32x16xf32, #tpu.memory_space<vmem>>, vector<32x16xf32>
    %53 = vector.extract_strided_slice %52 {offsets = [0, 0], sizes = [32, 1], strides = [1, 1]} : vector<32x16xf32> to vector<32x1xf32>
    %54 = vector.extract_strided_slice %51 {offsets = [0, 0], sizes = [1, 512], strides = [1, 1]} : vector<16x512xf32> to vector<1x512xf32>
    %55 = vector.broadcast %53 : vector<32x1xf32> to vector<32x512xf32>
    %56 = vector.broadcast %54 : vector<1x512xf32> to vector<32x512xf32>
    %57 = arith.mulf %55, %56 : vector<32x512xf32>
    %58 = vector.extract_strided_slice %52 {offsets = [0, 1], sizes = [32, 1], strides = [1, 1]} : vector<32x16xf32> to vector<32x1xf32>
    %59 = vector.extract_strided_slice %51 {offsets = [1, 0], sizes = [1, 512], strides = [1, 1]} : vector<16x512xf32> to vector<1x512xf32>
    %60 = vector.broadcast %58 : vector<32x1xf32> to vector<32x512xf32>
    %61 = vector.broadcast %59 : vector<1x512xf32> to vector<32x512xf32>
    %62 = arith.mulf %60, %61 : vector<32x512xf32>
    %63 = arith.addf %57, %62 : vector<32x512xf32>
    %64 = vector.extract_strided_slice %52 {offsets = [0, 2], sizes = [32, 1], strides = [1, 1]} : vector<32x16xf32> to vector<32x1xf32>
    %65 = vector.extract_strided_slice %51 {offsets = [2, 0], sizes = [1, 512], strides = [1, 1]} : vector<16x512xf32> to vector<1x512xf32>
    %66 = vector.broadcast %64 : vector<32x1xf32> to vector<32x512xf32>
    %67 = vector.broadcast %65 : vector<1x512xf32> to vector<32x512xf32>
    %68 = arith.mulf %66, %67 : vector<32x512xf32>
    %69 = arith.addf %63, %68 : vector<32x512xf32>
    %70 = vector.extract_strided_slice %52 {offsets = [0, 3], sizes = [32, 1], strides = [1, 1]} : vector<32x16xf32> to vector<32x1xf32>
    %71 = vector.extract_strided_slice %51 {offsets = [3, 0], sizes = [1, 512], strides = [1, 1]} : vector<16x512xf32> to vector<1x512xf32>
    %72 = vector.broadcast %70 : vector<32x1xf32> to vector<32x512xf32>
    %73 = vector.broadcast %71 : vector<1x512xf32> to vector<32x512xf32>
    %74 = arith.mulf %72, %73 : vector<32x512xf32>
    %75 = arith.addf %69, %74 : vector<32x512xf32>
    %76 = vector.extract_strided_slice %52 {offsets = [0, 4], sizes = [32, 1], strides = [1, 1]} : vector<32x16xf32> to vector<32x1xf32>
    %77 = vector.extract_strided_slice %51 {offsets = [4, 0], sizes = [1, 512], strides = [1, 1]} : vector<16x512xf32> to vector<1x512xf32>
    %78 = vector.broadcast %76 : vector<32x1xf32> to vector<32x512xf32>
    %79 = vector.broadcast %77 : vector<1x512xf32> to vector<32x512xf32>
    %80 = arith.mulf %78, %79 : vector<32x512xf32>
    %81 = arith.addf %75, %80 : vector<32x512xf32>
    %82 = vector.extract_strided_slice %52 {offsets = [0, 5], sizes = [32, 1], strides = [1, 1]} : vector<32x16xf32> to vector<32x1xf32>
    %83 = vector.extract_strided_slice %51 {offsets = [5, 0], sizes = [1, 512], strides = [1, 1]} : vector<16x512xf32> to vector<1x512xf32>
    %84 = vector.broadcast %82 : vector<32x1xf32> to vector<32x512xf32>
    %85 = vector.broadcast %83 : vector<1x512xf32> to vector<32x512xf32>
    %86 = arith.mulf %84, %85 : vector<32x512xf32>
    %87 = arith.addf %81, %86 : vector<32x512xf32>
    %88 = vector.extract_strided_slice %52 {offsets = [0, 6], sizes = [32, 1], strides = [1, 1]} : vector<32x16xf32> to vector<32x1xf32>
    %89 = vector.extract_strided_slice %51 {offsets = [6, 0], sizes = [1, 512], strides = [1, 1]} : vector<16x512xf32> to vector<1x512xf32>
    %90 = vector.broadcast %88 : vector<32x1xf32> to vector<32x512xf32>
    %91 = vector.broadcast %89 : vector<1x512xf32> to vector<32x512xf32>
    %92 = arith.mulf %90, %91 : vector<32x512xf32>
    %93 = arith.addf %87, %92 : vector<32x512xf32>
    %94 = vector.extract_strided_slice %52 {offsets = [0, 7], sizes = [32, 1], strides = [1, 1]} : vector<32x16xf32> to vector<32x1xf32>
    %95 = vector.extract_strided_slice %51 {offsets = [7, 0], sizes = [1, 512], strides = [1, 1]} : vector<16x512xf32> to vector<1x512xf32>
    %96 = vector.broadcast %94 : vector<32x1xf32> to vector<32x512xf32>
    %97 = vector.broadcast %95 : vector<1x512xf32> to vector<32x512xf32>
    %98 = arith.mulf %96, %97 : vector<32x512xf32>
    %99 = arith.addf %93, %98 : vector<32x512xf32>
    %100 = vector.extract_strided_slice %52 {offsets = [0, 8], sizes = [32, 1], strides = [1, 1]} : vector<32x16xf32> to vector<32x1xf32>
    %101 = vector.extract_strided_slice %51 {offsets = [8, 0], sizes = [1, 512], strides = [1, 1]} : vector<16x512xf32> to vector<1x512xf32>
    %102 = vector.broadcast %100 : vector<32x1xf32> to vector<32x512xf32>
    %103 = vector.broadcast %101 : vector<1x512xf32> to vector<32x512xf32>
    %104 = arith.mulf %102, %103 : vector<32x512xf32>
    %105 = arith.addf %99, %104 : vector<32x512xf32>
    %106 = vector.extract_strided_slice %52 {offsets = [0, 9], sizes = [32, 1], strides = [1, 1]} : vector<32x16xf32> to vector<32x1xf32>
    %107 = vector.extract_strided_slice %51 {offsets = [9, 0], sizes = [1, 512], strides = [1, 1]} : vector<16x512xf32> to vector<1x512xf32>
    %108 = vector.broadcast %106 : vector<32x1xf32> to vector<32x512xf32>
    %109 = vector.broadcast %107 : vector<1x512xf32> to vector<32x512xf32>
    %110 = arith.mulf %108, %109 : vector<32x512xf32>
    %111 = arith.addf %105, %110 : vector<32x512xf32>
    %112 = vector.extract_strided_slice %52 {offsets = [0, 10], sizes = [32, 1], strides = [1, 1]} : vector<32x16xf32> to vector<32x1xf32>
    %113 = vector.extract_strided_slice %51 {offsets = [10, 0], sizes = [1, 512], strides = [1, 1]} : vector<16x512xf32> to vector<1x512xf32>
    %114 = vector.broadcast %112 : vector<32x1xf32> to vector<32x512xf32>
    %115 = vector.broadcast %113 : vector<1x512xf32> to vector<32x512xf32>
    %116 = arith.mulf %114, %115 : vector<32x512xf32>
    %117 = arith.addf %111, %116 : vector<32x512xf32>
    %118 = vector.extract_strided_slice %52 {offsets = [0, 11], sizes = [32, 1], strides = [1, 1]} : vector<32x16xf32> to vector<32x1xf32>
    %119 = vector.extract_strided_slice %51 {offsets = [11, 0], sizes = [1, 512], strides = [1, 1]} : vector<16x512xf32> to vector<1x512xf32>
    %120 = vector.broadcast %118 : vector<32x1xf32> to vector<32x512xf32>
    %121 = vector.broadcast %119 : vector<1x512xf32> to vector<32x512xf32>
    %122 = arith.mulf %120, %121 : vector<32x512xf32>
    %123 = arith.addf %117, %122 : vector<32x512xf32>
    %124 = vector.extract_strided_slice %52 {offsets = [0, 12], sizes = [32, 1], strides = [1, 1]} : vector<32x16xf32> to vector<32x1xf32>
    %125 = vector.extract_strided_slice %51 {offsets = [12, 0], sizes = [1, 512], strides = [1, 1]} : vector<16x512xf32> to vector<1x512xf32>
    %126 = vector.broadcast %124 : vector<32x1xf32> to vector<32x512xf32>
    %127 = vector.broadcast %125 : vector<1x512xf32> to vector<32x512xf32>
    %128 = arith.mulf %126, %127 : vector<32x512xf32>
    %129 = arith.addf %123, %128 : vector<32x512xf32>
    %130 = vector.extract_strided_slice %52 {offsets = [0, 13], sizes = [32, 1], strides = [1, 1]} : vector<32x16xf32> to vector<32x1xf32>
    %131 = vector.extract_strided_slice %51 {offsets = [13, 0], sizes = [1, 512], strides = [1, 1]} : vector<16x512xf32> to vector<1x512xf32>
    %132 = vector.broadcast %130 : vector<32x1xf32> to vector<32x512xf32>
    %133 = vector.broadcast %131 : vector<1x512xf32> to vector<32x512xf32>
    %134 = arith.mulf %132, %133 : vector<32x512xf32>
    %135 = arith.addf %129, %134 : vector<32x512xf32>
    %136 = vector.extract_strided_slice %52 {offsets = [0, 14], sizes = [32, 1], strides = [1, 1]} : vector<32x16xf32> to vector<32x1xf32>
    %137 = vector.extract_strided_slice %51 {offsets = [14, 0], sizes = [1, 512], strides = [1, 1]} : vector<16x512xf32> to vector<1x512xf32>
    %138 = vector.broadcast %136 : vector<32x1xf32> to vector<32x512xf32>
    %139 = vector.broadcast %137 : vector<1x512xf32> to vector<32x512xf32>
    %140 = arith.mulf %138, %139 : vector<32x512xf32>
    %141 = arith.addf %135, %140 : vector<32x512xf32>
    %142 = vector.extract_strided_slice %52 {offsets = [0, 15], sizes = [32, 1], strides = [1, 1]} : vector<32x16xf32> to vector<32x1xf32>
    %143 = vector.extract_strided_slice %51 {offsets = [15, 0], sizes = [1, 512], strides = [1, 1]} : vector<16x512xf32> to vector<1x512xf32>
    %144 = vector.broadcast %142 : vector<32x1xf32> to vector<32x512xf32>
    %145 = vector.broadcast %143 : vector<1x512xf32> to vector<32x512xf32>
    %146 = arith.mulf %144, %145 : vector<32x512xf32>
    %147 = arith.addf %141, %146 : vector<32x512xf32>
    %c0_15 = arith.constant 0 : index
    %c0_16 = arith.constant 0 : index
    %148 = vector.load %arg5[%c0_15, %c0_16] : memref<32x1xf32, #tpu.memory_space<vmem>>, vector<32x1xf32>
    %c0_17 = arith.constant 0 : index
    %c0_18 = arith.constant 0 : index
    %149 = vector.load %arg6[%c0_17, %c0_18] : memref<32x1xf32, #tpu.memory_space<vmem>>, vector<32x1xf32>
    %cst_19 = arith.constant dense<0.000000e+00> : vector<32xf32>
    %150 = vector.multi_reduction <add>, %147, %cst_19 [1] : vector<32x512xf32> to vector<32xf32>
    %151 = vector.shape_cast %150 : vector<32xf32> to vector<32x1xf32>
    %cst_20 = arith.constant 0.001953125 : f32
    %152 = vector.broadcast %cst_20 : f32 to vector<32x1xf32>
    %153 = arith.mulf %151, %152 : vector<32x1xf32>
    %154 = arith.mulf %147, %147 : vector<32x512xf32>
    %cst_21 = arith.constant dense<0.000000e+00> : vector<32xf32>
    %155 = vector.multi_reduction <add>, %154, %cst_21 [1] : vector<32x512xf32> to vector<32xf32>
    %156 = vector.shape_cast %155 : vector<32xf32> to vector<32x1xf32>
    %cst_22 = arith.constant 0.001953125 : f32
    %157 = vector.broadcast %cst_22 : f32 to vector<32x1xf32>
    %158 = arith.mulf %156, %157 : vector<32x1xf32>
    %159 = arith.mulf %153, %153 : vector<32x1xf32>
    %160 = arith.subf %158, %159 : vector<32x1xf32>
    %cst_23 = arith.constant 0.000000e+00 : f32
    %161 = vector.broadcast %cst_23 : f32 to vector<32x1xf32>
    %162 = arith.maximumf %160, %161 : vector<32x1xf32>
    %cst_24 = arith.constant 9.99999974E-6 : f32
    %163 = vector.broadcast %cst_24 : f32 to vector<32x1xf32>
    %164 = arith.addf %162, %163 : vector<32x1xf32>
    %165 = math.rsqrt %164 : vector<32x1xf32>
    %166 = arith.mulf %148, %165 : vector<32x1xf32>
    %167 = arith.mulf %153, %166 : vector<32x1xf32>
    %168 = arith.subf %149, %167 : vector<32x1xf32>
    %169 = vector.broadcast %166 : vector<32x1xf32> to vector<32x512xf32>
    %170 = arith.mulf %147, %169 : vector<32x512xf32>
    %171 = vector.broadcast %168 : vector<32x1xf32> to vector<32x512xf32>
    %172 = arith.addf %170, %171 : vector<32x512xf32>
    %cst_25 = arith.constant 0.000000e+00 : f32
    %173 = vector.broadcast %cst_25 : f32 to vector<32x512xf32>
    %174 = arith.maximumf %172, %173 : vector<32x512xf32>
    %c0_26 = arith.constant 0 : index
    %c0_27 = arith.constant 0 : index
    %175 = vector.load %arg7[%c0_26, %c0_27] : memref<64x32xf32, #tpu.memory_space<vmem>>, vector<64x32xf32>
    %176 = vector.extract_strided_slice %175 {offsets = [0, 0], sizes = [64, 1], strides = [1, 1]} : vector<64x32xf32> to vector<64x1xf32>
    %177 = vector.extract_strided_slice %174 {offsets = [0, 0], sizes = [1, 512], strides = [1, 1]} : vector<32x512xf32> to vector<1x512xf32>
    %178 = vector.broadcast %176 : vector<64x1xf32> to vector<64x512xf32>
    %179 = vector.broadcast %177 : vector<1x512xf32> to vector<64x512xf32>
    %180 = arith.mulf %178, %179 : vector<64x512xf32>
    %181 = vector.extract_strided_slice %175 {offsets = [0, 1], sizes = [64, 1], strides = [1, 1]} : vector<64x32xf32> to vector<64x1xf32>
    %182 = vector.extract_strided_slice %174 {offsets = [1, 0], sizes = [1, 512], strides = [1, 1]} : vector<32x512xf32> to vector<1x512xf32>
    %183 = vector.broadcast %181 : vector<64x1xf32> to vector<64x512xf32>
    %184 = vector.broadcast %182 : vector<1x512xf32> to vector<64x512xf32>
    %185 = arith.mulf %183, %184 : vector<64x512xf32>
    %186 = arith.addf %180, %185 : vector<64x512xf32>
    %187 = vector.extract_strided_slice %175 {offsets = [0, 2], sizes = [64, 1], strides = [1, 1]} : vector<64x32xf32> to vector<64x1xf32>
    %188 = vector.extract_strided_slice %174 {offsets = [2, 0], sizes = [1, 512], strides = [1, 1]} : vector<32x512xf32> to vector<1x512xf32>
    %189 = vector.broadcast %187 : vector<64x1xf32> to vector<64x512xf32>
    %190 = vector.broadcast %188 : vector<1x512xf32> to vector<64x512xf32>
    %191 = arith.mulf %189, %190 : vector<64x512xf32>
    %192 = arith.addf %186, %191 : vector<64x512xf32>
    %193 = vector.extract_strided_slice %175 {offsets = [0, 3], sizes = [64, 1], strides = [1, 1]} : vector<64x32xf32> to vector<64x1xf32>
    %194 = vector.extract_strided_slice %174 {offsets = [3, 0], sizes = [1, 512], strides = [1, 1]} : vector<32x512xf32> to vector<1x512xf32>
    %195 = vector.broadcast %193 : vector<64x1xf32> to vector<64x512xf32>
    %196 = vector.broadcast %194 : vector<1x512xf32> to vector<64x512xf32>
    %197 = arith.mulf %195, %196 : vector<64x512xf32>
    %198 = arith.addf %192, %197 : vector<64x512xf32>
    %199 = vector.extract_strided_slice %175 {offsets = [0, 4], sizes = [64, 1], strides = [1, 1]} : vector<64x32xf32> to vector<64x1xf32>
    %200 = vector.extract_strided_slice %174 {offsets = [4, 0], sizes = [1, 512], strides = [1, 1]} : vector<32x512xf32> to vector<1x512xf32>
    %201 = vector.broadcast %199 : vector<64x1xf32> to vector<64x512xf32>
    %202 = vector.broadcast %200 : vector<1x512xf32> to vector<64x512xf32>
    %203 = arith.mulf %201, %202 : vector<64x512xf32>
    %204 = arith.addf %198, %203 : vector<64x512xf32>
    %205 = vector.extract_strided_slice %175 {offsets = [0, 5], sizes = [64, 1], strides = [1, 1]} : vector<64x32xf32> to vector<64x1xf32>
    %206 = vector.extract_strided_slice %174 {offsets = [5, 0], sizes = [1, 512], strides = [1, 1]} : vector<32x512xf32> to vector<1x512xf32>
    %207 = vector.broadcast %205 : vector<64x1xf32> to vector<64x512xf32>
    %208 = vector.broadcast %206 : vector<1x512xf32> to vector<64x512xf32>
    %209 = arith.mulf %207, %208 : vector<64x512xf32>
    %210 = arith.addf %204, %209 : vector<64x512xf32>
    %211 = vector.extract_strided_slice %175 {offsets = [0, 6], sizes = [64, 1], strides = [1, 1]} : vector<64x32xf32> to vector<64x1xf32>
    %212 = vector.extract_strided_slice %174 {offsets = [6, 0], sizes = [1, 512], strides = [1, 1]} : vector<32x512xf32> to vector<1x512xf32>
    %213 = vector.broadcast %211 : vector<64x1xf32> to vector<64x512xf32>
    %214 = vector.broadcast %212 : vector<1x512xf32> to vector<64x512xf32>
    %215 = arith.mulf %213, %214 : vector<64x512xf32>
    %216 = arith.addf %210, %215 : vector<64x512xf32>
    %217 = vector.extract_strided_slice %175 {offsets = [0, 7], sizes = [64, 1], strides = [1, 1]} : vector<64x32xf32> to vector<64x1xf32>
    %218 = vector.extract_strided_slice %174 {offsets = [7, 0], sizes = [1, 512], strides = [1, 1]} : vector<32x512xf32> to vector<1x512xf32>
    %219 = vector.broadcast %217 : vector<64x1xf32> to vector<64x512xf32>
    %220 = vector.broadcast %218 : vector<1x512xf32> to vector<64x512xf32>
    %221 = arith.mulf %219, %220 : vector<64x512xf32>
    %222 = arith.addf %216, %221 : vector<64x512xf32>
    %223 = vector.extract_strided_slice %175 {offsets = [0, 8], sizes = [64, 1], strides = [1, 1]} : vector<64x32xf32> to vector<64x1xf32>
    %224 = vector.extract_strided_slice %174 {offsets = [8, 0], sizes = [1, 512], strides = [1, 1]} : vector<32x512xf32> to vector<1x512xf32>
    %225 = vector.broadcast %223 : vector<64x1xf32> to vector<64x512xf32>
    %226 = vector.broadcast %224 : vector<1x512xf32> to vector<64x512xf32>
    %227 = arith.mulf %225, %226 : vector<64x512xf32>
    %228 = arith.addf %222, %227 : vector<64x512xf32>
    %229 = vector.extract_strided_slice %175 {offsets = [0, 9], sizes = [64, 1], strides = [1, 1]} : vector<64x32xf32> to vector<64x1xf32>
    %230 = vector.extract_strided_slice %174 {offsets = [9, 0], sizes = [1, 512], strides = [1, 1]} : vector<32x512xf32> to vector<1x512xf32>
    %231 = vector.broadcast %229 : vector<64x1xf32> to vector<64x512xf32>
    %232 = vector.broadcast %230 : vector<1x512xf32> to vector<64x512xf32>
    %233 = arith.mulf %231, %232 : vector<64x512xf32>
    %234 = arith.addf %228, %233 : vector<64x512xf32>
    %235 = vector.extract_strided_slice %175 {offsets = [0, 10], sizes = [64, 1], strides = [1, 1]} : vector<64x32xf32> to vector<64x1xf32>
    %236 = vector.extract_strided_slice %174 {offsets = [10, 0], sizes = [1, 512], strides = [1, 1]} : vector<32x512xf32> to vector<1x512xf32>
    %237 = vector.broadcast %235 : vector<64x1xf32> to vector<64x512xf32>
    %238 = vector.broadcast %236 : vector<1x512xf32> to vector<64x512xf32>
    %239 = arith.mulf %237, %238 : vector<64x512xf32>
    %240 = arith.addf %234, %239 : vector<64x512xf32>
    %241 = vector.extract_strided_slice %175 {offsets = [0, 11], sizes = [64, 1], strides = [1, 1]} : vector<64x32xf32> to vector<64x1xf32>
    %242 = vector.extract_strided_slice %174 {offsets = [11, 0], sizes = [1, 512], strides = [1, 1]} : vector<32x512xf32> to vector<1x512xf32>
    %243 = vector.broadcast %241 : vector<64x1xf32> to vector<64x512xf32>
    %244 = vector.broadcast %242 : vector<1x512xf32> to vector<64x512xf32>
    %245 = arith.mulf %243, %244 : vector<64x512xf32>
    %246 = arith.addf %240, %245 : vector<64x512xf32>
    %247 = vector.extract_strided_slice %175 {offsets = [0, 12], sizes = [64, 1], strides = [1, 1]} : vector<64x32xf32> to vector<64x1xf32>
    %248 = vector.extract_strided_slice %174 {offsets = [12, 0], sizes = [1, 512], strides = [1, 1]} : vector<32x512xf32> to vector<1x512xf32>
    %249 = vector.broadcast %247 : vector<64x1xf32> to vector<64x512xf32>
    %250 = vector.broadcast %248 : vector<1x512xf32> to vector<64x512xf32>
    %251 = arith.mulf %249, %250 : vector<64x512xf32>
    %252 = arith.addf %246, %251 : vector<64x512xf32>
    %253 = vector.extract_strided_slice %175 {offsets = [0, 13], sizes = [64, 1], strides = [1, 1]} : vector<64x32xf32> to vector<64x1xf32>
    %254 = vector.extract_strided_slice %174 {offsets = [13, 0], sizes = [1, 512], strides = [1, 1]} : vector<32x512xf32> to vector<1x512xf32>
    %255 = vector.broadcast %253 : vector<64x1xf32> to vector<64x512xf32>
    %256 = vector.broadcast %254 : vector<1x512xf32> to vector<64x512xf32>
    %257 = arith.mulf %255, %256 : vector<64x512xf32>
    %258 = arith.addf %252, %257 : vector<64x512xf32>
    %259 = vector.extract_strided_slice %175 {offsets = [0, 14], sizes = [64, 1], strides = [1, 1]} : vector<64x32xf32> to vector<64x1xf32>
    %260 = vector.extract_strided_slice %174 {offsets = [14, 0], sizes = [1, 512], strides = [1, 1]} : vector<32x512xf32> to vector<1x512xf32>
    %261 = vector.broadcast %259 : vector<64x1xf32> to vector<64x512xf32>
    %262 = vector.broadcast %260 : vector<1x512xf32> to vector<64x512xf32>
    %263 = arith.mulf %261, %262 : vector<64x512xf32>
    %264 = arith.addf %258, %263 : vector<64x512xf32>
    %265 = vector.extract_strided_slice %175 {offsets = [0, 15], sizes = [64, 1], strides = [1, 1]} : vector<64x32xf32> to vector<64x1xf32>
    %266 = vector.extract_strided_slice %174 {offsets = [15, 0], sizes = [1, 512], strides = [1, 1]} : vector<32x512xf32> to vector<1x512xf32>
    %267 = vector.broadcast %265 : vector<64x1xf32> to vector<64x512xf32>
    %268 = vector.broadcast %266 : vector<1x512xf32> to vector<64x512xf32>
    %269 = arith.mulf %267, %268 : vector<64x512xf32>
    %270 = arith.addf %264, %269 : vector<64x512xf32>
    %271 = vector.extract_strided_slice %175 {offsets = [0, 16], sizes = [64, 1], strides = [1, 1]} : vector<64x32xf32> to vector<64x1xf32>
    %272 = vector.extract_strided_slice %174 {offsets = [16, 0], sizes = [1, 512], strides = [1, 1]} : vector<32x512xf32> to vector<1x512xf32>
    %273 = vector.broadcast %271 : vector<64x1xf32> to vector<64x512xf32>
    %274 = vector.broadcast %272 : vector<1x512xf32> to vector<64x512xf32>
    %275 = arith.mulf %273, %274 : vector<64x512xf32>
    %276 = arith.addf %270, %275 : vector<64x512xf32>
    %277 = vector.extract_strided_slice %175 {offsets = [0, 17], sizes = [64, 1], strides = [1, 1]} : vector<64x32xf32> to vector<64x1xf32>
    %278 = vector.extract_strided_slice %174 {offsets = [17, 0], sizes = [1, 512], strides = [1, 1]} : vector<32x512xf32> to vector<1x512xf32>
    %279 = vector.broadcast %277 : vector<64x1xf32> to vector<64x512xf32>
    %280 = vector.broadcast %278 : vector<1x512xf32> to vector<64x512xf32>
    %281 = arith.mulf %279, %280 : vector<64x512xf32>
    %282 = arith.addf %276, %281 : vector<64x512xf32>
    %283 = vector.extract_strided_slice %175 {offsets = [0, 18], sizes = [64, 1], strides = [1, 1]} : vector<64x32xf32> to vector<64x1xf32>
    %284 = vector.extract_strided_slice %174 {offsets = [18, 0], sizes = [1, 512], strides = [1, 1]} : vector<32x512xf32> to vector<1x512xf32>
    %285 = vector.broadcast %283 : vector<64x1xf32> to vector<64x512xf32>
    %286 = vector.broadcast %284 : vector<1x512xf32> to vector<64x512xf32>
    %287 = arith.mulf %285, %286 : vector<64x512xf32>
    %288 = arith.addf %282, %287 : vector<64x512xf32>
    %289 = vector.extract_strided_slice %175 {offsets = [0, 19], sizes = [64, 1], strides = [1, 1]} : vector<64x32xf32> to vector<64x1xf32>
    %290 = vector.extract_strided_slice %174 {offsets = [19, 0], sizes = [1, 512], strides = [1, 1]} : vector<32x512xf32> to vector<1x512xf32>
    %291 = vector.broadcast %289 : vector<64x1xf32> to vector<64x512xf32>
    %292 = vector.broadcast %290 : vector<1x512xf32> to vector<64x512xf32>
    %293 = arith.mulf %291, %292 : vector<64x512xf32>
    %294 = arith.addf %288, %293 : vector<64x512xf32>
    %295 = vector.extract_strided_slice %175 {offsets = [0, 20], sizes = [64, 1], strides = [1, 1]} : vector<64x32xf32> to vector<64x1xf32>
    %296 = vector.extract_strided_slice %174 {offsets = [20, 0], sizes = [1, 512], strides = [1, 1]} : vector<32x512xf32> to vector<1x512xf32>
    %297 = vector.broadcast %295 : vector<64x1xf32> to vector<64x512xf32>
    %298 = vector.broadcast %296 : vector<1x512xf32> to vector<64x512xf32>
    %299 = arith.mulf %297, %298 : vector<64x512xf32>
    %300 = arith.addf %294, %299 : vector<64x512xf32>
    %301 = vector.extract_strided_slice %175 {offsets = [0, 21], sizes = [64, 1], strides = [1, 1]} : vector<64x32xf32> to vector<64x1xf32>
    %302 = vector.extract_strided_slice %174 {offsets = [21, 0], sizes = [1, 512], strides = [1, 1]} : vector<32x512xf32> to vector<1x512xf32>
    %303 = vector.broadcast %301 : vector<64x1xf32> to vector<64x512xf32>
    %304 = vector.broadcast %302 : vector<1x512xf32> to vector<64x512xf32>
    %305 = arith.mulf %303, %304 : vector<64x512xf32>
    %306 = arith.addf %300, %305 : vector<64x512xf32>
    %307 = vector.extract_strided_slice %175 {offsets = [0, 22], sizes = [64, 1], strides = [1, 1]} : vector<64x32xf32> to vector<64x1xf32>
    %308 = vector.extract_strided_slice %174 {offsets = [22, 0], sizes = [1, 512], strides = [1, 1]} : vector<32x512xf32> to vector<1x512xf32>
    %309 = vector.broadcast %307 : vector<64x1xf32> to vector<64x512xf32>
    %310 = vector.broadcast %308 : vector<1x512xf32> to vector<64x512xf32>
    %311 = arith.mulf %309, %310 : vector<64x512xf32>
    %312 = arith.addf %306, %311 : vector<64x512xf32>
    %313 = vector.extract_strided_slice %175 {offsets = [0, 23], sizes = [64, 1], strides = [1, 1]} : vector<64x32xf32> to vector<64x1xf32>
    %314 = vector.extract_strided_slice %174 {offsets = [23, 0], sizes = [1, 512], strides = [1, 1]} : vector<32x512xf32> to vector<1x512xf32>
    %315 = vector.broadcast %313 : vector<64x1xf32> to vector<64x512xf32>
    %316 = vector.broadcast %314 : vector<1x512xf32> to vector<64x512xf32>
    %317 = arith.mulf %315, %316 : vector<64x512xf32>
    %318 = arith.addf %312, %317 : vector<64x512xf32>
    %319 = vector.extract_strided_slice %175 {offsets = [0, 24], sizes = [64, 1], strides = [1, 1]} : vector<64x32xf32> to vector<64x1xf32>
    %320 = vector.extract_strided_slice %174 {offsets = [24, 0], sizes = [1, 512], strides = [1, 1]} : vector<32x512xf32> to vector<1x512xf32>
    %321 = vector.broadcast %319 : vector<64x1xf32> to vector<64x512xf32>
    %322 = vector.broadcast %320 : vector<1x512xf32> to vector<64x512xf32>
    %323 = arith.mulf %321, %322 : vector<64x512xf32>
    %324 = arith.addf %318, %323 : vector<64x512xf32>
    %325 = vector.extract_strided_slice %175 {offsets = [0, 25], sizes = [64, 1], strides = [1, 1]} : vector<64x32xf32> to vector<64x1xf32>
    %326 = vector.extract_strided_slice %174 {offsets = [25, 0], sizes = [1, 512], strides = [1, 1]} : vector<32x512xf32> to vector<1x512xf32>
    %327 = vector.broadcast %325 : vector<64x1xf32> to vector<64x512xf32>
    %328 = vector.broadcast %326 : vector<1x512xf32> to vector<64x512xf32>
    %329 = arith.mulf %327, %328 : vector<64x512xf32>
    %330 = arith.addf %324, %329 : vector<64x512xf32>
    %331 = vector.extract_strided_slice %175 {offsets = [0, 26], sizes = [64, 1], strides = [1, 1]} : vector<64x32xf32> to vector<64x1xf32>
    %332 = vector.extract_strided_slice %174 {offsets = [26, 0], sizes = [1, 512], strides = [1, 1]} : vector<32x512xf32> to vector<1x512xf32>
    %333 = vector.broadcast %331 : vector<64x1xf32> to vector<64x512xf32>
    %334 = vector.broadcast %332 : vector<1x512xf32> to vector<64x512xf32>
    %335 = arith.mulf %333, %334 : vector<64x512xf32>
    %336 = arith.addf %330, %335 : vector<64x512xf32>
    %337 = vector.extract_strided_slice %175 {offsets = [0, 27], sizes = [64, 1], strides = [1, 1]} : vector<64x32xf32> to vector<64x1xf32>
    %338 = vector.extract_strided_slice %174 {offsets = [27, 0], sizes = [1, 512], strides = [1, 1]} : vector<32x512xf32> to vector<1x512xf32>
    %339 = vector.broadcast %337 : vector<64x1xf32> to vector<64x512xf32>
    %340 = vector.broadcast %338 : vector<1x512xf32> to vector<64x512xf32>
    %341 = arith.mulf %339, %340 : vector<64x512xf32>
    %342 = arith.addf %336, %341 : vector<64x512xf32>
    %343 = vector.extract_strided_slice %175 {offsets = [0, 28], sizes = [64, 1], strides = [1, 1]} : vector<64x32xf32> to vector<64x1xf32>
    %344 = vector.extract_strided_slice %174 {offsets = [28, 0], sizes = [1, 512], strides = [1, 1]} : vector<32x512xf32> to vector<1x512xf32>
    %345 = vector.broadcast %343 : vector<64x1xf32> to vector<64x512xf32>
    %346 = vector.broadcast %344 : vector<1x512xf32> to vector<64x512xf32>
    %347 = arith.mulf %345, %346 : vector<64x512xf32>
    %348 = arith.addf %342, %347 : vector<64x512xf32>
    %349 = vector.extract_strided_slice %175 {offsets = [0, 29], sizes = [64, 1], strides = [1, 1]} : vector<64x32xf32> to vector<64x1xf32>
    %350 = vector.extract_strided_slice %174 {offsets = [29, 0], sizes = [1, 512], strides = [1, 1]} : vector<32x512xf32> to vector<1x512xf32>
    %351 = vector.broadcast %349 : vector<64x1xf32> to vector<64x512xf32>
    %352 = vector.broadcast %350 : vector<1x512xf32> to vector<64x512xf32>
    %353 = arith.mulf %351, %352 : vector<64x512xf32>
    %354 = arith.addf %348, %353 : vector<64x512xf32>
    %355 = vector.extract_strided_slice %175 {offsets = [0, 30], sizes = [64, 1], strides = [1, 1]} : vector<64x32xf32> to vector<64x1xf32>
    %356 = vector.extract_strided_slice %174 {offsets = [30, 0], sizes = [1, 512], strides = [1, 1]} : vector<32x512xf32> to vector<1x512xf32>
    %357 = vector.broadcast %355 : vector<64x1xf32> to vector<64x512xf32>
    %358 = vector.broadcast %356 : vector<1x512xf32> to vector<64x512xf32>
    %359 = arith.mulf %357, %358 : vector<64x512xf32>
    %360 = arith.addf %354, %359 : vector<64x512xf32>
    %361 = vector.extract_strided_slice %175 {offsets = [0, 31], sizes = [64, 1], strides = [1, 1]} : vector<64x32xf32> to vector<64x1xf32>
    %362 = vector.extract_strided_slice %174 {offsets = [31, 0], sizes = [1, 512], strides = [1, 1]} : vector<32x512xf32> to vector<1x512xf32>
    %363 = vector.broadcast %361 : vector<64x1xf32> to vector<64x512xf32>
    %364 = vector.broadcast %362 : vector<1x512xf32> to vector<64x512xf32>
    %365 = arith.mulf %363, %364 : vector<64x512xf32>
    %366 = arith.addf %360, %365 : vector<64x512xf32>
    %c0_28 = arith.constant 0 : index
    %c0_29 = arith.constant 0 : index
    %367 = vector.load %arg8[%c0_28, %c0_29] : memref<64x1xf32, #tpu.memory_space<vmem>>, vector<64x1xf32>
    %c0_30 = arith.constant 0 : index
    %c0_31 = arith.constant 0 : index
    %368 = vector.load %arg9[%c0_30, %c0_31] : memref<64x1xf32, #tpu.memory_space<vmem>>, vector<64x1xf32>
    %cst_32 = arith.constant dense<0.000000e+00> : vector<64xf32>
    %369 = vector.multi_reduction <add>, %366, %cst_32 [1] : vector<64x512xf32> to vector<64xf32>
    %370 = vector.shape_cast %369 : vector<64xf32> to vector<64x1xf32>
    %cst_33 = arith.constant 0.001953125 : f32
    %371 = vector.broadcast %cst_33 : f32 to vector<64x1xf32>
    %372 = arith.mulf %370, %371 : vector<64x1xf32>
    %373 = arith.mulf %366, %366 : vector<64x512xf32>
    %cst_34 = arith.constant dense<0.000000e+00> : vector<64xf32>
    %374 = vector.multi_reduction <add>, %373, %cst_34 [1] : vector<64x512xf32> to vector<64xf32>
    %375 = vector.shape_cast %374 : vector<64xf32> to vector<64x1xf32>
    %cst_35 = arith.constant 0.001953125 : f32
    %376 = vector.broadcast %cst_35 : f32 to vector<64x1xf32>
    %377 = arith.mulf %375, %376 : vector<64x1xf32>
    %378 = arith.mulf %372, %372 : vector<64x1xf32>
    %379 = arith.subf %377, %378 : vector<64x1xf32>
    %cst_36 = arith.constant 0.000000e+00 : f32
    %380 = vector.broadcast %cst_36 : f32 to vector<64x1xf32>
    %381 = arith.maximumf %379, %380 : vector<64x1xf32>
    %cst_37 = arith.constant 9.99999974E-6 : f32
    %382 = vector.broadcast %cst_37 : f32 to vector<64x1xf32>
    %383 = arith.addf %381, %382 : vector<64x1xf32>
    %384 = math.rsqrt %383 : vector<64x1xf32>
    %385 = arith.mulf %367, %384 : vector<64x1xf32>
    %386 = arith.mulf %372, %385 : vector<64x1xf32>
    %387 = arith.subf %368, %386 : vector<64x1xf32>
    %388 = vector.broadcast %385 : vector<64x1xf32> to vector<64x512xf32>
    %389 = arith.mulf %366, %388 : vector<64x512xf32>
    %390 = vector.broadcast %387 : vector<64x1xf32> to vector<64x512xf32>
    %391 = arith.addf %389, %390 : vector<64x512xf32>
    %cst_38 = arith.constant 0.000000e+00 : f32
    %392 = vector.broadcast %cst_38 : f32 to vector<64x512xf32>
    %393 = arith.maximumf %391, %392 : vector<64x512xf32>
    %c0_39 = arith.constant 0 : index
    %c0_40 = arith.constant 0 : index
    %394 = vector.load %arg10[%c0_39, %c0_40] : memref<64x512xf32, #tpu.memory_space<vmem>>, vector<64x512xf32>
    tpu.vector_store %arg10[%c0_39, %c0_40], %393 {strides = array<i32>} : memref<64x512xf32, #tpu.memory_space<vmem>>, vector<64x512xf32>,
    return
  }
}

</mosaic_0001>

<llo_original>
// kernel: tpu_custom_call.1
$region0: #{tpu_custom_call.1}
  #allocation0 [shape = 'u32[]', space=smem, size = 0x4, offset = 0x4, fixed_abs, tag = 'smem constant byte address 0x4 - core index']
  #allocation1 [shape = 'u32[144,128]{1,0:T(1,128)}', space=vmem, size = 0x12000, scoped, tag = 'internal scratch']
  %s0 = inlined_call_operand.vmem [shape: f32[4,512], index: 0, kind: input, shape index: {}]
  %s1 = inlined_call_operand.vmem [shape: f32[16,4], index: 1, kind: input, shape index: {}]
  %s2 = inlined_call_operand.vmem [shape: f32[16,1], index: 2, kind: input, shape index: {}]
  %s3 = inlined_call_operand.vmem [shape: f32[16,1], index: 3, kind: input, shape index: {}]
  %s4 = inlined_call_operand.vmem [shape: f32[32,16], index: 4, kind: input, shape index: {}]
  %s5 = inlined_call_operand.vmem [shape: f32[32,1], index: 5, kind: input, shape index: {}]
  %s6 = inlined_call_operand.vmem [shape: f32[32,1], index: 6, kind: input, shape index: {}]
  %s7 = inlined_call_operand.vmem [shape: f32[64,32], index: 7, kind: input, shape index: {}]
  %s8 = inlined_call_operand.vmem [shape: f32[64,1], index: 8, kind: input, shape index: {}]
  %s9 = inlined_call_operand.vmem [shape: f32[64,1], index: 9, kind: input, shape index: {}]
  %s10 = inlined_call_operand.hbm [shape: f32[64,512], index: 10, kind: output, shape index: {}]
  %s11 = sld [smem:[#allocation0]]
  $region50: #{tpu_custom_call.1} parent=0
    _
  %s13 = ssub.s32 1, %s11
  %s14 = scalar_select 0, %s13, %s11
  $region1: #{tpu_custom_call.1} parent=0
    #allocation2 [shape = 'u8[131072]{0}', space=vmem, size = 0x20000, scoped, tag = 'output window, operand 0, single buffered']
    #allocation3 [shape = 's32[1]{0}', space=sflag, size = 0x4, scoped, tag = 'scoped memory for tpu_custom_call.1']
    %15 = vsyncpa [#allocation3], 0
    // Predicated region
    $region2: #{tpu_custom_call.1} parent=1 // pred_check
      _
    $region3: #{tpu_custom_call.1} parent=1 // pred_check_branch
      %17 = sbr.rel (0) target = $region5
    $region4: #{tpu_custom_call.1} parent=1 // pred_region
      _
    $region5: #{tpu_custom_call.1} parent=1 // pred_fallthru
      _
    // Predicated region
    $region6: #{tpu_custom_call.1} parent=1 // pred_check
      _
    $region7: #{tpu_custom_call.1} parent=1 // pred_check_branch
      %19 = sbr.rel (0) target = $region9
    $region8: #{tpu_custom_call.1} parent=1 // pred_region
      _
    $region9: #{tpu_custom_call.1} parent=1 // pred_fallthru
      _
    // Predicated region
    $region10: #{tpu_custom_call.1} parent=1 // pred_check
      _
    $region11: #{tpu_custom_call.1} parent=1 // pred_check_branch
      %21 = sbr.rel (0) target = $region13
    $region12: #{tpu_custom_call.1} parent=1 // pred_region
      _
    $region13: #{tpu_custom_call.1} parent=1 // pred_fallthru
      _
    // Predicated region
    $region14: #{tpu_custom_call.1} parent=1 // pred_check
      _
    $region15: #{tpu_custom_call.1} parent=1 // pred_check_branch
      %23 = sbr.rel (0) target = $region17
    $region16: #{tpu_custom_call.1} parent=1 // pred_region
      _
    $region17: #{tpu_custom_call.1} parent=1 // pred_fallthru
      _
    // Predicated region
    $region18: #{tpu_custom_call.1} parent=1 // pred_check
      _
    $region19: #{tpu_custom_call.1} parent=1 // pred_check_branch
      %25 = sbr.rel (0) target = $region21
    $region20: #{tpu_custom_call.1} parent=1 // pred_region
      _
    $region21: #{tpu_custom_call.1} parent=1 // pred_fallthru
      _
    // Predicated region
    $region22: #{tpu_custom_call.1} parent=1 // pred_check
      _
    $region23: #{tpu_custom_call.1} parent=1 // pred_check_branch
      %27 = sbr.rel (0) target = $region25
    $region24: #{tpu_custom_call.1} parent=1 // pred_region
      _
    $region25: #{tpu_custom_call.1} parent=1 // pred_fallthru
      _
    // Predicated region
    $region26: #{tpu_custom_call.1} parent=1 // pred_check
      _
    $region27: #{tpu_custom_call.1} parent=1 // pred_check_branch
      %29 = sbr.rel (0) target = $region29
    $region28: #{tpu_custom_call.1} parent=1 // pred_region
      _
    $region29: #{tpu_custom_call.1} parent=1 // pred_fallthru
      _
    // Predicated region
    $region30: #{tpu_custom_call.1} parent=1 // pred_check
      _
    $region31: #{tpu_custom_call.1} parent=1 // pred_check_branch
      %31 = sbr.rel (0) target = $region33
    $region32: #{tpu_custom_call.1} parent=1 // pred_region
      _
    $region33: #{tpu_custom_call.1} parent=1 // pred_fallthru
      _
    // Predicated region
    $region34: #{tpu_custom_call.1} parent=1 // pred_check
      _
    $region35: #{tpu_custom_call.1} parent=1 // pred_check_branch
      %33 = sbr.rel (0) target = $region37
    $region36: #{tpu_custom_call.1} parent=1 // pred_region
      _
    $region37: #{tpu_custom_call.1} parent=1 // pred_fallthru
      _
    // Predicated region
    $region38: #{tpu_custom_call.1} parent=1 // pred_check
      _
    $region39: #{tpu_custom_call.1} parent=1 // pred_check_branch
      %35 = sbr.rel (0) target = $region41
    $region40: #{tpu_custom_call.1} parent=1 // pred_region
      _
    $region41: #{tpu_custom_call.1} parent=1 // pred_fallthru
      _
    %v36 = vld [vmem:[%s0] sm:$0xff]
    %v37 = vld [vmem:[%s0 + $0x8] sm:$0xff]
    %v38 = vld [vmem:[%s1] sm:$0xff]
    %v39 = vld [vmem:[%s1 + $0x8] sm:$0xff]
    %41 = vset.pattern.permute.xlu0 0
    %42 = vperm.xlu0 %41, %v38
    %v43 = vpop.permute.xlu0 %42
    %46 = vset.pattern.permute.xlu0 0
    %47 = vperm.xlu0 %46, %v39
    %v48 = vpop.permute.xlu0 %47
    %v52 = vlaneseq
    %v53 = vshrl.u32 %v52, 7
    %v54 = vsub.s32 0, %v53
    %v55 = vrot.slane %v36, %v54
    %v56 = vlaneseq
    %v57 = vshrl.u32 %v56, 7
    %v58 = vsub.s32 4, %v57
    %v59 = vrot.slane %v36, %v58
    %v60 = vlaneseq
    %v61 = vshrl.u32 %v60, 7
    %v62 = vsub.s32 0, %v61
    %v63 = vrot.slane %v37, %v62
    %v64 = vlaneseq
    %v65 = vshrl.u32 %v64, 7
    %v66 = vsub.s32 4, %v65
    %v67 = vrot.slane %v37, %v66
    %v72 = vlaneseq
    %v73 = vshrl.u32 %v72, 7
    %v74 = vsub.s32 0, %v73
    %v75 = vrot.slane %v55, %v74
    %v76 = vlaneseq
    %v77 = vshrl.u32 %v76, 7
    %v78 = vsub.s32 0, %v77
    %v79 = vrot.slane %v59, %v78
    %v80 = vlaneseq
    %v81 = vshrl.u32 %v80, 7
    %v82 = vsub.s32 0, %v81
    %v83 = vrot.slane %v63, %v82
    %v84 = vlaneseq
    %v85 = vshrl.u32 %v84, 7
    %v86 = vsub.s32 0, %v85
    %v87 = vrot.slane %v67, %v86
    %v88 = vmul.f32 %v43, %v75
    %v89 = vmul.f32 %v43, %v79
    %v90 = vmul.f32 %v43, %v83
    %v91 = vmul.f32 %v43, %v87
    %v92 = vmul.f32 %v48, %v75
    %v93 = vmul.f32 %v48, %v79
    %v94 = vmul.f32 %v48, %v83
    %v95 = vmul.f32 %v48, %v87
    %96 = vset.pattern.permute.xlu0 1
    %97 = vperm.xlu0 %96, %v38
    %v98 = vpop.permute.xlu0 %97
    %100 = vset.pattern.permute.xlu0 1
    %101 = vperm.xlu0 %100, %v39
    %v102 = vpop.permute.xlu0 %101
    %v104 = vlaneseq
    %v105 = vshrl.u32 %v104, 7
    %v106 = vsub.s32 1, %v105
    %v107 = vrot.slane %v36, %v106
    %v108 = vlaneseq
    %v109 = vshrl.u32 %v108, 7
    %v110 = vsub.s32 5, %v109
    %v111 = vrot.slane %v36, %v110
    %v112 = vlaneseq
    %v113 = vshrl.u32 %v112, 7
    %v114 = vsub.s32 1, %v113
    %v115 = vrot.slane %v37, %v114
    %v116 = vlaneseq
    %v117 = vshrl.u32 %v116, 7
    %v118 = vsub.s32 5, %v117
    %v119 = vrot.slane %v37, %v118
    %v124 = vlaneseq
    %v125 = vshrl.u32 %v124, 7
    %v126 = vsub.s32 1, %v125
    %v127 = vrot.slane %v107, %v126
    %v128 = vlaneseq
    %v129 = vshrl.u32 %v128, 7
    %v130 = vsub.s32 1, %v129
    %v131 = vrot.slane %v111, %v130
    %v132 = vlaneseq
    %v133 = vshrl.u32 %v132, 7
    %v134 = vsub.s32 1, %v133
    %v135 = vrot.slane %v115, %v134
    %v136 = vlaneseq
    %v137 = vshrl.u32 %v136, 7
    %v138 = vsub.s32 1, %v137
    %v139 = vrot.slane %v119, %v138
    %v140 = vmul.f32 %v98, %v127
    %v141 = vmul.f32 %v98, %v131
    %v142 = vmul.f32 %v98, %v135
    %v143 = vmul.f32 %v98, %v139
    %v144 = vmul.f32 %v102, %v127
    %v145 = vmul.f32 %v102, %v131
    %v146 = vmul.f32 %v102, %v135
    %v147 = vmul.f32 %v102, %v139
    %v148 = vadd.f32 %v88, %v140
    %v149 = vadd.f32 %v89, %v141
    %v150 = vadd.f32 %v90, %v142
    %v151 = vadd.f32 %v91, %v143
    %v152 = vadd.f32 %v92, %v144
    %v153 = vadd.f32 %v93, %v145
    %v154 = vadd.f32 %v94, %v146
    %v155 = vadd.f32 %v95, %v147
    %156 = vset.pattern.permute.xlu0 2
    %157 = vperm.xlu0 %156, %v38
    %v158 = vpop.permute.xlu0 %157
    %160 = vset.pattern.permute.xlu0 2
    %161 = vperm.xlu0 %160, %v39
    %v162 = vpop.permute.xlu0 %161
    %v164 = vlaneseq
    %v165 = vshrl.u32 %v164, 7
    %v166 = vsub.s32 2, %v165
    %v167 = vrot.slane %v36, %v166
    %v168 = vlaneseq
    %v169 = vshrl.u32 %v168, 7
    %v170 = vsub.s32 6, %v169
    %v171 = vrot.slane %v36, %v170
    %v172 = vlaneseq
    %v173 = vshrl.u32 %v172, 7
    %v174 = vsub.s32 2, %v173
    %v175 = vrot.slane %v37, %v174
    %v176 = vlaneseq
    %v177 = vshrl.u32 %v176, 7
    %v178 = vsub.s32 6, %v177
    %v179 = vrot.slane %v37, %v178
    %v184 = vlaneseq
    %v185 = vshrl.u32 %v184, 7
    %v186 = vsub.s32 2, %v185
    %v187 = vrot.slane %v167, %v186
    %v188 = vlaneseq
    %v189 = vshrl.u32 %v188, 7
    %v190 = vsub.s32 2, %v189
    %v191 = vrot.slane %v171, %v190
    %v192 = vlaneseq
    %v193 = vshrl.u32 %v192, 7
    %v194 = vsub.s32 2, %v193
    %v195 = vrot.slane %v175, %v194
    %v196 = vlaneseq
    %v197 = vshrl.u32 %v196, 7
    %v198 = vsub.s32 2, %v197
    %v199 = vrot.slane %v179, %v198
    %v200 = vmul.f32 %v158, %v187
    %v201 = vmul.f32 %v158, %v191
    %v202 = vmul.f32 %v158, %v195
    %v203 = vmul.f32 %v158, %v199
    %v204 = vmul.f32 %v162, %v187
    %v205 = vmul.f32 %v162, %v191
    %v206 = vmul.f32 %v162, %v195
    %v207 = vmul.f32 %v162, %v199
    %v208 = vadd.f32 %v148, %v200
    %v209 = vadd.f32 %v149, %v201
    %v210 = vadd.f32 %v150, %v202
    %v211 = vadd.f32 %v151, %v203
    %v212 = vadd.f32 %v152, %v204
    %v213 = vadd.f32 %v153, %v205
    %v214 = vadd.f32 %v154, %v206
    %v215 = vadd.f32 %v155, %v207
    %216 = vset.pattern.permute.xlu0 3
    %217 = vperm.xlu0 %216, %v38
    %v218 = vpop.permute.xlu0 %217
    %220 = vset.pattern.permute.xlu0 3
    %221 = vperm.xlu0 %220, %v39
    %v222 = vpop.permute.xlu0 %221
    %v224 = vlaneseq
    %v225 = vshrl.u32 %v224, 7
    %v226 = vsub.s32 3, %v225
    %v227 = vrot.slane %v36, %v226
    %v228 = vlaneseq
    %v229 = vshrl.u32 %v228, 7
    %v230 = vsub.s32 7, %v229
    %v231 = vrot.slane %v36, %v230
    %v232 = vlaneseq
    %v233 = vshrl.u32 %v232, 7
    %v234 = vsub.s32 3, %v233
    %v235 = vrot.slane %v37, %v234
    %v236 = vlaneseq
    %v237 = vshrl.u32 %v236, 7
    %v238 = vsub.s32 7, %v237
    %v239 = vrot.slane %v37, %v238
    %v244 = vlaneseq
    %v245 = vshrl.u32 %v244, 7
    %v246 = vsub.s32 3, %v245
    %v247 = vrot.slane %v227, %v246
    %v248 = vlaneseq
    %v249 = vshrl.u32 %v248, 7
    %v250 = vsub.s32 3, %v249
    %v251 = vrot.slane %v231, %v250
    %v252 = vlaneseq
    %v253 = vshrl.u32 %v252, 7
    %v254 = vsub.s32 3, %v253
    %v255 = vrot.slane %v235, %v254
    %v256 = vlaneseq
    %v257 = vshrl.u32 %v256, 7
    %v258 = vsub.s32 3, %v257
    %v259 = vrot.slane %v239, %v258
    %v260 = vmul.f32 %v218, %v247
    %v261 = vmul.f32 %v218, %v251
    %v262 = vmul.f32 %v218, %v255
    %v263 = vmul.f32 %v218, %v259
    %v264 = vmul.f32 %v222, %v247
    %v265 = vmul.f32 %v222, %v251
    %v266 = vmul.f32 %v222, %v255
    %v267 = vmul.f32 %v222, %v259
    %v268 = vadd.f32 %v208, %v260
    %v269 = vadd.f32 %v209, %v261
    %v270 = vadd.f32 %v210, %v262
    %v271 = vadd.f32 %v211, %v263
    %v272 = vadd.f32 %v212, %v264
    %v273 = vadd.f32 %v213, %v265
    %v274 = vadd.f32 %v214, %v266
    %v275 = vadd.f32 %v215, %v267
    %v276 = vld [vmem:[%s2] sm:$0xff]
    %v277 = vld [vmem:[%s2 + $0x8] sm:$0xff]
    %v278 = vld [vmem:[%s3] sm:$0xff]
    %v279 = vld [vmem:[%s3 + $0x8] sm:$0xff]
    %v280 = vadd.f32 %v268, %v269
    %v281 = vadd.f32 %v280, %v270
    %v282 = vadd.f32 %v281, %v271
    %283 = vadd.xlane.f32.xlu0 %v282
    %v284 = vpop.xlane.xlu0 %283
    %v285 = vadd.f32 %v272, %v273
    %v286 = vadd.f32 %v285, %v274
    %v287 = vadd.f32 %v286, %v275
    %288 = vadd.xlane.f32.xlu0 %v287
    %v289 = vpop.xlane.xlu0 %288
    %v290 = vmul.f32 %v284, 0.001953125
    %v291 = vmul.f32 %v289, 0.001953125
    %v292 = vmul.f32 %v268, %v268
    %v293 = vmul.f32 %v269, %v269
    %v294 = vmul.f32 %v270, %v270
    %v295 = vmul.f32 %v271, %v271
    %v296 = vmul.f32 %v272, %v272
    %v297 = vmul.f32 %v273, %v273
    %v298 = vmul.f32 %v274, %v274
    %v299 = vmul.f32 %v275, %v275
    %v300 = vadd.f32 %v292, %v293
    %v301 = vadd.f32 %v300, %v294
    %v302 = vadd.f32 %v301, %v295
    %303 = vadd.xlane.f32.xlu0 %v302
    %v304 = vpop.xlane.xlu0 %303
    %v305 = vadd.f32 %v296, %v297
    %v306 = vadd.f32 %v305, %v298
    %v307 = vadd.f32 %v306, %v299
    %308 = vadd.xlane.f32.xlu0 %v307
    %v309 = vpop.xlane.xlu0 %308
    %v310 = vmul.f32 %v304, 0.001953125
    %v311 = vmul.f32 %v309, 0.001953125
    %v312 = vmul.f32 %v290, %v290
    %v313 = vmul.f32 %v291, %v291
    %v314 = vsub.f32 %v310, %v312
    %v315 = vsub.f32 %v311, %v313
    %v316 = vmax.f32 %v314, 0.0
    %v317 = vmax.f32 %v315, 0.0
    %v318 = vadd.f32 %v316, 1e-05
    %v319 = vadd.f32 %v317, 1e-05
    %v320 = vrsqrt.pop %v318
    %v321 = vrsqrt.pop %v319
    %v322 = vmul.f32 %v276, %v320
    %v323 = vmul.f32 %v277, %v321
    %v324 = vmul.f32 %v290, %v322
    %v325 = vmul.f32 %v291, %v323
    %v326 = vsub.f32 %v278, %v324
    %v327 = vsub.f32 %v279, %v325
    %329 = vset.pattern.permute.xlu0 0
    %330 = vperm.xlu0 %329, %v322
    %v331 = vpop.permute.xlu0 %330
    %334 = vset.pattern.permute.xlu0 0
    %335 = vperm.xlu0 %334, %v323
    %v336 = vpop.permute.xlu0 %335
    %v338 = vmul.f32 %v268, %v331
    %v339 = vmul.f32 %v269, %v331
    %v340 = vmul.f32 %v270, %v331
    %v341 = vmul.f32 %v271, %v331
    %v342 = vmul.f32 %v272, %v336
    %v343 = vmul.f32 %v273, %v336
    %v344 = vmul.f32 %v274, %v336
    %v345 = vmul.f32 %v275, %v336
    %347 = vset.pattern.permute.xlu0 0
    %348 = vperm.xlu0 %347, %v326
    %v349 = vpop.permute.xlu0 %348
    %352 = vset.pattern.permute.xlu0 0
    %353 = vperm.xlu0 %352, %v327
    %v354 = vpop.permute.xlu0 %353
    %v356 = vadd.f32 %v338, %v349
    %v357 = vadd.f32 %v339, %v349
    %v358 = vadd.f32 %v340, %v349
    %v359 = vadd.f32 %v341, %v349
    %v360 = vadd.f32 %v342, %v354
    %v361 = vadd.f32 %v343, %v354
    %v362 = vadd.f32 %v344, %v354
    %v363 = vadd.f32 %v345, %v354
    %v364 = vmax.f32 %v356, 0.0
    %v365 = vmax.f32 %v357, 0.0
    %v366 = vmax.f32 %v358, 0.0
    %v367 = vmax.f32 %v359, 0.0
    %v368 = vmax.f32 %v360, 0.0
    %v369 = vmax.f32 %v361, 0.0
    %v370 = vmax.f32 %v362, 0.0
    %v371 = vmax.f32 %v363, 0.0
    %v372 = vld [vmem:[%s4] sm:$0xff]
    %v373 = vld [vmem:[%s4 + $0x8] sm:$0xff]
    %v374 = vld [vmem:[%s4 + $0x10] sm:$0xff]
    %v375 = vld [vmem:[%s4 + $0x18] sm:$0xff]
    %377 = vset.pattern.permute.xlu0 0
    %378 = vperm.xlu0 %377, %v372
    %v379 = vpop.permute.xlu0 %378
    %382 = vset.pattern.permute.xlu0 0
    %383 = vperm.xlu0 %382, %v373
    %v384 = vpop.permute.xlu0 %383
    %387 = vset.pattern.permute.xlu0 0
    %388 = vperm.xlu0 %387, %v374
    %v389 = vpop.permute.xlu0 %388
    %392 = vset.pattern.permute.xlu0 0
    %393 = vperm.xlu0 %392, %v375
    %v394 = vpop.permute.xlu0 %393
    %v396 = vlaneseq
    %v397 = vshrl.u32 %v396, 7
    %v398 = vsub.s32 0, %v397
    %v399 = vrot.slane %v364, %v398
    %v400 = vlaneseq
    %v401 = vshrl.u32 %v400, 7
    %v402 = vsub.s32 0, %v401
    %v403 = vrot.slane %v365, %v402
    %v404 = vlaneseq
    %v405 = vshrl.u32 %v404, 7
    %v406 = vsub.s32 0, %v405
    %v407 = vrot.slane %v366, %v406
    %v408 = vlaneseq
    %v409 = vshrl.u32 %v408, 7
    %v410 = vsub.s32 0, %v409
    %v411 = vrot.slane %v367, %v410
    %v412 = vmul.f32 %v379, %v399
    %v413 = vmul.f32 %v379, %v403
    %v414 = vmul.f32 %v379, %v407
    %v415 = vmul.f32 %v379, %v411
    %v416 = vmul.f32 %v384, %v399
    %v417 = vmul.f32 %v384, %v403
    %v418 = vmul.f32 %v384, %v407
    %v419 = vmul.f32 %v384, %v411
    %v420 = vmul.f32 %v389, %v399
    %v421 = vmul.f32 %v389, %v403
    %v422 = vmul.f32 %v389, %v407
    %v423 = vmul.f32 %v389, %v411
    %v424 = vmul.f32 %v394, %v399
    %v425 = vmul.f32 %v394, %v403
    %v426 = vmul.f32 %v394, %v407
    %v427 = vmul.f32 %v394, %v411
    %428 = vset.pattern.permute.xlu0 1
    %429 = vperm.xlu0 %428, %v372
    %v430 = vpop.permute.xlu0 %429
    %432 = vset.pattern.permute.xlu0 1
    %433 = vperm.xlu0 %432, %v373
    %v434 = vpop.permute.xlu0 %433
    %436 = vset.pattern.permute.xlu0 1
    %437 = vperm.xlu0 %436, %v374
    %v438 = vpop.permute.xlu0 %437
    %440 = vset.pattern.permute.xlu0 1
    %441 = vperm.xlu0 %440, %v375
    %v442 = vpop.permute.xlu0 %441
    %v444 = vlaneseq
    %v445 = vshrl.u32 %v444, 7
    %v446 = vsub.s32 1, %v445
    %v447 = vrot.slane %v364, %v446
    %v448 = vlaneseq
    %v449 = vshrl.u32 %v448, 7
    %v450 = vsub.s32 1, %v449
    %v451 = vrot.slane %v365, %v450
    %v452 = vlaneseq
    %v453 = vshrl.u32 %v452, 7
    %v454 = vsub.s32 1, %v453
    %v455 = vrot.slane %v366, %v454
    %v456 = vlaneseq
    %v457 = vshrl.u32 %v456, 7
    %v458 = vsub.s32 1, %v457
    %v459 = vrot.slane %v367, %v458
    %v460 = vmul.f32 %v430, %v447
    %v461 = vmul.f32 %v430, %v451
    %v462 = vmul.f32 %v430, %v455
    %v463 = vmul.f32 %v430, %v459
    %v464 = vmul.f32 %v434, %v447
    %v465 = vmul.f32 %v434, %v451
    %v466 = vmul.f32 %v434, %v455
    %v467 = vmul.f32 %v434, %v459
    %v468 = vmul.f32 %v438, %v447
    %v469 = vmul.f32 %v438, %v451
    %v470 = vmul.f32 %v438, %v455
    %v471 = vmul.f32 %v438, %v459
    %v472 = vmul.f32 %v442, %v447
    %v473 = vmul.f32 %v442, %v451
    %v474 = vmul.f32 %v442, %v455
    %v475 = vmul.f32 %v442, %v459
    %v476 = vadd.f32 %v412, %v460
    %v477 = vadd.f32 %v413, %v461
    %v478 = vadd.f32 %v414, %v462
    %v479 = vadd.f32 %v415, %v463
    %v480 = vadd.f32 %v416, %v464
    %v481 = vadd.f32 %v417, %v465
    %v482 = vadd.f32 %v418, %v466
    %v483 = vadd.f32 %v419, %v467
    %v484 = vadd.f32 %v420, %v468
    %v485 = vadd.f32 %v421, %v469
    %v486 = vadd.f32 %v422, %v470
    %v487 = vadd.f32 %v423, %v471
    %v488 = vadd.f32 %v424, %v472
    %v489 = vadd.f32 %v425, %v473
    %v490 = vadd.f32 %v426, %v474
    %v491 = vadd.f32 %v427, %v475
    %492 = vset.pattern.permute.xlu0 2
    %493 = vperm.xlu0 %492, %v372
    %v494 = vpop.permute.xlu0 %493
    %496 = vset.pattern.permute.xlu0 2
    %497 = vperm.xlu0 %496, %v373
    %v498 = vpop.permute.xlu0 %497
    %500 = vset.pattern.permute.xlu0 2
    %501 = vperm.xlu0 %500, %v374
    %v502 = vpop.permute.xlu0 %501
    %504 = vset.pattern.permute.xlu0 2
    %505 = vperm.xlu0 %504, %v375
    %v506 = vpop.permute.xlu0 %505
    %v508 = vlaneseq
    %v509 = vshrl.u32 %v508, 7
    %v510 = vsub.s32 2, %v509
    %v511 = vrot.slane %v364, %v510
    %v512 = vlaneseq
    %v513 = vshrl.u32 %v512, 7
    %v514 = vsub.s32 2, %v513
    %v515 = vrot.slane %v365, %v514
    %v516 = vlaneseq
    %v517 = vshrl.u32 %v516, 7
    %v518 = vsub.s32 2, %v517
    %v519 = vrot.slane %v366, %v518
    %v520 = vlaneseq
    %v521 = vshrl.u32 %v520, 7
    %v522 = vsub.s32 2, %v521
    %v523 = vrot.slane %v367, %v522
    %v524 = vmul.f32 %v494, %v511
    %v525 = vmul.f32 %v494, %v515
    %v526 = vmul.f32 %v494, %v519
    %v527 = vmul.f32 %v494, %v523
    %v528 = vmul.f32 %v498, %v511
    %v529 = vmul.f32 %v498, %v515
    %v530 = vmul.f32 %v498, %v519
    %v531 = vmul.f32 %v498, %v523
    %v532 = vmul.f32 %v502, %v511
    %v533 = vmul.f32 %v502, %v515
    %v534 = vmul.f32 %v502, %v519
    %v535 = vmul.f32 %v502, %v523
    %v536 = vmul.f32 %v506, %v511
    %v537 = vmul.f32 %v506, %v515
    %v538 = vmul.f32 %v506, %v519
    %v539 = vmul.f32 %v506, %v523
    %v540 = vadd.f32 %v476, %v524
    %v541 = vadd.f32 %v477, %v525
    %v542 = vadd.f32 %v478, %v526
    %v543 = vadd.f32 %v479, %v527
    %v544 = vadd.f32 %v480, %v528
    %v545 = vadd.f32 %v481, %v529
    %v546 = vadd.f32 %v482, %v530
    %v547 = vadd.f32 %v483, %v531
    %v548 = vadd.f32 %v484, %v532
    %v549 = vadd.f32 %v485, %v533
    %v550 = vadd.f32 %v486, %v534
    %v551 = vadd.f32 %v487, %v535
    %v552 = vadd.f32 %v488, %v536
    %v553 = vadd.f32 %v489, %v537
    %v554 = vadd.f32 %v490, %v538
    %v555 = vadd.f32 %v491, %v539
    %556 = vset.pattern.permute.xlu0 3
    %557 = vperm.xlu0 %556, %v372
    %v558 = vpop.permute.xlu0 %557
    %560 = vset.pattern.permute.xlu0 3
    %561 = vperm.xlu0 %560, %v373
    %v562 = vpop.permute.xlu0 %561
    %564 = vset.pattern.permute.xlu0 3
    %565 = vperm.xlu0 %564, %v374
    %v566 = vpop.permute.xlu0 %565
    %568 = vset.pattern.permute.xlu0 3
    %569 = vperm.xlu0 %568, %v375
    %v570 = vpop.permute.xlu0 %569
    %v572 = vlaneseq
    %v573 = vshrl.u32 %v572, 7
    %v574 = vsub.s32 3, %v573
    %v575 = vrot.slane %v364, %v574
    %v576 = vlaneseq
    %v577 = vshrl.u32 %v576, 7
    %v578 = vsub.s32 3, %v577
    %v579 = vrot.slane %v365, %v578
    %v580 = vlaneseq
    %v581 = vshrl.u32 %v580, 7
    %v582 = vsub.s32 3, %v581
    %v583 = vrot.slane %v366, %v582
    %v584 = vlaneseq
    %v585 = vshrl.u32 %v584, 7
    %v586 = vsub.s32 3, %v585
    %v587 = vrot.slane %v367, %v586
    %v588 = vmul.f32 %v558, %v575
    %v589 = vmul.f32 %v558, %v579
    %v590 = vmul.f32 %v558, %v583
    %v591 = vmul.f32 %v558, %v587
    %v592 = vmul.f32 %v562, %v575
    %v593 = vmul.f32 %v562, %v579
    %v594 = vmul.f32 %v562, %v583
    %v595 = vmul.f32 %v562, %v587
    %v596 = vmul.f32 %v566, %v575
    %v597 = vmul.f32 %v566, %v579
    %v598 = vmul.f32 %v566, %v583
    %v599 = vmul.f32 %v566, %v587
    %v600 = vmul.f32 %v570, %v575
    %v601 = vmul.f32 %v570, %v579
    %v602 = vmul.f32 %v570, %v583
    %v603 = vmul.f32 %v570, %v587
    %v604 = vadd.f32 %v540, %v588
    %v605 = vadd.f32 %v541, %v589
    %v606 = vadd.f32 %v542, %v590
    %v607 = vadd.f32 %v543, %v591
    %v608 = vadd.f32 %v544, %v592
    %v609 = vadd.f32 %v545, %v593
    %v610 = vadd.f32 %v546, %v594
    %v611 = vadd.f32 %v547, %v595
    %v612 = vadd.f32 %v548, %v596
    %v613 = vadd.f32 %v549, %v597
    %v614 = vadd.f32 %v550, %v598
    %v615 = vadd.f32 %v551, %v599
    %v616 = vadd.f32 %v552, %v600
    %v617 = vadd.f32 %v553, %v601
    %v618 = vadd.f32 %v554, %v602
    %v619 = vadd.f32 %v555, %v603
    %620 = vset.pattern.permute.xlu0 4
    %621 = vperm.xlu0 %620, %v372
    %v622 = vpop.permute.xlu0 %621
    %624 = vset.pattern.permute.xlu0 4
    %625 = vperm.xlu0 %624, %v373
    %v626 = vpop.permute.xlu0 %625
    %628 = vset.pattern.permute.xlu0 4
    %629 = vperm.xlu0 %628, %v374
    %v630 = vpop.permute.xlu0 %629
    %632 = vset.pattern.permute.xlu0 4
    %633 = vperm.xlu0 %632, %v375
    %v634 = vpop.permute.xlu0 %633
    %v636 = vlaneseq
    %v637 = vshrl.u32 %v636, 7
    %v638 = vsub.s32 4, %v637
    %v639 = vrot.slane %v364, %v638
    %v640 = vlaneseq
    %v641 = vshrl.u32 %v640, 7
    %v642 = vsub.s32 4, %v641
    %v643 = vrot.slane %v365, %v642
    %v644 = vlaneseq
    %v645 = vshrl.u32 %v644, 7
    %v646 = vsub.s32 4, %v645
    %v647 = vrot.slane %v366, %v646
    %v648 = vlaneseq
    %v649 = vshrl.u32 %v648, 7
    %v650 = vsub.s32 4, %v649
    %v651 = vrot.slane %v367, %v650
    %v652 = vmul.f32 %v622, %v639
    %v653 = vmul.f32 %v622, %v643
    %v654 = vmul.f32 %v622, %v647
    %v655 = vmul.f32 %v622, %v651
    %v656 = vmul.f32 %v626, %v639
    %v657 = vmul.f32 %v626, %v643
    %v658 = vmul.f32 %v626, %v647
    %v659 = vmul.f32 %v626, %v651
    %v660 = vmul.f32 %v630, %v639
    %v661 = vmul.f32 %v630, %v643
    %v662 = vmul.f32 %v630, %v647
    %v663 = vmul.f32 %v630, %v651
    %v664 = vmul.f32 %v634, %v639
    %v665 = vmul.f32 %v634, %v643
    %v666 = vmul.f32 %v634, %v647
    %v667 = vmul.f32 %v634, %v651
    %v668 = vadd.f32 %v604, %v652
    %v669 = vadd.f32 %v605, %v653
    %v670 = vadd.f32 %v606, %v654
    %v671 = vadd.f32 %v607, %v655
    %v672 = vadd.f32 %v608, %v656
    %v673 = vadd.f32 %v609, %v657
    %v674 = vadd.f32 %v610, %v658
    %v675 = vadd.f32 %v611, %v659
    %v676 = vadd.f32 %v612, %v660
    %v677 = vadd.f32 %v613, %v661
    %v678 = vadd.f32 %v614, %v662
    %v679 = vadd.f32 %v615, %v663
    %v680 = vadd.f32 %v616, %v664
    %v681 = vadd.f32 %v617, %v665
    %v682 = vadd.f32 %v618, %v666
    %v683 = vadd.f32 %v619, %v667
    %684 = vset.pattern.permute.xlu0 5
    %685 = vperm.xlu0 %684, %v372
    %v686 = vpop.permute.xlu0 %685
    %688 = vset.pattern.permute.xlu0 5
    %689 = vperm.xlu0 %688, %v373
    %v690 = vpop.permute.xlu0 %689
    %692 = vset.pattern.permute.xlu0 5
    %693 = vperm.xlu0 %692, %v374
    %v694 = vpop.permute.xlu0 %693
    %696 = vset.pattern.permute.xlu0 5
    %697 = vperm.xlu0 %696, %v375
    %v698 = vpop.permute.xlu0 %697
    %v700 = vlaneseq
    %v701 = vshrl.u32 %v700, 7
    %v702 = vsub.s32 5, %v701
    %v703 = vrot.slane %v364, %v702
    %v704 = vlaneseq
    %v705 = vshrl.u32 %v704, 7
    %v706 = vsub.s32 5, %v705
    %v707 = vrot.slane %v365, %v706
    %v708 = vlaneseq
    %v709 = vshrl.u32 %v708, 7
    %v710 = vsub.s32 5, %v709
    %v711 = vrot.slane %v366, %v710
    %v712 = vlaneseq
    %v713 = vshrl.u32 %v712, 7
    %v714 = vsub.s32 5, %v713
    %v715 = vrot.slane %v367, %v714
    %v716 = vmul.f32 %v686, %v703
    %v717 = vmul.f32 %v686, %v707
    %v718 = vmul.f32 %v686, %v711
    %v719 = vmul.f32 %v686, %v715
    %v720 = vmul.f32 %v690, %v703
    %v721 = vmul.f32 %v690, %v707
    %v722 = vmul.f32 %v690, %v711
    %v723 = vmul.f32 %v690, %v715
    %v724 = vmul.f32 %v694, %v703
    %v725 = vmul.f32 %v694, %v707
    %v726 = vmul.f32 %v694, %v711
    %v727 = vmul.f32 %v694, %v715
    %v728 = vmul.f32 %v698, %v703
    %v729 = vmul.f32 %v698, %v707
    %v730 = vmul.f32 %v698, %v711
    %v731 = vmul.f32 %v698, %v715
    %v732 = vadd.f32 %v668, %v716
    %v733 = vadd.f32 %v669, %v717
    %v734 = vadd.f32 %v670, %v718
    %v735 = vadd.f32 %v671, %v719
    %v736 = vadd.f32 %v672, %v720
    %v737 = vadd.f32 %v673, %v721
    %v738 = vadd.f32 %v674, %v722
    %v739 = vadd.f32 %v675, %v723
    %v740 = vadd.f32 %v676, %v724
    %v741 = vadd.f32 %v677, %v725
    %v742 = vadd.f32 %v678, %v726
    %v743 = vadd.f32 %v679, %v727
    %v744 = vadd.f32 %v680, %v728
    %v745 = vadd.f32 %v681, %v729
    %v746 = vadd.f32 %v682, %v730
    %v747 = vadd.f32 %v683, %v731
    %748 = vset.pattern.permute.xlu0 6
    %749 = vperm.xlu0 %748, %v372
    %v750 = vpop.permute.xlu0 %749
    %752 = vset.pattern.permute.xlu0 6
    %753 = vperm.xlu0 %752, %v373
    %v754 = vpop.permute.xlu0 %753
    %756 = vset.pattern.permute.xlu0 6
    %757 = vperm.xlu0 %756, %v374
    %v758 = vpop.permute.xlu0 %757
    %760 = vset.pattern.permute.xlu0 6
    %761 = vperm.xlu0 %760, %v375
    %v762 = vpop.permute.xlu0 %761
    %v764 = vlaneseq
    %v765 = vshrl.u32 %v764, 7
    %v766 = vsub.s32 6, %v765
    %v767 = vrot.slane %v364, %v766
    %v768 = vlaneseq
    %v769 = vshrl.u32 %v768, 7
    %v770 = vsub.s32 6, %v769
    %v771 = vrot.slane %v365, %v770
    %v772 = vlaneseq
    %v773 = vshrl.u32 %v772, 7
    %v774 = vsub.s32 6, %v773
    %v775 = vrot.slane %v366, %v774
    %v776 = vlaneseq
    %v777 = vshrl.u32 %v776, 7
    %v778 = vsub.s32 6, %v777
    %v779 = vrot.slane %v367, %v778
    %v780 = vmul.f32 %v750, %v767
    %v781 = vmul.f32 %v750, %v771
    %v782 = vmul.f32 %v750, %v775
    %v783 = vmul.f32 %v750, %v779
    %v784 = vmul.f32 %v754, %v767
    %v785 = vmul.f32 %v754, %v771
    %v786 = vmul.f32 %v754, %v775
    %v787 = vmul.f32 %v754, %v779
    %v788 = vmul.f32 %v758, %v767
    %v789 = vmul.f32 %v758, %v771
    %v790 = vmul.f32 %v758, %v775
    %v791 = vmul.f32 %v758, %v779
    %v792 = vmul.f32 %v762, %v767
    %v793 = vmul.f32 %v762, %v771
    %v794 = vmul.f32 %v762, %v775
    %v795 = vmul.f32 %v762, %v779
    %v796 = vadd.f32 %v732, %v780
    %v797 = vadd.f32 %v733, %v781
    %v798 = vadd.f32 %v734, %v782
    %v799 = vadd.f32 %v735, %v783
    %v800 = vadd.f32 %v736, %v784
    %v801 = vadd.f32 %v737, %v785
    %v802 = vadd.f32 %v738, %v786
    %v803 = vadd.f32 %v739, %v787
    %v804 = vadd.f32 %v740, %v788
    %v805 = vadd.f32 %v741, %v789
    %v806 = vadd.f32 %v742, %v790
    %v807 = vadd.f32 %v743, %v791
    %v808 = vadd.f32 %v744, %v792
    %v809 = vadd.f32 %v745, %v793
    %v810 = vadd.f32 %v746, %v794
    %v811 = vadd.f32 %v747, %v795
    %812 = vset.pattern.permute.xlu0 7
    %813 = vperm.xlu0 %812, %v372
    %v814 = vpop.permute.xlu0 %813
    %816 = vset.pattern.permute.xlu0 7
    %817 = vperm.xlu0 %816, %v373
    %v818 = vpop.permute.xlu0 %817
    %820 = vset.pattern.permute.xlu0 7
    %821 = vperm.xlu0 %820, %v374
    %v822 = vpop.permute.xlu0 %821
    %824 = vset.pattern.permute.xlu0 7
    %825 = vperm.xlu0 %824, %v375
    %v826 = vpop.permute.xlu0 %825
    %v828 = vlaneseq
    %v829 = vshrl.u32 %v828, 7
    %v830 = vsub.s32 7, %v829
    %v831 = vrot.slane %v364, %v830
    %v832 = vlaneseq
    %v833 = vshrl.u32 %v832, 7
    %v834 = vsub.s32 7, %v833
    %v835 = vrot.slane %v365, %v834
    %v836 = vlaneseq
    %v837 = vshrl.u32 %v836, 7
    %v838 = vsub.s32 7, %v837
    %v839 = vrot.slane %v366, %v838
    %v840 = vlaneseq
    %v841 = vshrl.u32 %v840, 7
    %v842 = vsub.s32 7, %v841
    %v843 = vrot.slane %v367, %v842
    %v844 = vmul.f32 %v814, %v831
    %v845 = vmul.f32 %v814, %v835
    %v846 = vmul.f32 %v814, %v839
    %v847 = vmul.f32 %v814, %v843
    %v848 = vmul.f32 %v818, %v831
    %v849 = vmul.f32 %v818, %v835
    %v850 = vmul.f32 %v818, %v839
    %v851 = vmul.f32 %v818, %v843
    %v852 = vmul.f32 %v822, %v831
    %v853 = vmul.f32 %v822, %v835
    %v854 = vmul.f32 %v822, %v839
    %v855 = vmul.f32 %v822, %v843
    %v856 = vmul.f32 %v826, %v831
    %v857 = vmul.f32 %v826, %v835
    %v858 = vmul.f32 %v826, %v839
    %v859 = vmul.f32 %v826, %v843
    %v860 = vadd.f32 %v796, %v844
    %v861 = vadd.f32 %v797, %v845
    %v862 = vadd.f32 %v798, %v846
    %v863 = vadd.f32 %v799, %v847
    %v864 = vadd.f32 %v800, %v848
    %v865 = vadd.f32 %v801, %v849
    %v866 = vadd.f32 %v802, %v850
    %v867 = vadd.f32 %v803, %v851
    %v868 = vadd.f32 %v804, %v852
    %v869 = vadd.f32 %v805, %v853
    %v870 = vadd.f32 %v806, %v854
    %v871 = vadd.f32 %v807, %v855
    %v872 = vadd.f32 %v808, %v856
    %v873 = vadd.f32 %v809, %v857
    %v874 = vadd.f32 %v810, %v858
    %v875 = vadd.f32 %v811, %v859
    %876 = vset.pattern.permute.xlu0 8
    %877 = vperm.xlu0 %876, %v372
    %v878 = vpop.permute.xlu0 %877
    %880 = vset.pattern.permute.xlu0 8
    %881 = vperm.xlu0 %880, %v373
    %v882 = vpop.permute.xlu0 %881
    %884 = vset.pattern.permute.xlu0 8
    %885 = vperm.xlu0 %884, %v374
    %v886 = vpop.permute.xlu0 %885
    %888 = vset.pattern.permute.xlu0 8
    %889 = vperm.xlu0 %888, %v375
    %v890 = vpop.permute.xlu0 %889
    %v892 = vlaneseq
    %v893 = vshrl.u32 %v892, 7
    %v894 = vsub.s32 0, %v893
    %v895 = vrot.slane %v368, %v894
    %v896 = vlaneseq
    %v897 = vshrl.u32 %v896, 7
    %v898 = vsub.s32 0, %v897
    %v899 = vrot.slane %v369, %v898
    %v900 = vlaneseq
    %v901 = vshrl.u32 %v900, 7
    %v902 = vsub.s32 0, %v901
    %v903 = vrot.slane %v370, %v902
    %v904 = vlaneseq
    %v905 = vshrl.u32 %v904, 7
    %v906 = vsub.s32 0, %v905
    %v907 = vrot.slane %v371, %v906
    %v908 = vmul.f32 %v878, %v895
    %v909 = vmul.f32 %v878, %v899
    %v910 = vmul.f32 %v878, %v903
    %v911 = vmul.f32 %v878, %v907
    %v912 = vmul.f32 %v882, %v895
    %v913 = vmul.f32 %v882, %v899
    %v914 = vmul.f32 %v882, %v903
    %v915 = vmul.f32 %v882, %v907
    %v916 = vmul.f32 %v886, %v895
    %v917 = vmul.f32 %v886, %v899
    %v918 = vmul.f32 %v886, %v903
    %v919 = vmul.f32 %v886, %v907
    %v920 = vmul.f32 %v890, %v895
    %v921 = vmul.f32 %v890, %v899
    %v922 = vmul.f32 %v890, %v903
    %v923 = vmul.f32 %v890, %v907
    %v924 = vadd.f32 %v860, %v908
    %v925 = vadd.f32 %v861, %v909
    %v926 = vadd.f32 %v862, %v910
    %v927 = vadd.f32 %v863, %v911
    %v928 = vadd.f32 %v864, %v912
    %v929 = vadd.f32 %v865, %v913
    %v930 = vadd.f32 %v866, %v914
    %v931 = vadd.f32 %v867, %v915
    %v932 = vadd.f32 %v868, %v916
    %v933 = vadd.f32 %v869, %v917
    %v934 = vadd.f32 %v870, %v918
    %v935 = vadd.f32 %v871, %v919
    %v936 = vadd.f32 %v872, %v920
    %v937 = vadd.f32 %v873, %v921
    %v938 = vadd.f32 %v874, %v922
    %v939 = vadd.f32 %v875, %v923
    %940 = vset.pattern.permute.xlu0 9
    %941 = vperm.xlu0 %940, %v372
    %v942 = vpop.permute.xlu0 %941
    %944 = vset.pattern.permute.xlu0 9
    %945 = vperm.xlu0 %944, %v373
    %v946 = vpop.permute.xlu0 %945
    %948 = vset.pattern.permute.xlu0 9
    %949 = vperm.xlu0 %948, %v374
    %v950 = vpop.permute.xlu0 %949
    %952 = vset.pattern.permute.xlu0 9
    %953 = vperm.xlu0 %952, %v375
    %v954 = vpop.permute.xlu0 %953
    %v956 = vlaneseq
    %v957 = vshrl.u32 %v956, 7
    %v958 = vsub.s32 1, %v957
    %v959 = vrot.slane %v368, %v958
    %v960 = vlaneseq
    %v961 = vshrl.u32 %v960, 7
    %v962 = vsub.s32 1, %v961
    %v963 = vrot.slane %v369, %v962
    %v964 = vlaneseq
    %v965 = vshrl.u32 %v964, 7
    %v966 = vsub.s32 1, %v965
    %v967 = vrot.slane %v370, %v966
    %v968 = vlaneseq
    %v969 = vshrl.u32 %v968, 7
    %v970 = vsub.s32 1, %v969
    %v971 = vrot.slane %v371, %v970
    %v972 = vmul.f32 %v942, %v959
    %v973 = vmul.f32 %v942, %v963
    %v974 = vmul.f32 %v942, %v967
    %v975 = vmul.f32 %v942, %v971
    %v976 = vmul.f32 %v946, %v959
    %v977 = vmul.f32 %v946, %v963
    %v978 = vmul.f32 %v946, %v967
    %v979 = vmul.f32 %v946, %v971
    %v980 = vmul.f32 %v950, %v959
    %v981 = vmul.f32 %v950, %v963
    %v982 = vmul.f32 %v950, %v967
    %v983 = vmul.f32 %v950, %v971
    %v984 = vmul.f32 %v954, %v959
    %v985 = vmul.f32 %v954, %v963
    %v986 = vmul.f32 %v954, %v967
    %v987 = vmul.f32 %v954, %v971
    %v988 = vadd.f32 %v924, %v972
    %v989 = vadd.f32 %v925, %v973
    %v990 = vadd.f32 %v926, %v974
    %v991 = vadd.f32 %v927, %v975
    %v992 = vadd.f32 %v928, %v976
    %v993 = vadd.f32 %v929, %v977
    %v994 = vadd.f32 %v930, %v978
    %v995 = vadd.f32 %v931, %v979
    %v996 = vadd.f32 %v932, %v980
    %v997 = vadd.f32 %v933, %v981
    %v998 = vadd.f32 %v934, %v982
    %v999 = vadd.f32 %v935, %v983
    %v1000 = vadd.f32 %v936, %v984
    %v1001 = vadd.f32 %v937, %v985
    %v1002 = vadd.f32 %v938, %v986
    %v1003 = vadd.f32 %v939, %v987
    %1004 = vset.pattern.permute.xlu0 10
    %1005 = vperm.xlu0 %1004, %v372
    %v1006 = vpop.permute.xlu0 %1005
    %1008 = vset.pattern.permute.xlu0 10
    %1009 = vperm.xlu0 %1008, %v373
    %v1010 = vpop.permute.xlu0 %1009
    %1012 = vset.pattern.permute.xlu0 10
    %1013 = vperm.xlu0 %1012, %v374
    %v1014 = vpop.permute.xlu0 %1013
    %1016 = vset.pattern.permute.xlu0 10
    %1017 = vperm.xlu0 %1016, %v375
    %v1018 = vpop.permute.xlu0 %1017
    %v1020 = vlaneseq
    %v1021 = vshrl.u32 %v1020, 7
    %v1022 = vsub.s32 2, %v1021
    %v1023 = vrot.slane %v368, %v1022
    %v1024 = vlaneseq
    %v1025 = vshrl.u32 %v1024, 7
    %v1026 = vsub.s32 2, %v1025
    %v1027 = vrot.slane %v369, %v1026
    %v1028 = vlaneseq
    %v1029 = vshrl.u32 %v1028, 7
    %v1030 = vsub.s32 2, %v1029
    %v1031 = vrot.slane %v370, %v1030
    %v1032 = vlaneseq
    %v1033 = vshrl.u32 %v1032, 7
    %v1034 = vsub.s32 2, %v1033
    %v1035 = vrot.slane %v371, %v1034
    %v1036 = vmul.f32 %v1006, %v1023
    %v1037 = vmul.f32 %v1006, %v1027
    %v1038 = vmul.f32 %v1006, %v1031
    %v1039 = vmul.f32 %v1006, %v1035
    %v1040 = vmul.f32 %v1010, %v1023
    %v1041 = vmul.f32 %v1010, %v1027
    %v1042 = vmul.f32 %v1010, %v1031
    %v1043 = vmul.f32 %v1010, %v1035
    %v1044 = vmul.f32 %v1014, %v1023
    %v1045 = vmul.f32 %v1014, %v1027
    %v1046 = vmul.f32 %v1014, %v1031
    %v1047 = vmul.f32 %v1014, %v1035
    %v1048 = vmul.f32 %v1018, %v1023
    %v1049 = vmul.f32 %v1018, %v1027
    %v1050 = vmul.f32 %v1018, %v1031
    %v1051 = vmul.f32 %v1018, %v1035
    %v1052 = vadd.f32 %v988, %v1036
    %v1053 = vadd.f32 %v989, %v1037
    %v1054 = vadd.f32 %v990, %v1038
    %v1055 = vadd.f32 %v991, %v1039
    %v1056 = vadd.f32 %v992, %v1040
    %v1057 = vadd.f32 %v993, %v1041
    %v1058 = vadd.f32 %v994, %v1042
    %v1059 = vadd.f32 %v995, %v1043
    %v1060 = vadd.f32 %v996, %v1044
    %v1061 = vadd.f32 %v997, %v1045
    %v1062 = vadd.f32 %v998, %v1046
    %v1063 = vadd.f32 %v999, %v1047
    %v1064 = vadd.f32 %v1000, %v1048
    %v1065 = vadd.f32 %v1001, %v1049
    %v1066 = vadd.f32 %v1002, %v1050
    %v1067 = vadd.f32 %v1003, %v1051
    %1068 = vset.pattern.permute.xlu0 11
    %1069 = vperm.xlu0 %1068, %v372
    %v1070 = vpop.permute.xlu0 %1069
    %1072 = vset.pattern.permute.xlu0 11
    %1073 = vperm.xlu0 %1072, %v373
    %v1074 = vpop.permute.xlu0 %1073
    %1076 = vset.pattern.permute.xlu0 11
    %1077 = vperm.xlu0 %1076, %v374
    %v1078 = vpop.permute.xlu0 %1077
    %1080 = vset.pattern.permute.xlu0 11
    %1081 = vperm.xlu0 %1080, %v375
    %v1082 = vpop.permute.xlu0 %1081
    %v1084 = vlaneseq
    %v1085 = vshrl.u32 %v1084, 7
    %v1086 = vsub.s32 3, %v1085
    %v1087 = vrot.slane %v368, %v1086
    %v1088 = vlaneseq
    %v1089 = vshrl.u32 %v1088, 7
    %v1090 = vsub.s32 3, %v1089
    %v1091 = vrot.slane %v369, %v1090
    %v1092 = vlaneseq
    %v1093 = vshrl.u32 %v1092, 7
    %v1094 = vsub.s32 3, %v1093
    %v1095 = vrot.slane %v370, %v1094
    %v1096 = vlaneseq
    %v1097 = vshrl.u32 %v1096, 7
    %v1098 = vsub.s32 3, %v1097
    %v1099 = vrot.slane %v371, %v1098
    %v1100 = vmul.f32 %v1070, %v1087
    %v1101 = vmul.f32 %v1070, %v1091
    %v1102 = vmul.f32 %v1070, %v1095
    %v1103 = vmul.f32 %v1070, %v1099
    %v1104 = vmul.f32 %v1074, %v1087
    %v1105 = vmul.f32 %v1074, %v1091
    %v1106 = vmul.f32 %v1074, %v1095
    %v1107 = vmul.f32 %v1074, %v1099
    %v1108 = vmul.f32 %v1078, %v1087
    %v1109 = vmul.f32 %v1078, %v1091
    %v1110 = vmul.f32 %v1078, %v1095
    %v1111 = vmul.f32 %v1078, %v1099
    %v1112 = vmul.f32 %v1082, %v1087
    %v1113 = vmul.f32 %v1082, %v1091
    %v1114 = vmul.f32 %v1082, %v1095
    %v1115 = vmul.f32 %v1082, %v1099
    %v1116 = vadd.f32 %v1052, %v1100
    %v1117 = vadd.f32 %v1053, %v1101
    %v1118 = vadd.f32 %v1054, %v1102
    %v1119 = vadd.f32 %v1055, %v1103
    %v1120 = vadd.f32 %v1056, %v1104
    %v1121 = vadd.f32 %v1057, %v1105
    %v1122 = vadd.f32 %v1058, %v1106
    %v1123 = vadd.f32 %v1059, %v1107
    %v1124 = vadd.f32 %v1060, %v1108
    %v1125 = vadd.f32 %v1061, %v1109
    %v1126 = vadd.f32 %v1062, %v1110
    %v1127 = vadd.f32 %v1063, %v1111
    %v1128 = vadd.f32 %v1064, %v1112
    %v1129 = vadd.f32 %v1065, %v1113
    %v1130 = vadd.f32 %v1066, %v1114
    %v1131 = vadd.f32 %v1067, %v1115
    %1132 = vset.pattern.permute.xlu0 12
    %1133 = vperm.xlu0 %1132, %v372
    %v1134 = vpop.permute.xlu0 %1133
    %1136 = vset.pattern.permute.xlu0 12
    %1137 = vperm.xlu0 %1136, %v373
    %v1138 = vpop.permute.xlu0 %1137
    %1140 = vset.pattern.permute.xlu0 12
    %1141 = vperm.xlu0 %1140, %v374
    %v1142 = vpop.permute.xlu0 %1141
    %1144 = vset.pattern.permute.xlu0 12
    %1145 = vperm.xlu0 %1144, %v375
    %v1146 = vpop.permute.xlu0 %1145
    %v1148 = vlaneseq
    %v1149 = vshrl.u32 %v1148, 7
    %v1150 = vsub.s32 4, %v1149
    %v1151 = vrot.slane %v368, %v1150
    %v1152 = vlaneseq
    %v1153 = vshrl.u32 %v1152, 7
    %v1154 = vsub.s32 4, %v1153
    %v1155 = vrot.slane %v369, %v1154
    %v1156 = vlaneseq
    %v1157 = vshrl.u32 %v1156, 7
    %v1158 = vsub.s32 4, %v1157
    %v1159 = vrot.slane %v370, %v1158
    %v1160 = vlaneseq
    %v1161 = vshrl.u32 %v1160, 7
    %v1162 = vsub.s32 4, %v1161
    %v1163 = vrot.slane %v371, %v1162
    %v1164 = vmul.f32 %v1134, %v1151
    %v1165 = vmul.f32 %v1134, %v1155
    %v1166 = vmul.f32 %v1134, %v1159
    %v1167 = vmul.f32 %v1134, %v1163
    %v1168 = vmul.f32 %v1138, %v1151
    %v1169 = vmul.f32 %v1138, %v1155
    %v1170 = vmul.f32 %v1138, %v1159
    %v1171 = vmul.f32 %v1138, %v1163
    %v1172 = vmul.f32 %v1142, %v1151
    %v1173 = vmul.f32 %v1142, %v1155
    %v1174 = vmul.f32 %v1142, %v1159
    %v1175 = vmul.f32 %v1142, %v1163
    %v1176 = vmul.f32 %v1146, %v1151
    %v1177 = vmul.f32 %v1146, %v1155
    %v1178 = vmul.f32 %v1146, %v1159
    %v1179 = vmul.f32 %v1146, %v1163
    %v1180 = vadd.f32 %v1116, %v1164
    %v1181 = vadd.f32 %v1117, %v1165
    %v1182 = vadd.f32 %v1118, %v1166
    %v1183 = vadd.f32 %v1119, %v1167
    %v1184 = vadd.f32 %v1120, %v1168
    %v1185 = vadd.f32 %v1121, %v1169
    %v1186 = vadd.f32 %v1122, %v1170
    %v1187 = vadd.f32 %v1123, %v1171
    %v1188 = vadd.f32 %v1124, %v1172
    %v1189 = vadd.f32 %v1125, %v1173
    %v1190 = vadd.f32 %v1126, %v1174
    %v1191 = vadd.f32 %v1127, %v1175
    %v1192 = vadd.f32 %v1128, %v1176
    %v1193 = vadd.f32 %v1129, %v1177
    %v1194 = vadd.f32 %v1130, %v1178
    %v1195 = vadd.f32 %v1131, %v1179
    %1196 = vset.pattern.permute.xlu0 13
    %1197 = vperm.xlu0 %1196, %v372
    %v1198 = vpop.permute.xlu0 %1197
    %1200 = vset.pattern.permute.xlu0 13
    %1201 = vperm.xlu0 %1200, %v373
    %v1202 = vpop.permute.xlu0 %1201
    %1204 = vset.pattern.permute.xlu0 13
    %1205 = vperm.xlu0 %1204, %v374
    %v1206 = vpop.permute.xlu0 %1205
    %1208 = vset.pattern.permute.xlu0 13
    %1209 = vperm.xlu0 %1208, %v375
    %v1210 = vpop.permute.xlu0 %1209
    %v1212 = vlaneseq
    %v1213 = vshrl.u32 %v1212, 7
    %v1214 = vsub.s32 5, %v1213
    %v1215 = vrot.slane %v368, %v1214
    %v1216 = vlaneseq
    %v1217 = vshrl.u32 %v1216, 7
    %v1218 = vsub.s32 5, %v1217
    %v1219 = vrot.slane %v369, %v1218
    %v1220 = vlaneseq
    %v1221 = vshrl.u32 %v1220, 7
    %v1222 = vsub.s32 5, %v1221
    %v1223 = vrot.slane %v370, %v1222
    %v1224 = vlaneseq
    %v1225 = vshrl.u32 %v1224, 7
    %v1226 = vsub.s32 5, %v1225
    %v1227 = vrot.slane %v371, %v1226
    %v1228 = vmul.f32 %v1198, %v1215
    %v1229 = vmul.f32 %v1198, %v1219
    %v1230 = vmul.f32 %v1198, %v1223
    %v1231 = vmul.f32 %v1198, %v1227
    %v1232 = vmul.f32 %v1202, %v1215
    %v1233 = vmul.f32 %v1202, %v1219
    %v1234 = vmul.f32 %v1202, %v1223
    %v1235 = vmul.f32 %v1202, %v1227
    %v1236 = vmul.f32 %v1206, %v1215
    %v1237 = vmul.f32 %v1206, %v1219
    %v1238 = vmul.f32 %v1206, %v1223
    %v1239 = vmul.f32 %v1206, %v1227
    %v1240 = vmul.f32 %v1210, %v1215
    %v1241 = vmul.f32 %v1210, %v1219
    %v1242 = vmul.f32 %v1210, %v1223
    %v1243 = vmul.f32 %v1210, %v1227
    %v1244 = vadd.f32 %v1180, %v1228
    %v1245 = vadd.f32 %v1181, %v1229
    %v1246 = vadd.f32 %v1182, %v1230
    %v1247 = vadd.f32 %v1183, %v1231
    %v1248 = vadd.f32 %v1184, %v1232
    %v1249 = vadd.f32 %v1185, %v1233
    %v1250 = vadd.f32 %v1186, %v1234
    %v1251 = vadd.f32 %v1187, %v1235
    %v1252 = vadd.f32 %v1188, %v1236
    %v1253 = vadd.f32 %v1189, %v1237
    %v1254 = vadd.f32 %v1190, %v1238
    %v1255 = vadd.f32 %v1191, %v1239
    %v1256 = vadd.f32 %v1192, %v1240
    %v1257 = vadd.f32 %v1193, %v1241
    %v1258 = vadd.f32 %v1194, %v1242
    %v1259 = vadd.f32 %v1195, %v1243
    %1260 = vset.pattern.permute.xlu0 14
    %1261 = vperm.xlu0 %1260, %v372
    %v1262 = vpop.permute.xlu0 %1261
    %1264 = vset.pattern.permute.xlu0 14
    %1265 = vperm.xlu0 %1264, %v373
    %v1266 = vpop.permute.xlu0 %1265
    %1268 = vset.pattern.permute.xlu0 14
    %1269 = vperm.xlu0 %1268, %v374
    %v1270 = vpop.permute.xlu0 %1269
    %1272 = vset.pattern.permute.xlu0 14
    %1273 = vperm.xlu0 %1272, %v375
    %v1274 = vpop.permute.xlu0 %1273
    %v1276 = vlaneseq
    %v1277 = vshrl.u32 %v1276, 7
    %v1278 = vsub.s32 6, %v1277
    %v1279 = vrot.slane %v368, %v1278
    %v1280 = vlaneseq
    %v1281 = vshrl.u32 %v1280, 7
    %v1282 = vsub.s32 6, %v1281
    %v1283 = vrot.slane %v369, %v1282
    %v1284 = vlaneseq
    %v1285 = vshrl.u32 %v1284, 7
    %v1286 = vsub.s32 6, %v1285
    %v1287 = vrot.slane %v370, %v1286
    %v1288 = vlaneseq
    %v1289 = vshrl.u32 %v1288, 7
    %v1290 = vsub.s32 6, %v1289
    %v1291 = vrot.slane %v371, %v1290
    %v1292 = vmul.f32 %v1262, %v1279
    %v1293 = vmul.f32 %v1262, %v1283
    %v1294 = vmul.f32 %v1262, %v1287
    %v1295 = vmul.f32 %v1262, %v1291
    %v1296 = vmul.f32 %v1266, %v1279
    %v1297 = vmul.f32 %v1266, %v1283
    %v1298 = vmul.f32 %v1266, %v1287
    %v1299 = vmul.f32 %v1266, %v1291
    %v1300 = vmul.f32 %v1270, %v1279
    %v1301 = vmul.f32 %v1270, %v1283
    %v1302 = vmul.f32 %v1270, %v1287
    %v1303 = vmul.f32 %v1270, %v1291
    %v1304 = vmul.f32 %v1274, %v1279
    %v1305 = vmul.f32 %v1274, %v1283
    %v1306 = vmul.f32 %v1274, %v1287
    %v1307 = vmul.f32 %v1274, %v1291
    %v1308 = vadd.f32 %v1244, %v1292
    %v1309 = vadd.f32 %v1245, %v1293
    %v1310 = vadd.f32 %v1246, %v1294
    %v1311 = vadd.f32 %v1247, %v1295
    %v1312 = vadd.f32 %v1248, %v1296
    %v1313 = vadd.f32 %v1249, %v1297
    %v1314 = vadd.f32 %v1250, %v1298
    %v1315 = vadd.f32 %v1251, %v1299
    %v1316 = vadd.f32 %v1252, %v1300
    %v1317 = vadd.f32 %v1253, %v1301
    %v1318 = vadd.f32 %v1254, %v1302
    %v1319 = vadd.f32 %v1255, %v1303
    %v1320 = vadd.f32 %v1256, %v1304
    %v1321 = vadd.f32 %v1257, %v1305
    %v1322 = vadd.f32 %v1258, %v1306
    %v1323 = vadd.f32 %v1259, %v1307
    %1324 = vset.pattern.permute.xlu0 15
    %1325 = vperm.xlu0 %1324, %v372
    %v1326 = vpop.permute.xlu0 %1325
    %1328 = vset.pattern.permute.xlu0 15
    %1329 = vperm.xlu0 %1328, %v373
    %v1330 = vpop.permute.xlu0 %1329
    %1332 = vset.pattern.permute.xlu0 15
    %1333 = vperm.xlu0 %1332, %v374
    %v1334 = vpop.permute.xlu0 %1333
    %1336 = vset.pattern.permute.xlu0 15
    %1337 = vperm.xlu0 %1336, %v375
    %v1338 = vpop.permute.xlu0 %1337
    %v1340 = vlaneseq
    %v1341 = vshrl.u32 %v1340, 7
    %v1342 = vsub.s32 7, %v1341
    %v1343 = vrot.slane %v368, %v1342
    %v1344 = vlaneseq
    %v1345 = vshrl.u32 %v1344, 7
    %v1346 = vsub.s32 7, %v1345
    %v1347 = vrot.slane %v369, %v1346
    %v1348 = vlaneseq
    %v1349 = vshrl.u32 %v1348, 7
    %v1350 = vsub.s32 7, %v1349
    %v1351 = vrot.slane %v370, %v1350
    %v1352 = vlaneseq
    %v1353 = vshrl.u32 %v1352, 7
    %v1354 = vsub.s32 7, %v1353
    %v1355 = vrot.slane %v371, %v1354
    %v1356 = vmul.f32 %v1326, %v1343
    %v1357 = vmul.f32 %v1326, %v1347
    %v1358 = vmul.f32 %v1326, %v1351
    %v1359 = vmul.f32 %v1326, %v1355
    %v1360 = vmul.f32 %v1330, %v1343
    %v1361 = vmul.f32 %v1330, %v1347
    %v1362 = vmul.f32 %v1330, %v1351
    %v1363 = vmul.f32 %v1330, %v1355
    %v1364 = vmul.f32 %v1334, %v1343
    %v1365 = vmul.f32 %v1334, %v1347
    %v1366 = vmul.f32 %v1334, %v1351
    %v1367 = vmul.f32 %v1334, %v1355
    %v1368 = vmul.f32 %v1338, %v1343
    %v1369 = vmul.f32 %v1338, %v1347
    %v1370 = vmul.f32 %v1338, %v1351
    %v1371 = vmul.f32 %v1338, %v1355
    %v1372 = vadd.f32 %v1308, %v1356
    %v1373 = vadd.f32 %v1309, %v1357
    %v1374 = vadd.f32 %v1310, %v1358
    %v1375 = vadd.f32 %v1311, %v1359
    %v1376 = vadd.f32 %v1312, %v1360
    %v1377 = vadd.f32 %v1313, %v1361
    %v1378 = vadd.f32 %v1314, %v1362
    %v1379 = vadd.f32 %v1315, %v1363
    %v1380 = vadd.f32 %v1316, %v1364
    %v1381 = vadd.f32 %v1317, %v1365
    %v1382 = vadd.f32 %v1318, %v1366
    %v1383 = vadd.f32 %v1319, %v1367
    %v1384 = vadd.f32 %v1320, %v1368
    %v1385 = vadd.f32 %v1321, %v1369
    %v1386 = vadd.f32 %v1322, %v1370
    %v1387 = vadd.f32 %v1323, %v1371
    %v1388 = vld [vmem:[%s5] sm:$0xff]
    %v1389 = vld [vmem:[%s5 + $0x8] sm:$0xff]
    %v1390 = vld [vmem:[%s5 + $0x10] sm:$0xff]
    %v1391 = vld [vmem:[%s5 + $0x18] sm:$0xff]
    %v1392 = vld [vmem:[%s6] sm:$0xff]
    %v1393 = vld [vmem:[%s6 + $0x8] sm:$0xff]
    %v1394 = vld [vmem:[%s6 + $0x10] sm:$0xff]
    %v1395 = vld [vmem:[%s6 + $0x18] sm:$0xff]
    %v1396 = vadd.f32 %v1372, %v1373
    %v1397 = vadd.f32 %v1396, %v1374
    %v1398 = vadd.f32 %v1397, %v1375
    %1399 = vadd.xlane.f32.xlu0 %v1398
    %v1400 = vpop.xlane.xlu0 %1399
    %v1401 = vadd.f32 %v1376, %v1377
    %v1402 = vadd.f32 %v1401, %v1378
    %v1403 = vadd.f32 %v1402, %v1379
    %1404 = vadd.xlane.f32.xlu0 %v1403
    %v1405 = vpop.xlane.xlu0 %1404
    %v1406 = vadd.f32 %v1380, %v1381
    %v1407 = vadd.f32 %v1406, %v1382
    %v1408 = vadd.f32 %v1407, %v1383
    %1409 = vadd.xlane.f32.xlu0 %v1408
    %v1410 = vpop.xlane.xlu0 %1409
    %v1411 = vadd.f32 %v1384, %v1385
    %v1412 = vadd.f32 %v1411, %v1386
    %v1413 = vadd.f32 %v1412, %v1387
    %1414 = vadd.xlane.f32.xlu0 %v1413
    %v1415 = vpop.xlane.xlu0 %1414
    %v1416 = vmul.f32 %v1400, 0.001953125
    %v1417 = vmul.f32 %v1405, 0.001953125
    %v1418 = vmul.f32 %v1410, 0.001953125
    %v1419 = vmul.f32 %v1415, 0.001953125
    %v1420 = vmul.f32 %v1372, %v1372
    %v1421 = vmul.f32 %v1373, %v1373
    %v1422 = vmul.f32 %v1374, %v1374
    %v1423 = vmul.f32 %v1375, %v1375
    %v1424 = vmul.f32 %v1376, %v1376
    %v1425 = vmul.f32 %v1377, %v1377
    %v1426 = vmul.f32 %v1378, %v1378
    %v1427 = vmul.f32 %v1379, %v1379
    %v1428 = vmul.f32 %v1380, %v1380
    %v1429 = vmul.f32 %v1381, %v1381
    %v1430 = vmul.f32 %v1382, %v1382
    %v1431 = vmul.f32 %v1383, %v1383
    %v1432 = vmul.f32 %v1384, %v1384
    %v1433 = vmul.f32 %v1385, %v1385
    %v1434 = vmul.f32 %v1386, %v1386
    %v1435 = vmul.f32 %v1387, %v1387
    %v1436 = vadd.f32 %v1420, %v1421
    %v1437 = vadd.f32 %v1436, %v1422
    %v1438 = vadd.f32 %v1437, %v1423
    %1439 = vadd.xlane.f32.xlu0 %v1438
    %v1440 = vpop.xlane.xlu0 %1439
    %v1441 = vadd.f32 %v1424, %v1425
    %v1442 = vadd.f32 %v1441, %v1426
    %v1443 = vadd.f32 %v1442, %v1427
    %1444 = vadd.xlane.f32.xlu0 %v1443
    %v1445 = vpop.xlane.xlu0 %1444
    %v1446 = vadd.f32 %v1428, %v1429
    %v1447 = vadd.f32 %v1446, %v1430
    %v1448 = vadd.f32 %v1447, %v1431
    %1449 = vadd.xlane.f32.xlu0 %v1448
    %v1450 = vpop.xlane.xlu0 %1449
    %v1451 = vadd.f32 %v1432, %v1433
    %v1452 = vadd.f32 %v1451, %v1434
    %v1453 = vadd.f32 %v1452, %v1435
    %1454 = vadd.xlane.f32.xlu0 %v1453
    %v1455 = vpop.xlane.xlu0 %1454
    %v1456 = vmul.f32 %v1440, 0.001953125
    %v1457 = vmul.f32 %v1445, 0.001953125
    %v1458 = vmul.f32 %v1450, 0.001953125
    %v1459 = vmul.f32 %v1455, 0.001953125
    %v1460 = vmul.f32 %v1416, %v1416
    %v1461 = vmul.f32 %v1417, %v1417
    %v1462 = vmul.f32 %v1418, %v1418
    %v1463 = vmul.f32 %v1419, %v1419
    %v1464 = vsub.f32 %v1456, %v1460
    %v1465 = vsub.f32 %v1457, %v1461
    %v1466 = vsub.f32 %v1458, %v1462
    %v1467 = vsub.f32 %v1459, %v1463
    %v1468 = vmax.f32 %v1464, 0.0
    %v1469 = vmax.f32 %v1465, 0.0
    %v1470 = vmax.f32 %v1466, 0.0
    %v1471 = vmax.f32 %v1467, 0.0
    %v1472 = vadd.f32 %v1468, 1e-05
    %v1473 = vadd.f32 %v1469, 1e-05
    %v1474 = vadd.f32 %v1470, 1e-05
    %v1475 = vadd.f32 %v1471, 1e-05
    %v1476 = vrsqrt.pop %v1472
    %v1477 = vrsqrt.pop %v1473
    %v1478 = vrsqrt.pop %v1474
    %v1479 = vrsqrt.pop %v1475
    %v1480 = vmul.f32 %v1388, %v1476
    %v1481 = vmul.f32 %v1389, %v1477
    %v1482 = vmul.f32 %v1390, %v1478
    %v1483 = vmul.f32 %v1391, %v1479
    %v1484 = vmul.f32 %v1416, %v1480
    %v1485 = vmul.f32 %v1417, %v1481
    %v1486 = vmul.f32 %v1418, %v1482
    %v1487 = vmul.f32 %v1419, %v1483
    %v1488 = vsub.f32 %v1392, %v1484
    %v1489 = vsub.f32 %v1393, %v1485
    %v1490 = vsub.f32 %v1394, %v1486
    %v1491 = vsub.f32 %v1395, %v1487
    %1493 = vset.pattern.permute.xlu0 0
    %1494 = vperm.xlu0 %1493, %v1480
    %v1495 = vpop.permute.xlu0 %1494
    %1498 = vset.pattern.permute.xlu0 0
    %1499 = vperm.xlu0 %1498, %v1481
    %v1500 = vpop.permute.xlu0 %1499
    %1503 = vset.pattern.permute.xlu0 0
    %1504 = vperm.xlu0 %1503, %v1482
    %v1505 = vpop.permute.xlu0 %1504
    %1508 = vset.pattern.permute.xlu0 0
    %1509 = vperm.xlu0 %1508, %v1483
    %v1510 = vpop.permute.xlu0 %1509
    %v1512 = vmul.f32 %v1372, %v1495
    %v1513 = vmul.f32 %v1373, %v1495
    %v1514 = vmul.f32 %v1374, %v1495
    %v1515 = vmul.f32 %v1375, %v1495
    %v1516 = vmul.f32 %v1376, %v1500
    %v1517 = vmul.f32 %v1377, %v1500
    %v1518 = vmul.f32 %v1378, %v1500
    %v1519 = vmul.f32 %v1379, %v1500
    %v1520 = vmul.f32 %v1380, %v1505
    %v1521 = vmul.f32 %v1381, %v1505
    %v1522 = vmul.f32 %v1382, %v1505
    %v1523 = vmul.f32 %v1383, %v1505
    %v1524 = vmul.f32 %v1384, %v1510
    %v1525 = vmul.f32 %v1385, %v1510
    %v1526 = vmul.f32 %v1386, %v1510
    %v1527 = vmul.f32 %v1387, %v1510
    %1529 = vset.pattern.permute.xlu0 0
    %1530 = vperm.xlu0 %1529, %v1488
    %v1531 = vpop.permute.xlu0 %1530
    %1534 = vset.pattern.permute.xlu0 0
    %1535 = vperm.xlu0 %1534, %v1489
    %v1536 = vpop.permute.xlu0 %1535
    %1539 = vset.pattern.permute.xlu0 0
    %1540 = vperm.xlu0 %1539, %v1490
    %v1541 = vpop.permute.xlu0 %1540
    %1544 = vset.pattern.permute.xlu0 0
    %1545 = vperm.xlu0 %1544, %v1491
    %v1546 = vpop.permute.xlu0 %1545
    %v1548 = vadd.f32 %v1512, %v1531
    %v1549 = vadd.f32 %v1513, %v1531
    %v1550 = vadd.f32 %v1514, %v1531
    %v1551 = vadd.f32 %v1515, %v1531
    %v1552 = vadd.f32 %v1516, %v1536
    %v1553 = vadd.f32 %v1517, %v1536
    %v1554 = vadd.f32 %v1518, %v1536
    %v1555 = vadd.f32 %v1519, %v1536
    %v1556 = vadd.f32 %v1520, %v1541
    %v1557 = vadd.f32 %v1521, %v1541
    %v1558 = vadd.f32 %v1522, %v1541
    %v1559 = vadd.f32 %v1523, %v1541
    %v1560 = vadd.f32 %v1524, %v1546
    %v1561 = vadd.f32 %v1525, %v1546
    %v1562 = vadd.f32 %v1526, %v1546
    %v1563 = vadd.f32 %v1527, %v1546
    %v1564 = vmax.f32 %v1548, 0.0
    %v1565 = vmax.f32 %v1549, 0.0
    %v1566 = vmax.f32 %v1550, 0.0
    %v1567 = vmax.f32 %v1551, 0.0
    %v1568 = vmax.f32 %v1552, 0.0
    %v1569 = vmax.f32 %v1553, 0.0
    %v1570 = vmax.f32 %v1554, 0.0
    %v1571 = vmax.f32 %v1555, 0.0
    %v1572 = vmax.f32 %v1556, 0.0
    %v1573 = vmax.f32 %v1557, 0.0
    %v1574 = vmax.f32 %v1558, 0.0
    %v1575 = vmax.f32 %v1559, 0.0
    %v1576 = vmax.f32 %v1560, 0.0
    %v1577 = vmax.f32 %v1561, 0.0
    %v1578 = vmax.f32 %v1562, 0.0
    %v1579 = vmax.f32 %v1563, 0.0
    %v1580 = vld [vmem:[%s7] sm:$0xff]
    %v1581 = vld [vmem:[%s7 + $0x8] sm:$0xff]
    %v1582 = vld [vmem:[%s7 + $0x10] sm:$0xff]
    %v1583 = vld [vmem:[%s7 + $0x18] sm:$0xff]
    %v1584 = vld [vmem:[%s7 + $0x20] sm:$0xff]
    %v1585 = vld [vmem:[%s7 + $0x28] sm:$0xff]
    %v1586 = vld [vmem:[%s7 + $0x30] sm:$0xff]
    %v1587 = vld [vmem:[%s7 + $0x38] sm:$0xff]
    %1589 = vset.pattern.permute.xlu0 0
    %1590 = vperm.xlu0 %1589, %v1580
    %v1591 = vpop.permute.xlu0 %1590
    %1594 = vset.pattern.permute.xlu0 0
    %1595 = vperm.xlu0 %1594, %v1581
    %v1596 = vpop.permute.xlu0 %1595
    %1599 = vset.pattern.permute.xlu0 0
    %1600 = vperm.xlu0 %1599, %v1582
    %v1601 = vpop.permute.xlu0 %1600
    %1604 = vset.pattern.permute.xlu0 0
    %1605 = vperm.xlu0 %1604, %v1583
    %v1606 = vpop.permute.xlu0 %1605
    %1609 = vset.pattern.permute.xlu0 0
    %1610 = vperm.xlu0 %1609, %v1584
    %v1611 = vpop.permute.xlu0 %1610
    %1614 = vset.pattern.permute.xlu0 0
    %1615 = vperm.xlu0 %1614, %v1585
    %v1616 = vpop.permute.xlu0 %1615
    %1619 = vset.pattern.permute.xlu0 0
    %1620 = vperm.xlu0 %1619, %v1586
    %v1621 = vpop.permute.xlu0 %1620
    %1624 = vset.pattern.permute.xlu0 0
    %1625 = vperm.xlu0 %1624, %v1587
    %v1626 = vpop.permute.xlu0 %1625
    %v1628 = vlaneseq
    %v1629 = vshrl.u32 %v1628, 7
    %v1630 = vsub.s32 0, %v1629
    %v1631 = vrot.slane %v1564, %v1630
    %v1632 = vlaneseq
    %v1633 = vshrl.u32 %v1632, 7
    %v1634 = vsub.s32 0, %v1633
    %v1635 = vrot.slane %v1565, %v1634
    %v1636 = vlaneseq
    %v1637 = vshrl.u32 %v1636, 7
    %v1638 = vsub.s32 0, %v1637
    %v1639 = vrot.slane %v1566, %v1638
    %v1640 = vlaneseq
    %v1641 = vshrl.u32 %v1640, 7
    %v1642 = vsub.s32 0, %v1641
    %v1643 = vrot.slane %v1567, %v1642
    %v1644 = vmul.f32 %v1591, %v1631
    %v1645 = vmul.f32 %v1591, %v1635
    %v1646 = vmul.f32 %v1591, %v1639
    %v1647 = vmul.f32 %v1591, %v1643
    %v1648 = vmul.f32 %v1596, %v1631
    %v1649 = vmul.f32 %v1596, %v1635
    %v1650 = vmul.f32 %v1596, %v1639
    %v1651 = vmul.f32 %v1596, %v1643
    %v1652 = vmul.f32 %v1601, %v1631
    %v1653 = vmul.f32 %v1601, %v1635
    %v1654 = vmul.f32 %v1601, %v1639
    %v1655 = vmul.f32 %v1601, %v1643
    %v1656 = vmul.f32 %v1606, %v1631
    %v1657 = vmul.f32 %v1606, %v1635
    %v1658 = vmul.f32 %v1606, %v1639
    %v1659 = vmul.f32 %v1606, %v1643
    %v1660 = vmul.f32 %v1611, %v1631
    %v1661 = vmul.f32 %v1611, %v1635
    %v1662 = vmul.f32 %v1611, %v1639
    %v1663 = vmul.f32 %v1611, %v1643
    %v1664 = vmul.f32 %v1616, %v1631
    %v1665 = vmul.f32 %v1616, %v1635
    %v1666 = vmul.f32 %v1616, %v1639
    %v1667 = vmul.f32 %v1616, %v1643
    %v1668 = vmul.f32 %v1621, %v1631
    %v1669 = vmul.f32 %v1621, %v1635
    %v1670 = vmul.f32 %v1621, %v1639
    %v1671 = vmul.f32 %v1621, %v1643
    %v1672 = vmul.f32 %v1626, %v1631
    %v1673 = vmul.f32 %v1626, %v1635
    %v1674 = vmul.f32 %v1626, %v1639
    %v1675 = vmul.f32 %v1626, %v1643
    %1676 = vset.pattern.permute.xlu0 1
    %1677 = vperm.xlu0 %1676, %v1580
    %v1678 = vpop.permute.xlu0 %1677
    %1680 = vset.pattern.permute.xlu0 1
    %1681 = vperm.xlu0 %1680, %v1581
    %v1682 = vpop.permute.xlu0 %1681
    %1684 = vset.pattern.permute.xlu0 1
    %1685 = vperm.xlu0 %1684, %v1582
    %v1686 = vpop.permute.xlu0 %1685
    %1688 = vset.pattern.permute.xlu0 1
    %1689 = vperm.xlu0 %1688, %v1583
    %v1690 = vpop.permute.xlu0 %1689
    %1692 = vset.pattern.permute.xlu0 1
    %1693 = vperm.xlu0 %1692, %v1584
    %v1694 = vpop.permute.xlu0 %1693
    %1696 = vset.pattern.permute.xlu0 1
    %1697 = vperm.xlu0 %1696, %v1585
    %v1698 = vpop.permute.xlu0 %1697
    %1700 = vset.pattern.permute.xlu0 1
    %1701 = vperm.xlu0 %1700, %v1586
    %v1702 = vpop.permute.xlu0 %1701
    %1704 = vset.pattern.permute.xlu0 1
    %1705 = vperm.xlu0 %1704, %v1587
    %v1706 = vpop.permute.xlu0 %1705
    %v1708 = vlaneseq
    %v1709 = vshrl.u32 %v1708, 7
    %v1710 = vsub.s32 1, %v1709
    %v1711 = vrot.slane %v1564, %v1710
    %v1712 = vlaneseq
    %v1713 = vshrl.u32 %v1712, 7
    %v1714 = vsub.s32 1, %v1713
    %v1715 = vrot.slane %v1565, %v1714
    %v1716 = vlaneseq
    %v1717 = vshrl.u32 %v1716, 7
    %v1718 = vsub.s32 1, %v1717
    %v1719 = vrot.slane %v1566, %v1718
    %v1720 = vlaneseq
    %v1721 = vshrl.u32 %v1720, 7
    %v1722 = vsub.s32 1, %v1721
    %v1723 = vrot.slane %v1567, %v1722
    %v1724 = vmul.f32 %v1678, %v1711
    %v1725 = vmul.f32 %v1678, %v1715
    %v1726 = vmul.f32 %v1678, %v1719
    %v1727 = vmul.f32 %v1678, %v1723
    %v1728 = vmul.f32 %v1682, %v1711
    %v1729 = vmul.f32 %v1682, %v1715
    %v1730 = vmul.f32 %v1682, %v1719
    %v1731 = vmul.f32 %v1682, %v1723
    %v1732 = vmul.f32 %v1686, %v1711
    %v1733 = vmul.f32 %v1686, %v1715
    %v1734 = vmul.f32 %v1686, %v1719
    %v1735 = vmul.f32 %v1686, %v1723
    %v1736 = vmul.f32 %v1690, %v1711
    %v1737 = vmul.f32 %v1690, %v1715
    %v1738 = vmul.f32 %v1690, %v1719
    %v1739 = vmul.f32 %v1690, %v1723
    %v1740 = vmul.f32 %v1694, %v1711
    %v1741 = vmul.f32 %v1694, %v1715
    %v1742 = vmul.f32 %v1694, %v1719
    %v1743 = vmul.f32 %v1694, %v1723
    %v1744 = vmul.f32 %v1698, %v1711
    %v1745 = vmul.f32 %v1698, %v1715
    %v1746 = vmul.f32 %v1698, %v1719
    %v1747 = vmul.f32 %v1698, %v1723
    %v1748 = vmul.f32 %v1702, %v1711
    %v1749 = vmul.f32 %v1702, %v1715
    %v1750 = vmul.f32 %v1702, %v1719
    %v1751 = vmul.f32 %v1702, %v1723
    %v1752 = vmul.f32 %v1706, %v1711
    %v1753 = vmul.f32 %v1706, %v1715
    %v1754 = vmul.f32 %v1706, %v1719
    %v1755 = vmul.f32 %v1706, %v1723
    %v1756 = vadd.f32 %v1644, %v1724
    %v1757 = vadd.f32 %v1645, %v1725
    %v1758 = vadd.f32 %v1646, %v1726
    %v1759 = vadd.f32 %v1647, %v1727
    %v1760 = vadd.f32 %v1648, %v1728
    %v1761 = vadd.f32 %v1649, %v1729
    %v1762 = vadd.f32 %v1650, %v1730
    %v1763 = vadd.f32 %v1651, %v1731
    %v1764 = vadd.f32 %v1652, %v1732
    %v1765 = vadd.f32 %v1653, %v1733
    %v1766 = vadd.f32 %v1654, %v1734
    %v1767 = vadd.f32 %v1655, %v1735
    %v1768 = vadd.f32 %v1656, %v1736
    %v1769 = vadd.f32 %v1657, %v1737
    %v1770 = vadd.f32 %v1658, %v1738
    %v1771 = vadd.f32 %v1659, %v1739
    %v1772 = vadd.f32 %v1660, %v1740
    %v1773 = vadd.f32 %v1661, %v1741
    %v1774 = vadd.f32 %v1662, %v1742
    %v1775 = vadd.f32 %v1663, %v1743
    %v1776 = vadd.f32 %v1664, %v1744
    %v1777 = vadd.f32 %v1665, %v1745
    %v1778 = vadd.f32 %v1666, %v1746
    %v1779 = vadd.f32 %v1667, %v1747
    %v1780 = vadd.f32 %v1668, %v1748
    %v1781 = vadd.f32 %v1669, %v1749
    %v1782 = vadd.f32 %v1670, %v1750
    %v1783 = vadd.f32 %v1671, %v1751
    %v1784 = vadd.f32 %v1672, %v1752
    %v1785 = vadd.f32 %v1673, %v1753
    %v1786 = vadd.f32 %v1674, %v1754
    %v1787 = vadd.f32 %v1675, %v1755
    %1788 = vset.pattern.permute.xlu0 2
    %1789 = vperm.xlu0 %1788, %v1580
    %v1790 = vpop.permute.xlu0 %1789
    %1792 = vset.pattern.permute.xlu0 2
    %1793 = vperm.xlu0 %1792, %v1581
    %v1794 = vpop.permute.xlu0 %1793
    %1796 = vset.pattern.permute.xlu0 2
    %1797 = vperm.xlu0 %1796, %v1582
    %v1798 = vpop.permute.xlu0 %1797
    %1800 = vset.pattern.permute.xlu0 2
    %1801 = vperm.xlu0 %1800, %v1583
    %v1802 = vpop.permute.xlu0 %1801
    %1804 = vset.pattern.permute.xlu0 2
    %1805 = vperm.xlu0 %1804, %v1584
    %v1806 = vpop.permute.xlu0 %1805
    %1808 = vset.pattern.permute.xlu0 2
    %1809 = vperm.xlu0 %1808, %v1585
    %v1810 = vpop.permute.xlu0 %1809
    %1812 = vset.pattern.permute.xlu0 2
    %1813 = vperm.xlu0 %1812, %v1586
    %v1814 = vpop.permute.xlu0 %1813
    %1816 = vset.pattern.permute.xlu0 2
    %1817 = vperm.xlu0 %1816, %v1587
    %v1818 = vpop.permute.xlu0 %1817
    %v1820 = vlaneseq
    %v1821 = vshrl.u32 %v1820, 7
    %v1822 = vsub.s32 2, %v1821
    %v1823 = vrot.slane %v1564, %v1822
    %v1824 = vlaneseq
    %v1825 = vshrl.u32 %v1824, 7
    %v1826 = vsub.s32 2, %v1825
    %v1827 = vrot.slane %v1565, %v1826
    %v1828 = vlaneseq
    %v1829 = vshrl.u32 %v1828, 7
    %v1830 = vsub.s32 2, %v1829
    %v1831 = vrot.slane %v1566, %v1830
    %v1832 = vlaneseq
    %v1833 = vshrl.u32 %v1832, 7
    %v1834 = vsub.s32 2, %v1833
    %v1835 = vrot.slane %v1567, %v1834
    %v1836 = vmul.f32 %v1790, %v1823
    %v1837 = vmul.f32 %v1790, %v1827
    %v1838 = vmul.f32 %v1790, %v1831
    %v1839 = vmul.f32 %v1790, %v1835
    %v1840 = vmul.f32 %v1794, %v1823
    %v1841 = vmul.f32 %v1794, %v1827
    %v1842 = vmul.f32 %v1794, %v1831
    %v1843 = vmul.f32 %v1794, %v1835
    %v1844 = vmul.f32 %v1798, %v1823
    %v1845 = vmul.f32 %v1798, %v1827
    %v1846 = vmul.f32 %v1798, %v1831
    %v1847 = vmul.f32 %v1798, %v1835
    %v1848 = vmul.f32 %v1802, %v1823
    %v1849 = vmul.f32 %v1802, %v1827
    %v1850 = vmul.f32 %v1802, %v1831
    %v1851 = vmul.f32 %v1802, %v1835
    %v1852 = vmul.f32 %v1806, %v1823
    %v1853 = vmul.f32 %v1806, %v1827
    %v1854 = vmul.f32 %v1806, %v1831
    %v1855 = vmul.f32 %v1806, %v1835
    %v1856 = vmul.f32 %v1810, %v1823
    %v1857 = vmul.f32 %v1810, %v1827
    %v1858 = vmul.f32 %v1810, %v1831
    %v1859 = vmul.f32 %v1810, %v1835
    %v1860 = vmul.f32 %v1814, %v1823
    %v1861 = vmul.f32 %v1814, %v1827
    %v1862 = vmul.f32 %v1814, %v1831
    %v1863 = vmul.f32 %v1814, %v1835
    %v1864 = vmul.f32 %v1818, %v1823
    %v1865 = vmul.f32 %v1818, %v1827
    %v1866 = vmul.f32 %v1818, %v1831
    %v1867 = vmul.f32 %v1818, %v1835
    %v1868 = vadd.f32 %v1756, %v1836
    %v1869 = vadd.f32 %v1757, %v1837
    %v1870 = vadd.f32 %v1758, %v1838
    %v1871 = vadd.f32 %v1759, %v1839
    %v1872 = vadd.f32 %v1760, %v1840
    %v1873 = vadd.f32 %v1761, %v1841
    %v1874 = vadd.f32 %v1762, %v1842
    %v1875 = vadd.f32 %v1763, %v1843
    %v1876 = vadd.f32 %v1764, %v1844
    %v1877 = vadd.f32 %v1765, %v1845
    %v1878 = vadd.f32 %v1766, %v1846
    %v1879 = vadd.f32 %v1767, %v1847
    %v1880 = vadd.f32 %v1768, %v1848
    %v1881 = vadd.f32 %v1769, %v1849
    %v1882 = vadd.f32 %v1770, %v1850
    %v1883 = vadd.f32 %v1771, %v1851
    %v1884 = vadd.f32 %v1772, %v1852
    %v1885 = vadd.f32 %v1773, %v1853
    %v1886 = vadd.f32 %v1774, %v1854
    %v1887 = vadd.f32 %v1775, %v1855
    %v1888 = vadd.f32 %v1776, %v1856
    %v1889 = vadd.f32 %v1777, %v1857
    %v1890 = vadd.f32 %v1778, %v1858
    %v1891 = vadd.f32 %v1779, %v1859
    %v1892 = vadd.f32 %v1780, %v1860
    %v1893 = vadd.f32 %v1781, %v1861
    %v1894 = vadd.f32 %v1782, %v1862
    %v1895 = vadd.f32 %v1783, %v1863
    %v1896 = vadd.f32 %v1784, %v1864
    %v1897 = vadd.f32 %v1785, %v1865
    %v1898 = vadd.f32 %v1786, %v1866
    %v1899 = vadd.f32 %v1787, %v1867
    %1900 = vset.pattern.permute.xlu0 3
    %1901 = vperm.xlu0 %1900, %v1580
    %v1902 = vpop.permute.xlu0 %1901
    %1904 = vset.pattern.permute.xlu0 3
    %1905 = vperm.xlu0 %1904, %v1581
    %v1906 = vpop.permute.xlu0 %1905
    %1908 = vset.pattern.permute.xlu0 3
    %1909 = vperm.xlu0 %1908, %v1582
    %v1910 = vpop.permute.xlu0 %1909
    %1912 = vset.pattern.permute.xlu0 3
    %1913 = vperm.xlu0 %1912, %v1583
    %v1914 = vpop.permute.xlu0 %1913
    %1916 = vset.pattern.permute.xlu0 3
    %1917 = vperm.xlu0 %1916, %v1584
    %v1918 = vpop.permute.xlu0 %1917
    %1920 = vset.pattern.permute.xlu0 3
    %1921 = vperm.xlu0 %1920, %v1585
    %v1922 = vpop.permute.xlu0 %1921
    %1924 = vset.pattern.permute.xlu0 3
    %1925 = vperm.xlu0 %1924, %v1586
    %v1926 = vpop.permute.xlu0 %1925
    %1928 = vset.pattern.permute.xlu0 3
    %1929 = vperm.xlu0 %1928, %v1587
    %v1930 = vpop.permute.xlu0 %1929
    %v1932 = vlaneseq
    %v1933 = vshrl.u32 %v1932, 7
    %v1934 = vsub.s32 3, %v1933
    %v1935 = vrot.slane %v1564, %v1934
    %v1936 = vlaneseq
    %v1937 = vshrl.u32 %v1936, 7
    %v1938 = vsub.s32 3, %v1937
    %v1939 = vrot.slane %v1565, %v1938
    %v1940 = vlaneseq
    %v1941 = vshrl.u32 %v1940, 7
    %v1942 = vsub.s32 3, %v1941
    %v1943 = vrot.slane %v1566, %v1942
    %v1944 = vlaneseq
    %v1945 = vshrl.u32 %v1944, 7
    %v1946 = vsub.s32 3, %v1945
    %v1947 = vrot.slane %v1567, %v1946
    %v1948 = vmul.f32 %v1902, %v1935
    %v1949 = vmul.f32 %v1902, %v1939
    %v1950 = vmul.f32 %v1902, %v1943
    %v1951 = vmul.f32 %v1902, %v1947
    %v1952 = vmul.f32 %v1906, %v1935
    %v1953 = vmul.f32 %v1906, %v1939
    %v1954 = vmul.f32 %v1906, %v1943
    %v1955 = vmul.f32 %v1906, %v1947
    %v1956 = vmul.f32 %v1910, %v1935
    %v1957 = vmul.f32 %v1910, %v1939
    %v1958 = vmul.f32 %v1910, %v1943
    %v1959 = vmul.f32 %v1910, %v1947
    %v1960 = vmul.f32 %v1914, %v1935
    %v1961 = vmul.f32 %v1914, %v1939
    %v1962 = vmul.f32 %v1914, %v1943
    %v1963 = vmul.f32 %v1914, %v1947
    %v1964 = vmul.f32 %v1918, %v1935
    %v1965 = vmul.f32 %v1918, %v1939
    %v1966 = vmul.f32 %v1918, %v1943
    %v1967 = vmul.f32 %v1918, %v1947
    %v1968 = vmul.f32 %v1922, %v1935
    %v1969 = vmul.f32 %v1922, %v1939
    %v1970 = vmul.f32 %v1922, %v1943
    %v1971 = vmul.f32 %v1922, %v1947
    %v1972 = vmul.f32 %v1926, %v1935
    %v1973 = vmul.f32 %v1926, %v1939
    %v1974 = vmul.f32 %v1926, %v1943
    %v1975 = vmul.f32 %v1926, %v1947
    %v1976 = vmul.f32 %v1930, %v1935
    %v1977 = vmul.f32 %v1930, %v1939
    %v1978 = vmul.f32 %v1930, %v1943
    %v1979 = vmul.f32 %v1930, %v1947
    %v1980 = vadd.f32 %v1868, %v1948
    %v1981 = vadd.f32 %v1869, %v1949
    %v1982 = vadd.f32 %v1870, %v1950
    %v1983 = vadd.f32 %v1871, %v1951
    %v1984 = vadd.f32 %v1872, %v1952
    %v1985 = vadd.f32 %v1873, %v1953
    %v1986 = vadd.f32 %v1874, %v1954
    %v1987 = vadd.f32 %v1875, %v1955
    %v1988 = vadd.f32 %v1876, %v1956
    %v1989 = vadd.f32 %v1877, %v1957
    %v1990 = vadd.f32 %v1878, %v1958
    %v1991 = vadd.f32 %v1879, %v1959
    %v1992 = vadd.f32 %v1880, %v1960
    %v1993 = vadd.f32 %v1881, %v1961
    %v1994 = vadd.f32 %v1882, %v1962
    %v1995 = vadd.f32 %v1883, %v1963
    %v1996 = vadd.f32 %v1884, %v1964
    %v1997 = vadd.f32 %v1885, %v1965
    %v1998 = vadd.f32 %v1886, %v1966
    %v1999 = vadd.f32 %v1887, %v1967
    %v2000 = vadd.f32 %v1888, %v1968
    %v2001 = vadd.f32 %v1889, %v1969
    %v2002 = vadd.f32 %v1890, %v1970
    %v2003 = vadd.f32 %v1891, %v1971
    %v2004 = vadd.f32 %v1892, %v1972
    %v2005 = vadd.f32 %v1893, %v1973
    %v2006 = vadd.f32 %v1894, %v1974
    %v2007 = vadd.f32 %v1895, %v1975
    %v2008 = vadd.f32 %v1896, %v1976
    %v2009 = vadd.f32 %v1897, %v1977
    %v2010 = vadd.f32 %v1898, %v1978
    %v2011 = vadd.f32 %v1899, %v1979
    %2012 = vset.pattern.permute.xlu0 4
    %2013 = vperm.xlu0 %2012, %v1580
    %v2014 = vpop.permute.xlu0 %2013
    %2016 = vset.pattern.permute.xlu0 4
    %2017 = vperm.xlu0 %2016, %v1581
    %v2018 = vpop.permute.xlu0 %2017
    %2020 = vset.pattern.permute.xlu0 4
    %2021 = vperm.xlu0 %2020, %v1582
    %v2022 = vpop.permute.xlu0 %2021
    %2024 = vset.pattern.permute.xlu0 4
    %2025 = vperm.xlu0 %2024, %v1583
    %v2026 = vpop.permute.xlu0 %2025
    %2028 = vset.pattern.permute.xlu0 4
    %2029 = vperm.xlu0 %2028, %v1584
    %v2030 = vpop.permute.xlu0 %2029
    %2032 = vset.pattern.permute.xlu0 4
    %2033 = vperm.xlu0 %2032, %v1585
    %v2034 = vpop.permute.xlu0 %2033
    %2036 = vset.pattern.permute.xlu0 4
    %2037 = vperm.xlu0 %2036, %v1586
    %v2038 = vpop.permute.xlu0 %2037
    %2040 = vset.pattern.permute.xlu0 4
    %2041 = vperm.xlu0 %2040, %v1587
    %v2042 = vpop.permute.xlu0 %2041
    %v2044 = vlaneseq
    %v2045 = vshrl.u32 %v2044, 7
    %v2046 = vsub.s32 4, %v2045
    %v2047 = vrot.slane %v1564, %v2046
    %v2048 = vlaneseq
    %v2049 = vshrl.u32 %v2048, 7
    %v2050 = vsub.s32 4, %v2049
    %v2051 = vrot.slane %v1565, %v2050
    %v2052 = vlaneseq
    %v2053 = vshrl.u32 %v2052, 7
    %v2054 = vsub.s32 4, %v2053
    %v2055 = vrot.slane %v1566, %v2054
    %v2056 = vlaneseq
    %v2057 = vshrl.u32 %v2056, 7
    %v2058 = vsub.s32 4, %v2057
    %v2059 = vrot.slane %v1567, %v2058
    %v2060 = vmul.f32 %v2014, %v2047
    %v2061 = vmul.f32 %v2014, %v2051
    %v2062 = vmul.f32 %v2014, %v2055
    %v2063 = vmul.f32 %v2014, %v2059
    %v2064 = vmul.f32 %v2018, %v2047
    %v2065 = vmul.f32 %v2018, %v2051
    %v2066 = vmul.f32 %v2018, %v2055
    %v2067 = vmul.f32 %v2018, %v2059
    %v2068 = vmul.f32 %v2022, %v2047
    %v2069 = vmul.f32 %v2022, %v2051
    %v2070 = vmul.f32 %v2022, %v2055
    %v2071 = vmul.f32 %v2022, %v2059
    %v2072 = vmul.f32 %v2026, %v2047
    %v2073 = vmul.f32 %v2026, %v2051
    %v2074 = vmul.f32 %v2026, %v2055
    %v2075 = vmul.f32 %v2026, %v2059
    %v2076 = vmul.f32 %v2030, %v2047
    %v2077 = vmul.f32 %v2030, %v2051
    %v2078 = vmul.f32 %v2030, %v2055
    %v2079 = vmul.f32 %v2030, %v2059
    %v2080 = vmul.f32 %v2034, %v2047
    %v2081 = vmul.f32 %v2034, %v2051
    %v2082 = vmul.f32 %v2034, %v2055
    %v2083 = vmul.f32 %v2034, %v2059
    %v2084 = vmul.f32 %v2038, %v2047
    %v2085 = vmul.f32 %v2038, %v2051
    %v2086 = vmul.f32 %v2038, %v2055
    %v2087 = vmul.f32 %v2038, %v2059
    %v2088 = vmul.f32 %v2042, %v2047
    %v2089 = vmul.f32 %v2042, %v2051
    %v2090 = vmul.f32 %v2042, %v2055
    %v2091 = vmul.f32 %v2042, %v2059
    %v2092 = vadd.f32 %v1980, %v2060
    %v2093 = vadd.f32 %v1981, %v2061
    %v2094 = vadd.f32 %v1982, %v2062
    %v2095 = vadd.f32 %v1983, %v2063
    %v2096 = vadd.f32 %v1984, %v2064
    %v2097 = vadd.f32 %v1985, %v2065
    %v2098 = vadd.f32 %v1986, %v2066
    %v2099 = vadd.f32 %v1987, %v2067
    %v2100 = vadd.f32 %v1988, %v2068
    %v2101 = vadd.f32 %v1989, %v2069
    %v2102 = vadd.f32 %v1990, %v2070
    %v2103 = vadd.f32 %v1991, %v2071
    %v2104 = vadd.f32 %v1992, %v2072
    %v2105 = vadd.f32 %v1993, %v2073
    %v2106 = vadd.f32 %v1994, %v2074
    %v2107 = vadd.f32 %v1995, %v2075
    %v2108 = vadd.f32 %v1996, %v2076
    %v2109 = vadd.f32 %v1997, %v2077
    %v2110 = vadd.f32 %v1998, %v2078
    %v2111 = vadd.f32 %v1999, %v2079
    %v2112 = vadd.f32 %v2000, %v2080
    %v2113 = vadd.f32 %v2001, %v2081
    %v2114 = vadd.f32 %v2002, %v2082
    %v2115 = vadd.f32 %v2003, %v2083
    %v2116 = vadd.f32 %v2004, %v2084
    %v2117 = vadd.f32 %v2005, %v2085
    %v2118 = vadd.f32 %v2006, %v2086
    %v2119 = vadd.f32 %v2007, %v2087
    %v2120 = vadd.f32 %v2008, %v2088
    %v2121 = vadd.f32 %v2009, %v2089
    %v2122 = vadd.f32 %v2010, %v2090
    %v2123 = vadd.f32 %v2011, %v2091
    %2124 = vset.pattern.permute.xlu0 5
    %2125 = vperm.xlu0 %2124, %v1580
    %v2126 = vpop.permute.xlu0 %2125
    %2128 = vset.pattern.permute.xlu0 5
    %2129 = vperm.xlu0 %2128, %v1581
    %v2130 = vpop.permute.xlu0 %2129
    %2132 = vset.pattern.permute.xlu0 5
    %2133 = vperm.xlu0 %2132, %v1582
    %v2134 = vpop.permute.xlu0 %2133
    %2136 = vset.pattern.permute.xlu0 5
    %2137 = vperm.xlu0 %2136, %v1583
    %v2138 = vpop.permute.xlu0 %2137
    %2140 = vset.pattern.permute.xlu0 5
    %2141 = vperm.xlu0 %2140, %v1584
    %v2142 = vpop.permute.xlu0 %2141
    %2144 = vset.pattern.permute.xlu0 5
    %2145 = vperm.xlu0 %2144, %v1585
    %v2146 = vpop.permute.xlu0 %2145
    %2148 = vset.pattern.permute.xlu0 5
    %2149 = vperm.xlu0 %2148, %v1586
    %v2150 = vpop.permute.xlu0 %2149
    %2152 = vset.pattern.permute.xlu0 5
    %2153 = vperm.xlu0 %2152, %v1587
    %v2154 = vpop.permute.xlu0 %2153
    %v2156 = vlaneseq
    %v2157 = vshrl.u32 %v2156, 7
    %v2158 = vsub.s32 5, %v2157
    %v2159 = vrot.slane %v1564, %v2158
    %v2160 = vlaneseq
    %v2161 = vshrl.u32 %v2160, 7
    %v2162 = vsub.s32 5, %v2161
    %v2163 = vrot.slane %v1565, %v2162
    %v2164 = vlaneseq
    %v2165 = vshrl.u32 %v2164, 7
    %v2166 = vsub.s32 5, %v2165
    %v2167 = vrot.slane %v1566, %v2166
    %v2168 = vlaneseq
    %v2169 = vshrl.u32 %v2168, 7
    %v2170 = vsub.s32 5, %v2169
    %v2171 = vrot.slane %v1567, %v2170
    %v2172 = vmul.f32 %v2126, %v2159
    %v2173 = vmul.f32 %v2126, %v2163
    %v2174 = vmul.f32 %v2126, %v2167
    %v2175 = vmul.f32 %v2126, %v2171
    %v2176 = vmul.f32 %v2130, %v2159
    %v2177 = vmul.f32 %v2130, %v2163
    %v2178 = vmul.f32 %v2130, %v2167
    %v2179 = vmul.f32 %v2130, %v2171
    %v2180 = vmul.f32 %v2134, %v2159
    %v2181 = vmul.f32 %v2134, %v2163
    %v2182 = vmul.f32 %v2134, %v2167
    %v2183 = vmul.f32 %v2134, %v2171
    %v2184 = vmul.f32 %v2138, %v2159
    %v2185 = vmul.f32 %v2138, %v2163
    %v2186 = vmul.f32 %v2138, %v2167
    %v2187 = vmul.f32 %v2138, %v2171
    %v2188 = vmul.f32 %v2142, %v2159
    %v2189 = vmul.f32 %v2142, %v2163
    %v2190 = vmul.f32 %v2142, %v2167
    %v2191 = vmul.f32 %v2142, %v2171
    %v2192 = vmul.f32 %v2146, %v2159
    %v2193 = vmul.f32 %v2146, %v2163
    %v2194 = vmul.f32 %v2146, %v2167
    %v2195 = vmul.f32 %v2146, %v2171
    %v2196 = vmul.f32 %v2150, %v2159
    %v2197 = vmul.f32 %v2150, %v2163
    %v2198 = vmul.f32 %v2150, %v2167
    %v2199 = vmul.f32 %v2150, %v2171
    %v2200 = vmul.f32 %v2154, %v2159
    %v2201 = vmul.f32 %v2154, %v2163
    %v2202 = vmul.f32 %v2154, %v2167
    %v2203 = vmul.f32 %v2154, %v2171
    %v2204 = vadd.f32 %v2092, %v2172
    %v2205 = vadd.f32 %v2093, %v2173
    %v2206 = vadd.f32 %v2094, %v2174
    %v2207 = vadd.f32 %v2095, %v2175
    %v2208 = vadd.f32 %v2096, %v2176
    %v2209 = vadd.f32 %v2097, %v2177
    %v2210 = vadd.f32 %v2098, %v2178
    %v2211 = vadd.f32 %v2099, %v2179
    %v2212 = vadd.f32 %v2100, %v2180
    %v2213 = vadd.f32 %v2101, %v2181
    %v2214 = vadd.f32 %v2102, %v2182
    %v2215 = vadd.f32 %v2103, %v2183
    %v2216 = vadd.f32 %v2104, %v2184
    %v2217 = vadd.f32 %v2105, %v2185
    %v2218 = vadd.f32 %v2106, %v2186
    %v2219 = vadd.f32 %v2107, %v2187
    %v2220 = vadd.f32 %v2108, %v2188
    %v2221 = vadd.f32 %v2109, %v2189
    %v2222 = vadd.f32 %v2110, %v2190
    %v2223 = vadd.f32 %v2111, %v2191
    %v2224 = vadd.f32 %v2112, %v2192
    %v2225 = vadd.f32 %v2113, %v2193
    %v2226 = vadd.f32 %v2114, %v2194
    %v2227 = vadd.f32 %v2115, %v2195
    %v2228 = vadd.f32 %v2116, %v2196
    %v2229 = vadd.f32 %v2117, %v2197
    %v2230 = vadd.f32 %v2118, %v2198
    %v2231 = vadd.f32 %v2119, %v2199
    %v2232 = vadd.f32 %v2120, %v2200
    %v2233 = vadd.f32 %v2121, %v2201
    %v2234 = vadd.f32 %v2122, %v2202
    %v2235 = vadd.f32 %v2123, %v2203
    %2236 = vset.pattern.permute.xlu0 6
    %2237 = vperm.xlu0 %2236, %v1580
    %v2238 = vpop.permute.xlu0 %2237
    %2240 = vset.pattern.permute.xlu0 6
    %2241 = vperm.xlu0 %2240, %v1581
    %v2242 = vpop.permute.xlu0 %2241
    %2244 = vset.pattern.permute.xlu0 6
    %2245 = vperm.xlu0 %2244, %v1582
    %v2246 = vpop.permute.xlu0 %2245
    %2248 = vset.pattern.permute.xlu0 6
    %2249 = vperm.xlu0 %2248, %v1583
    %v2250 = vpop.permute.xlu0 %2249
    %2252 = vset.pattern.permute.xlu0 6
    %2253 = vperm.xlu0 %2252, %v1584
    %v2254 = vpop.permute.xlu0 %2253
    %2256 = vset.pattern.permute.xlu0 6
    %2257 = vperm.xlu0 %2256, %v1585
    %v2258 = vpop.permute.xlu0 %2257
    %2260 = vset.pattern.permute.xlu0 6
    %2261 = vperm.xlu0 %2260, %v1586
    %v2262 = vpop.permute.xlu0 %2261
    %2264 = vset.pattern.permute.xlu0 6
    %2265 = vperm.xlu0 %2264, %v1587
    %v2266 = vpop.permute.xlu0 %2265
    %v2268 = vlaneseq
    %v2269 = vshrl.u32 %v2268, 7
    %v2270 = vsub.s32 6, %v2269
    %v2271 = vrot.slane %v1564, %v2270
    %v2272 = vlaneseq
    %v2273 = vshrl.u32 %v2272, 7
    %v2274 = vsub.s32 6, %v2273
    %v2275 = vrot.slane %v1565, %v2274
    %v2276 = vlaneseq
    %v2277 = vshrl.u32 %v2276, 7
    %v2278 = vsub.s32 6, %v2277
    %v2279 = vrot.slane %v1566, %v2278
    %v2280 = vlaneseq
    %v2281 = vshrl.u32 %v2280, 7
    %v2282 = vsub.s32 6, %v2281
    %v2283 = vrot.slane %v1567, %v2282
    %v2284 = vmul.f32 %v2238, %v2271
    %v2285 = vmul.f32 %v2238, %v2275
    %v2286 = vmul.f32 %v2238, %v2279
    %v2287 = vmul.f32 %v2238, %v2283
    %v2288 = vmul.f32 %v2242, %v2271
    %v2289 = vmul.f32 %v2242, %v2275
    %v2290 = vmul.f32 %v2242, %v2279
    %v2291 = vmul.f32 %v2242, %v2283
    %v2292 = vmul.f32 %v2246, %v2271
    %v2293 = vmul.f32 %v2246, %v2275
    %v2294 = vmul.f32 %v2246, %v2279
    %v2295 = vmul.f32 %v2246, %v2283
    %v2296 = vmul.f32 %v2250, %v2271
    %v2297 = vmul.f32 %v2250, %v2275
    %v2298 = vmul.f32 %v2250, %v2279
    %v2299 = vmul.f32 %v2250, %v2283
    %v2300 = vmul.f32 %v2254, %v2271
    %v2301 = vmul.f32 %v2254, %v2275
    %v2302 = vmul.f32 %v2254, %v2279
    %v2303 = vmul.f32 %v2254, %v2283
    %v2304 = vmul.f32 %v2258, %v2271
    %v2305 = vmul.f32 %v2258, %v2275
    %v2306 = vmul.f32 %v2258, %v2279
    %v2307 = vmul.f32 %v2258, %v2283
    %v2308 = vmul.f32 %v2262, %v2271
    %v2309 = vmul.f32 %v2262, %v2275
    %v2310 = vmul.f32 %v2262, %v2279
    %v2311 = vmul.f32 %v2262, %v2283
    %v2312 = vmul.f32 %v2266, %v2271
    %v2313 = vmul.f32 %v2266, %v2275
    %v2314 = vmul.f32 %v2266, %v2279
    %v2315 = vmul.f32 %v2266, %v2283
    %v2316 = vadd.f32 %v2204, %v2284
    %v2317 = vadd.f32 %v2205, %v2285
    %v2318 = vadd.f32 %v2206, %v2286
    %v2319 = vadd.f32 %v2207, %v2287
    %v2320 = vadd.f32 %v2208, %v2288
    %v2321 = vadd.f32 %v2209, %v2289
    %v2322 = vadd.f32 %v2210, %v2290
    %v2323 = vadd.f32 %v2211, %v2291
    %v2324 = vadd.f32 %v2212, %v2292
    %v2325 = vadd.f32 %v2213, %v2293
    %v2326 = vadd.f32 %v2214, %v2294
    %v2327 = vadd.f32 %v2215, %v2295
    %v2328 = vadd.f32 %v2216, %v2296
    %v2329 = vadd.f32 %v2217, %v2297
    %v2330 = vadd.f32 %v2218, %v2298
    %v2331 = vadd.f32 %v2219, %v2299
    %v2332 = vadd.f32 %v2220, %v2300
    %v2333 = vadd.f32 %v2221, %v2301
    %v2334 = vadd.f32 %v2222, %v2302
    %v2335 = vadd.f32 %v2223, %v2303
    %v2336 = vadd.f32 %v2224, %v2304
    %v2337 = vadd.f32 %v2225, %v2305
    %v2338 = vadd.f32 %v2226, %v2306
    %v2339 = vadd.f32 %v2227, %v2307
    %v2340 = vadd.f32 %v2228, %v2308
    %v2341 = vadd.f32 %v2229, %v2309
    %v2342 = vadd.f32 %v2230, %v2310
    %v2343 = vadd.f32 %v2231, %v2311
    %v2344 = vadd.f32 %v2232, %v2312
    %v2345 = vadd.f32 %v2233, %v2313
    %v2346 = vadd.f32 %v2234, %v2314
    %v2347 = vadd.f32 %v2235, %v2315
    %2348 = vset.pattern.permute.xlu0 7
    %2349 = vperm.xlu0 %2348, %v1580
    %v2350 = vpop.permute.xlu0 %2349
    %2352 = vset.pattern.permute.xlu0 7
    %2353 = vperm.xlu0 %2352, %v1581
    %v2354 = vpop.permute.xlu0 %2353
    %2356 = vset.pattern.permute.xlu0 7
    %2357 = vperm.xlu0 %2356, %v1582
    %v2358 = vpop.permute.xlu0 %2357
    %2360 = vset.pattern.permute.xlu0 7
    %2361 = vperm.xlu0 %2360, %v1583
    %v2362 = vpop.permute.xlu0 %2361
    %2364 = vset.pattern.permute.xlu0 7
    %2365 = vperm.xlu0 %2364, %v1584
    %v2366 = vpop.permute.xlu0 %2365
    %2368 = vset.pattern.permute.xlu0 7
    %2369 = vperm.xlu0 %2368, %v1585
    %v2370 = vpop.permute.xlu0 %2369
    %2372 = vset.pattern.permute.xlu0 7
    %2373 = vperm.xlu0 %2372, %v1586
    %v2374 = vpop.permute.xlu0 %2373
    %2376 = vset.pattern.permute.xlu0 7
    %2377 = vperm.xlu0 %2376, %v1587
    %v2378 = vpop.permute.xlu0 %2377
    %v2380 = vlaneseq
    %v2381 = vshrl.u32 %v2380, 7
    %v2382 = vsub.s32 7, %v2381
    %v2383 = vrot.slane %v1564, %v2382
    %v2384 = vlaneseq
    %v2385 = vshrl.u32 %v2384, 7
    %v2386 = vsub.s32 7, %v2385
    %v2387 = vrot.slane %v1565, %v2386
    %v2388 = vlaneseq
    %v2389 = vshrl.u32 %v2388, 7
    %v2390 = vsub.s32 7, %v2389
    %v2391 = vrot.slane %v1566, %v2390
    %v2392 = vlaneseq
    %v2393 = vshrl.u32 %v2392, 7
    %v2394 = vsub.s32 7, %v2393
    %v2395 = vrot.slane %v1567, %v2394
    %v2396 = vmul.f32 %v2350, %v2383
    %v2397 = vmul.f32 %v2350, %v2387
    %v2398 = vmul.f32 %v2350, %v2391
    %v2399 = vmul.f32 %v2350, %v2395
    %v2400 = vmul.f32 %v2354, %v2383
    %v2401 = vmul.f32 %v2354, %v2387
    %v2402 = vmul.f32 %v2354, %v2391
    %v2403 = vmul.f32 %v2354, %v2395
    %v2404 = vmul.f32 %v2358, %v2383
    %v2405 = vmul.f32 %v2358, %v2387
    %v2406 = vmul.f32 %v2358, %v2391
    %v2407 = vmul.f32 %v2358, %v2395
    %v2408 = vmul.f32 %v2362, %v2383
    %v2409 = vmul.f32 %v2362, %v2387
    %v2410 = vmul.f32 %v2362, %v2391
    %v2411 = vmul.f32 %v2362, %v2395
    %v2412 = vmul.f32 %v2366, %v2383
    %v2413 = vmul.f32 %v2366, %v2387
    %v2414 = vmul.f32 %v2366, %v2391
    %v2415 = vmul.f32 %v2366, %v2395
    %v2416 = vmul.f32 %v2370, %v2383
    %v2417 = vmul.f32 %v2370, %v2387
    %v2418 = vmul.f32 %v2370, %v2391
    %v2419 = vmul.f32 %v2370, %v2395
    %v2420 = vmul.f32 %v2374, %v2383
    %v2421 = vmul.f32 %v2374, %v2387
    %v2422 = vmul.f32 %v2374, %v2391
    %v2423 = vmul.f32 %v2374, %v2395
    %v2424 = vmul.f32 %v2378, %v2383
    %v2425 = vmul.f32 %v2378, %v2387
    %v2426 = vmul.f32 %v2378, %v2391
    %v2427 = vmul.f32 %v2378, %v2395
    %v2428 = vadd.f32 %v2316, %v2396
    %v2429 = vadd.f32 %v2317, %v2397
    %v2430 = vadd.f32 %v2318, %v2398
    %v2431 = vadd.f32 %v2319, %v2399
    %v2432 = vadd.f32 %v2320, %v2400
    %v2433 = vadd.f32 %v2321, %v2401
    %v2434 = vadd.f32 %v2322, %v2402
    %v2435 = vadd.f32 %v2323, %v2403
    %v2436 = vadd.f32 %v2324, %v2404
    %v2437 = vadd.f32 %v2325, %v2405
    %v2438 = vadd.f32 %v2326, %v2406
    %v2439 = vadd.f32 %v2327, %v2407
    %v2440 = vadd.f32 %v2328, %v2408
    %v2441 = vadd.f32 %v2329, %v2409
    %v2442 = vadd.f32 %v2330, %v2410
    %v2443 = vadd.f32 %v2331, %v2411
    %v2444 = vadd.f32 %v2332, %v2412
    %v2445 = vadd.f32 %v2333, %v2413
    %v2446 = vadd.f32 %v2334, %v2414
    %v2447 = vadd.f32 %v2335, %v2415
    %v2448 = vadd.f32 %v2336, %v2416
    %v2449 = vadd.f32 %v2337, %v2417
    %v2450 = vadd.f32 %v2338, %v2418
    %v2451 = vadd.f32 %v2339, %v2419
    %v2452 = vadd.f32 %v2340, %v2420
    %v2453 = vadd.f32 %v2341, %v2421
    %v2454 = vadd.f32 %v2342, %v2422
    %v2455 = vadd.f32 %v2343, %v2423
    %v2456 = vadd.f32 %v2344, %v2424
    %v2457 = vadd.f32 %v2345, %v2425
    %v2458 = vadd.f32 %v2346, %v2426
    %v2459 = vadd.f32 %v2347, %v2427
    %2460 = vset.pattern.permute.xlu0 8
    %2461 = vperm.xlu0 %2460, %v1580
    %v2462 = vpop.permute.xlu0 %2461
    %2464 = vset.pattern.permute.xlu0 8
    %2465 = vperm.xlu0 %2464, %v1581
    %v2466 = vpop.permute.xlu0 %2465
    %2468 = vset.pattern.permute.xlu0 8
    %2469 = vperm.xlu0 %2468, %v1582
    %v2470 = vpop.permute.xlu0 %2469
    %2472 = vset.pattern.permute.xlu0 8
    %2473 = vperm.xlu0 %2472, %v1583
    %v2474 = vpop.permute.xlu0 %2473
    %2476 = vset.pattern.permute.xlu0 8
    %2477 = vperm.xlu0 %2476, %v1584
    %v2478 = vpop.permute.xlu0 %2477
    %2480 = vset.pattern.permute.xlu0 8
    %2481 = vperm.xlu0 %2480, %v1585
    %v2482 = vpop.permute.xlu0 %2481
    %2484 = vset.pattern.permute.xlu0 8
    %2485 = vperm.xlu0 %2484, %v1586
    %v2486 = vpop.permute.xlu0 %2485
    %2488 = vset.pattern.permute.xlu0 8
    %2489 = vperm.xlu0 %2488, %v1587
    %v2490 = vpop.permute.xlu0 %2489
    %v2492 = vlaneseq
    %v2493 = vshrl.u32 %v2492, 7
    %v2494 = vsub.s32 0, %v2493
    %v2495 = vrot.slane %v1568, %v2494
    %v2496 = vlaneseq
    %v2497 = vshrl.u32 %v2496, 7
    %v2498 = vsub.s32 0, %v2497
    %v2499 = vrot.slane %v1569, %v2498
    %v2500 = vlaneseq
    %v2501 = vshrl.u32 %v2500, 7
    %v2502 = vsub.s32 0, %v2501
    %v2503 = vrot.slane %v1570, %v2502
    %v2504 = vlaneseq
    %v2505 = vshrl.u32 %v2504, 7
    %v2506 = vsub.s32 0, %v2505
    %v2507 = vrot.slane %v1571, %v2506
    %v2508 = vmul.f32 %v2462, %v2495
    %v2509 = vmul.f32 %v2462, %v2499
    %v2510 = vmul.f32 %v2462, %v2503
    %v2511 = vmul.f32 %v2462, %v2507
    %v2512 = vmul.f32 %v2466, %v2495
    %v2513 = vmul.f32 %v2466, %v2499
    %v2514 = vmul.f32 %v2466, %v2503
    %v2515 = vmul.f32 %v2466, %v2507
    %v2516 = vmul.f32 %v2470, %v2495
    %v2517 = vmul.f32 %v2470, %v2499
    %v2518 = vmul.f32 %v2470, %v2503
    %v2519 = vmul.f32 %v2470, %v2507
    %v2520 = vmul.f32 %v2474, %v2495
    %v2521 = vmul.f32 %v2474, %v2499
    %v2522 = vmul.f32 %v2474, %v2503
    %v2523 = vmul.f32 %v2474, %v2507
    %v2524 = vmul.f32 %v2478, %v2495
    %v2525 = vmul.f32 %v2478, %v2499
    %v2526 = vmul.f32 %v2478, %v2503
    %v2527 = vmul.f32 %v2478, %v2507
    %v2528 = vmul.f32 %v2482, %v2495
    %v2529 = vmul.f32 %v2482, %v2499
    %v2530 = vmul.f32 %v2482, %v2503
    %v2531 = vmul.f32 %v2482, %v2507
    %v2532 = vmul.f32 %v2486, %v2495
    %v2533 = vmul.f32 %v2486, %v2499
    %v2534 = vmul.f32 %v2486, %v2503
    %v2535 = vmul.f32 %v2486, %v2507
    %v2536 = vmul.f32 %v2490, %v2495
    %v2537 = vmul.f32 %v2490, %v2499
    %v2538 = vmul.f32 %v2490, %v2503
    %v2539 = vmul.f32 %v2490, %v2507
    %v2540 = vadd.f32 %v2428, %v2508
    %v2541 = vadd.f32 %v2429, %v2509
    %v2542 = vadd.f32 %v2430, %v2510
    %v2543 = vadd.f32 %v2431, %v2511
    %v2544 = vadd.f32 %v2432, %v2512
    %v2545 = vadd.f32 %v2433, %v2513
    %v2546 = vadd.f32 %v2434, %v2514
    %v2547 = vadd.f32 %v2435, %v2515
    %v2548 = vadd.f32 %v2436, %v2516
    %v2549 = vadd.f32 %v2437, %v2517
    %v2550 = vadd.f32 %v2438, %v2518
    %v2551 = vadd.f32 %v2439, %v2519
    %v2552 = vadd.f32 %v2440, %v2520
    %v2553 = vadd.f32 %v2441, %v2521
    %v2554 = vadd.f32 %v2442, %v2522
    %v2555 = vadd.f32 %v2443, %v2523
    %v2556 = vadd.f32 %v2444, %v2524
    %v2557 = vadd.f32 %v2445, %v2525
    %v2558 = vadd.f32 %v2446, %v2526
    %v2559 = vadd.f32 %v2447, %v2527
    %v2560 = vadd.f32 %v2448, %v2528
    %v2561 = vadd.f32 %v2449, %v2529
    %v2562 = vadd.f32 %v2450, %v2530
    %v2563 = vadd.f32 %v2451, %v2531
    %v2564 = vadd.f32 %v2452, %v2532
    %v2565 = vadd.f32 %v2453, %v2533
    %v2566 = vadd.f32 %v2454, %v2534
    %v2567 = vadd.f32 %v2455, %v2535
    %v2568 = vadd.f32 %v2456, %v2536
    %v2569 = vadd.f32 %v2457, %v2537
    %v2570 = vadd.f32 %v2458, %v2538
    %v2571 = vadd.f32 %v2459, %v2539
    %2572 = vset.pattern.permute.xlu0 9
    %2573 = vperm.xlu0 %2572, %v1580
    %v2574 = vpop.permute.xlu0 %2573
    %2576 = vset.pattern.permute.xlu0 9
    %2577 = vperm.xlu0 %2576, %v1581
    %v2578 = vpop.permute.xlu0 %2577
    %2580 = vset.pattern.permute.xlu0 9
    %2581 = vperm.xlu0 %2580, %v1582
    %v2582 = vpop.permute.xlu0 %2581
    %2584 = vset.pattern.permute.xlu0 9
    %2585 = vperm.xlu0 %2584, %v1583
    %v2586 = vpop.permute.xlu0 %2585
    %2588 = vset.pattern.permute.xlu0 9
    %2589 = vperm.xlu0 %2588, %v1584
    %v2590 = vpop.permute.xlu0 %2589
    %2592 = vset.pattern.permute.xlu0 9
    %2593 = vperm.xlu0 %2592, %v1585
    %v2594 = vpop.permute.xlu0 %2593
    %2596 = vset.pattern.permute.xlu0 9
    %2597 = vperm.xlu0 %2596, %v1586
    %v2598 = vpop.permute.xlu0 %2597
    %2600 = vset.pattern.permute.xlu0 9
    %2601 = vperm.xlu0 %2600, %v1587
    %v2602 = vpop.permute.xlu0 %2601
    %v2604 = vlaneseq
    %v2605 = vshrl.u32 %v2604, 7
    %v2606 = vsub.s32 1, %v2605
    %v2607 = vrot.slane %v1568, %v2606
    %v2608 = vlaneseq
    %v2609 = vshrl.u32 %v2608, 7
    %v2610 = vsub.s32 1, %v2609
    %v2611 = vrot.slane %v1569, %v2610
    %v2612 = vlaneseq
    %v2613 = vshrl.u32 %v2612, 7
    %v2614 = vsub.s32 1, %v2613
    %v2615 = vrot.slane %v1570, %v2614
    %v2616 = vlaneseq
    %v2617 = vshrl.u32 %v2616, 7
    %v2618 = vsub.s32 1, %v2617
    %v2619 = vrot.slane %v1571, %v2618
    %v2620 = vmul.f32 %v2574, %v2607
    %v2621 = vmul.f32 %v2574, %v2611
    %v2622 = vmul.f32 %v2574, %v2615
    %v2623 = vmul.f32 %v2574, %v2619
    %v2624 = vmul.f32 %v2578, %v2607
    %v2625 = vmul.f32 %v2578, %v2611
    %v2626 = vmul.f32 %v2578, %v2615
    %v2627 = vmul.f32 %v2578, %v2619
    %v2628 = vmul.f32 %v2582, %v2607
    %v2629 = vmul.f32 %v2582, %v2611
    %v2630 = vmul.f32 %v2582, %v2615
    %v2631 = vmul.f32 %v2582, %v2619
    %v2632 = vmul.f32 %v2586, %v2607
    %v2633 = vmul.f32 %v2586, %v2611
    %v2634 = vmul.f32 %v2586, %v2615
    %v2635 = vmul.f32 %v2586, %v2619
    %v2636 = vmul.f32 %v2590, %v2607
    %v2637 = vmul.f32 %v2590, %v2611
    %v2638 = vmul.f32 %v2590, %v2615
    %v2639 = vmul.f32 %v2590, %v2619
    %v2640 = vmul.f32 %v2594, %v2607
    %v2641 = vmul.f32 %v2594, %v2611
    %v2642 = vmul.f32 %v2594, %v2615
    %v2643 = vmul.f32 %v2594, %v2619
    %v2644 = vmul.f32 %v2598, %v2607
    %v2645 = vmul.f32 %v2598, %v2611
    %v2646 = vmul.f32 %v2598, %v2615
    %v2647 = vmul.f32 %v2598, %v2619
    %v2648 = vmul.f32 %v2602, %v2607
    %v2649 = vmul.f32 %v2602, %v2611
    %v2650 = vmul.f32 %v2602, %v2615
    %v2651 = vmul.f32 %v2602, %v2619
    %v2652 = vadd.f32 %v2540, %v2620
    %v2653 = vadd.f32 %v2541, %v2621
    %v2654 = vadd.f32 %v2542, %v2622
    %v2655 = vadd.f32 %v2543, %v2623
    %v2656 = vadd.f32 %v2544, %v2624
    %v2657 = vadd.f32 %v2545, %v2625
    %v2658 = vadd.f32 %v2546, %v2626
    %v2659 = vadd.f32 %v2547, %v2627
    %v2660 = vadd.f32 %v2548, %v2628
    %v2661 = vadd.f32 %v2549, %v2629
    %v2662 = vadd.f32 %v2550, %v2630
    %v2663 = vadd.f32 %v2551, %v2631
    %v2664 = vadd.f32 %v2552, %v2632
    %v2665 = vadd.f32 %v2553, %v2633
    %v2666 = vadd.f32 %v2554, %v2634
    %v2667 = vadd.f32 %v2555, %v2635
    %v2668 = vadd.f32 %v2556, %v2636
    %v2669 = vadd.f32 %v2557, %v2637
    %v2670 = vadd.f32 %v2558, %v2638
    %v2671 = vadd.f32 %v2559, %v2639
    %v2672 = vadd.f32 %v2560, %v2640
    %v2673 = vadd.f32 %v2561, %v2641
    %v2674 = vadd.f32 %v2562, %v2642
    %v2675 = vadd.f32 %v2563, %v2643
    %v2676 = vadd.f32 %v2564, %v2644
    %v2677 = vadd.f32 %v2565, %v2645
    %v2678 = vadd.f32 %v2566, %v2646
    %v2679 = vadd.f32 %v2567, %v2647
    %v2680 = vadd.f32 %v2568, %v2648
    %v2681 = vadd.f32 %v2569, %v2649
    %v2682 = vadd.f32 %v2570, %v2650
    %v2683 = vadd.f32 %v2571, %v2651
    %2684 = vset.pattern.permute.xlu0 10
    %2685 = vperm.xlu0 %2684, %v1580
    %v2686 = vpop.permute.xlu0 %2685
    %2688 = vset.pattern.permute.xlu0 10
    %2689 = vperm.xlu0 %2688, %v1581
    %v2690 = vpop.permute.xlu0 %2689
    %2692 = vset.pattern.permute.xlu0 10
    %2693 = vperm.xlu0 %2692, %v1582
    %v2694 = vpop.permute.xlu0 %2693
    %2696 = vset.pattern.permute.xlu0 10
    %2697 = vperm.xlu0 %2696, %v1583
    %v2698 = vpop.permute.xlu0 %2697
    %2700 = vset.pattern.permute.xlu0 10
    %2701 = vperm.xlu0 %2700, %v1584
    %v2702 = vpop.permute.xlu0 %2701
    %2704 = vset.pattern.permute.xlu0 10
    %2705 = vperm.xlu0 %2704, %v1585
    %v2706 = vpop.permute.xlu0 %2705
    %2708 = vset.pattern.permute.xlu0 10
    %2709 = vperm.xlu0 %2708, %v1586
    %v2710 = vpop.permute.xlu0 %2709
    %2712 = vset.pattern.permute.xlu0 10
    %2713 = vperm.xlu0 %2712, %v1587
    %v2714 = vpop.permute.xlu0 %2713
    %v2716 = vlaneseq
    %v2717 = vshrl.u32 %v2716, 7
    %v2718 = vsub.s32 2, %v2717
    %v2719 = vrot.slane %v1568, %v2718
    %v2720 = vlaneseq
    %v2721 = vshrl.u32 %v2720, 7
    %v2722 = vsub.s32 2, %v2721
    %v2723 = vrot.slane %v1569, %v2722
    %v2724 = vlaneseq
    %v2725 = vshrl.u32 %v2724, 7
    %v2726 = vsub.s32 2, %v2725
    %v2727 = vrot.slane %v1570, %v2726
    %v2728 = vlaneseq
    %v2729 = vshrl.u32 %v2728, 7
    %v2730 = vsub.s32 2, %v2729
    %v2731 = vrot.slane %v1571, %v2730
    %v2732 = vmul.f32 %v2686, %v2719
    %v2733 = vmul.f32 %v2686, %v2723
    %v2734 = vmul.f32 %v2686, %v2727
    %v2735 = vmul.f32 %v2686, %v2731
    %v2736 = vmul.f32 %v2690, %v2719
    %v2737 = vmul.f32 %v2690, %v2723
    %v2738 = vmul.f32 %v2690, %v2727
    %v2739 = vmul.f32 %v2690, %v2731
    %v2740 = vmul.f32 %v2694, %v2719
    %v2741 = vmul.f32 %v2694, %v2723
    %v2742 = vmul.f32 %v2694, %v2727
    %v2743 = vmul.f32 %v2694, %v2731
    %v2744 = vmul.f32 %v2698, %v2719
    %v2745 = vmul.f32 %v2698, %v2723
    %v2746 = vmul.f32 %v2698, %v2727
    %v2747 = vmul.f32 %v2698, %v2731
    %v2748 = vmul.f32 %v2702, %v2719
    %v2749 = vmul.f32 %v2702, %v2723
    %v2750 = vmul.f32 %v2702, %v2727
    %v2751 = vmul.f32 %v2702, %v2731
    %v2752 = vmul.f32 %v2706, %v2719
    %v2753 = vmul.f32 %v2706, %v2723
    %v2754 = vmul.f32 %v2706, %v2727
    %v2755 = vmul.f32 %v2706, %v2731
    %v2756 = vmul.f32 %v2710, %v2719
    %v2757 = vmul.f32 %v2710, %v2723
    %v2758 = vmul.f32 %v2710, %v2727
    %v2759 = vmul.f32 %v2710, %v2731
    %v2760 = vmul.f32 %v2714, %v2719
    %v2761 = vmul.f32 %v2714, %v2723
    %v2762 = vmul.f32 %v2714, %v2727
    %v2763 = vmul.f32 %v2714, %v2731
    %v2764 = vadd.f32 %v2652, %v2732
    %v2765 = vadd.f32 %v2653, %v2733
    %v2766 = vadd.f32 %v2654, %v2734
    %v2767 = vadd.f32 %v2655, %v2735
    %v2768 = vadd.f32 %v2656, %v2736
    %v2769 = vadd.f32 %v2657, %v2737
    %v2770 = vadd.f32 %v2658, %v2738
    %v2771 = vadd.f32 %v2659, %v2739
    %v2772 = vadd.f32 %v2660, %v2740
    %v2773 = vadd.f32 %v2661, %v2741
    %v2774 = vadd.f32 %v2662, %v2742
    %v2775 = vadd.f32 %v2663, %v2743
    %v2776 = vadd.f32 %v2664, %v2744
    %v2777 = vadd.f32 %v2665, %v2745
    %v2778 = vadd.f32 %v2666, %v2746
    %v2779 = vadd.f32 %v2667, %v2747
    %v2780 = vadd.f32 %v2668, %v2748
    %v2781 = vadd.f32 %v2669, %v2749
    %v2782 = vadd.f32 %v2670, %v2750
    %v2783 = vadd.f32 %v2671, %v2751
    %v2784 = vadd.f32 %v2672, %v2752
    %v2785 = vadd.f32 %v2673, %v2753
    %v2786 = vadd.f32 %v2674, %v2754
    %v2787 = vadd.f32 %v2675, %v2755
    %v2788 = vadd.f32 %v2676, %v2756
    %v2789 = vadd.f32 %v2677, %v2757
    %v2790 = vadd.f32 %v2678, %v2758
    %v2791 = vadd.f32 %v2679, %v2759
    %v2792 = vadd.f32 %v2680, %v2760
    %v2793 = vadd.f32 %v2681, %v2761
    %v2794 = vadd.f32 %v2682, %v2762
    %v2795 = vadd.f32 %v2683, %v2763
    %2796 = vset.pattern.permute.xlu0 11
    %2797 = vperm.xlu0 %2796, %v1580
    %v2798 = vpop.permute.xlu0 %2797
    %2800 = vset.pattern.permute.xlu0 11
    %2801 = vperm.xlu0 %2800, %v1581
    %v2802 = vpop.permute.xlu0 %2801
    %2804 = vset.pattern.permute.xlu0 11
    %2805 = vperm.xlu0 %2804, %v1582
    %v2806 = vpop.permute.xlu0 %2805
    %2808 = vset.pattern.permute.xlu0 11
    %2809 = vperm.xlu0 %2808, %v1583
    %v2810 = vpop.permute.xlu0 %2809
    %2812 = vset.pattern.permute.xlu0 11
    %2813 = vperm.xlu0 %2812, %v1584
    %v2814 = vpop.permute.xlu0 %2813
    %2816 = vset.pattern.permute.xlu0 11
    %2817 = vperm.xlu0 %2816, %v1585
    %v2818 = vpop.permute.xlu0 %2817
    %2820 = vset.pattern.permute.xlu0 11
    %2821 = vperm.xlu0 %2820, %v1586
    %v2822 = vpop.permute.xlu0 %2821
    %2824 = vset.pattern.permute.xlu0 11
    %2825 = vperm.xlu0 %2824, %v1587
    %v2826 = vpop.permute.xlu0 %2825
    %v2828 = vlaneseq
    %v2829 = vshrl.u32 %v2828, 7
    %v2830 = vsub.s32 3, %v2829
    %v2831 = vrot.slane %v1568, %v2830
    %v2832 = vlaneseq
    %v2833 = vshrl.u32 %v2832, 7
    %v2834 = vsub.s32 3, %v2833
    %v2835 = vrot.slane %v1569, %v2834
    %v2836 = vlaneseq
    %v2837 = vshrl.u32 %v2836, 7
    %v2838 = vsub.s32 3, %v2837
    %v2839 = vrot.slane %v1570, %v2838
    %v2840 = vlaneseq
    %v2841 = vshrl.u32 %v2840, 7
    %v2842 = vsub.s32 3, %v2841
    %v2843 = vrot.slane %v1571, %v2842
    %v2844 = vmul.f32 %v2798, %v2831
    %v2845 = vmul.f32 %v2798, %v2835
    %v2846 = vmul.f32 %v2798, %v2839
    %v2847 = vmul.f32 %v2798, %v2843
    %v2848 = vmul.f32 %v2802, %v2831
    %v2849 = vmul.f32 %v2802, %v2835
    %v2850 = vmul.f32 %v2802, %v2839
    %v2851 = vmul.f32 %v2802, %v2843
    %v2852 = vmul.f32 %v2806, %v2831
    %v2853 = vmul.f32 %v2806, %v2835
    %v2854 = vmul.f32 %v2806, %v2839
    %v2855 = vmul.f32 %v2806, %v2843
    %v2856 = vmul.f32 %v2810, %v2831
    %v2857 = vmul.f32 %v2810, %v2835
    %v2858 = vmul.f32 %v2810, %v2839
    %v2859 = vmul.f32 %v2810, %v2843
    %v2860 = vmul.f32 %v2814, %v2831
    %v2861 = vmul.f32 %v2814, %v2835
    %v2862 = vmul.f32 %v2814, %v2839
    %v2863 = vmul.f32 %v2814, %v2843
    %v2864 = vmul.f32 %v2818, %v2831
    %v2865 = vmul.f32 %v2818, %v2835
    %v2866 = vmul.f32 %v2818, %v2839
    %v2867 = vmul.f32 %v2818, %v2843
    %v2868 = vmul.f32 %v2822, %v2831
    %v2869 = vmul.f32 %v2822, %v2835
    %v2870 = vmul.f32 %v2822, %v2839
    %v2871 = vmul.f32 %v2822, %v2843
    %v2872 = vmul.f32 %v2826, %v2831
    %v2873 = vmul.f32 %v2826, %v2835
    %v2874 = vmul.f32 %v2826, %v2839
    %v2875 = vmul.f32 %v2826, %v2843
    %v2876 = vadd.f32 %v2764, %v2844
    %v2877 = vadd.f32 %v2765, %v2845
    %v2878 = vadd.f32 %v2766, %v2846
    %v2879 = vadd.f32 %v2767, %v2847
    %v2880 = vadd.f32 %v2768, %v2848
    %v2881 = vadd.f32 %v2769, %v2849
    %v2882 = vadd.f32 %v2770, %v2850
    %v2883 = vadd.f32 %v2771, %v2851
    %v2884 = vadd.f32 %v2772, %v2852
    %v2885 = vadd.f32 %v2773, %v2853
    %v2886 = vadd.f32 %v2774, %v2854
    %v2887 = vadd.f32 %v2775, %v2855
    %v2888 = vadd.f32 %v2776, %v2856
    %v2889 = vadd.f32 %v2777, %v2857
    %v2890 = vadd.f32 %v2778, %v2858
    %v2891 = vadd.f32 %v2779, %v2859
    %v2892 = vadd.f32 %v2780, %v2860
    %v2893 = vadd.f32 %v2781, %v2861
    %v2894 = vadd.f32 %v2782, %v2862
    %v2895 = vadd.f32 %v2783, %v2863
    %v2896 = vadd.f32 %v2784, %v2864
    %v2897 = vadd.f32 %v2785, %v2865
    %v2898 = vadd.f32 %v2786, %v2866
    %v2899 = vadd.f32 %v2787, %v2867
    %v2900 = vadd.f32 %v2788, %v2868
    %v2901 = vadd.f32 %v2789, %v2869
    %v2902 = vadd.f32 %v2790, %v2870
    %v2903 = vadd.f32 %v2791, %v2871
    %v2904 = vadd.f32 %v2792, %v2872
    %v2905 = vadd.f32 %v2793, %v2873
    %v2906 = vadd.f32 %v2794, %v2874
    %v2907 = vadd.f32 %v2795, %v2875
    %2908 = vset.pattern.permute.xlu0 12
    %2909 = vperm.xlu0 %2908, %v1580
    %v2910 = vpop.permute.xlu0 %2909
    %2912 = vset.pattern.permute.xlu0 12
    %2913 = vperm.xlu0 %2912, %v1581
    %v2914 = vpop.permute.xlu0 %2913
    %2916 = vset.pattern.permute.xlu0 12
    %2917 = vperm.xlu0 %2916, %v1582
    %v2918 = vpop.permute.xlu0 %2917
    %2920 = vset.pattern.permute.xlu0 12
    %2921 = vperm.xlu0 %2920, %v1583
    %v2922 = vpop.permute.xlu0 %2921
    %2924 = vset.pattern.permute.xlu0 12
    %2925 = vperm.xlu0 %2924, %v1584
    %v2926 = vpop.permute.xlu0 %2925
    %2928 = vset.pattern.permute.xlu0 12
    %2929 = vperm.xlu0 %2928, %v1585
    %v2930 = vpop.permute.xlu0 %2929
    %2932 = vset.pattern.permute.xlu0 12
    %2933 = vperm.xlu0 %2932, %v1586
    %v2934 = vpop.permute.xlu0 %2933
    %2936 = vset.pattern.permute.xlu0 12
    %2937 = vperm.xlu0 %2936, %v1587
    %v2938 = vpop.permute.xlu0 %2937
    %v2940 = vlaneseq
    %v2941 = vshrl.u32 %v2940, 7
    %v2942 = vsub.s32 4, %v2941
    %v2943 = vrot.slane %v1568, %v2942
    %v2944 = vlaneseq
    %v2945 = vshrl.u32 %v2944, 7
    %v2946 = vsub.s32 4, %v2945
    %v2947 = vrot.slane %v1569, %v2946
    %v2948 = vlaneseq
    %v2949 = vshrl.u32 %v2948, 7
    %v2950 = vsub.s32 4, %v2949
    %v2951 = vrot.slane %v1570, %v2950
    %v2952 = vlaneseq
    %v2953 = vshrl.u32 %v2952, 7
    %v2954 = vsub.s32 4, %v2953
    %v2955 = vrot.slane %v1571, %v2954
    %v2956 = vmul.f32 %v2910, %v2943
    %v2957 = vmul.f32 %v2910, %v2947
    %v2958 = vmul.f32 %v2910, %v2951
    %v2959 = vmul.f32 %v2910, %v2955
    %v2960 = vmul.f32 %v2914, %v2943
    %v2961 = vmul.f32 %v2914, %v2947
    %v2962 = vmul.f32 %v2914, %v2951
    %v2963 = vmul.f32 %v2914, %v2955
    %v2964 = vmul.f32 %v2918, %v2943
    %v2965 = vmul.f32 %v2918, %v2947
    %v2966 = vmul.f32 %v2918, %v2951
    %v2967 = vmul.f32 %v2918, %v2955
    %v2968 = vmul.f32 %v2922, %v2943
    %v2969 = vmul.f32 %v2922, %v2947
    %v2970 = vmul.f32 %v2922, %v2951
    %v2971 = vmul.f32 %v2922, %v2955
    %v2972 = vmul.f32 %v2926, %v2943
    %v2973 = vmul.f32 %v2926, %v2947
    %v2974 = vmul.f32 %v2926, %v2951
    %v2975 = vmul.f32 %v2926, %v2955
    %v2976 = vmul.f32 %v2930, %v2943
    %v2977 = vmul.f32 %v2930, %v2947
    %v2978 = vmul.f32 %v2930, %v2951
    %v2979 = vmul.f32 %v2930, %v2955
    %v2980 = vmul.f32 %v2934, %v2943
    %v2981 = vmul.f32 %v2934, %v2947
    %v2982 = vmul.f32 %v2934, %v2951
    %v2983 = vmul.f32 %v2934, %v2955
    %v2984 = vmul.f32 %v2938, %v2943
    %v2985 = vmul.f32 %v2938, %v2947
    %v2986 = vmul.f32 %v2938, %v2951
    %v2987 = vmul.f32 %v2938, %v2955
    %v2988 = vadd.f32 %v2876, %v2956
    %v2989 = vadd.f32 %v2877, %v2957
    %v2990 = vadd.f32 %v2878, %v2958
    %v2991 = vadd.f32 %v2879, %v2959
    %v2992 = vadd.f32 %v2880, %v2960
    %v2993 = vadd.f32 %v2881, %v2961
    %v2994 = vadd.f32 %v2882, %v2962
    %v2995 = vadd.f32 %v2883, %v2963
    %v2996 = vadd.f32 %v2884, %v2964
    %v2997 = vadd.f32 %v2885, %v2965
    %v2998 = vadd.f32 %v2886, %v2966
    %v2999 = vadd.f32 %v2887, %v2967
    %v3000 = vadd.f32 %v2888, %v2968
    %v3001 = vadd.f32 %v2889, %v2969
    %v3002 = vadd.f32 %v2890, %v2970
    %v3003 = vadd.f32 %v2891, %v2971
    %v3004 = vadd.f32 %v2892, %v2972
    %v3005 = vadd.f32 %v2893, %v2973
    %v3006 = vadd.f32 %v2894, %v2974
    %v3007 = vadd.f32 %v2895, %v2975
    %v3008 = vadd.f32 %v2896, %v2976
    %v3009 = vadd.f32 %v2897, %v2977
    %v3010 = vadd.f32 %v2898, %v2978
    %v3011 = vadd.f32 %v2899, %v2979
    %v3012 = vadd.f32 %v2900, %v2980
    %v3013 = vadd.f32 %v2901, %v2981
    %v3014 = vadd.f32 %v2902, %v2982
    %v3015 = vadd.f32 %v2903, %v2983
    %v3016 = vadd.f32 %v2904, %v2984
    %v3017 = vadd.f32 %v2905, %v2985
    %v3018 = vadd.f32 %v2906, %v2986
    %v3019 = vadd.f32 %v2907, %v2987
    %3020 = vset.pattern.permute.xlu0 13
    %3021 = vperm.xlu0 %3020, %v1580
    %v3022 = vpop.permute.xlu0 %3021
    %3024 = vset.pattern.permute.xlu0 13
    %3025 = vperm.xlu0 %3024, %v1581
    %v3026 = vpop.permute.xlu0 %3025
    %3028 = vset.pattern.permute.xlu0 13
    %3029 = vperm.xlu0 %3028, %v1582
    %v3030 = vpop.permute.xlu0 %3029
    %3032 = vset.pattern.permute.xlu0 13
    %3033 = vperm.xlu0 %3032, %v1583
    %v3034 = vpop.permute.xlu0 %3033
    %3036 = vset.pattern.permute.xlu0 13
    %3037 = vperm.xlu0 %3036, %v1584
    %v3038 = vpop.permute.xlu0 %3037
    %3040 = vset.pattern.permute.xlu0 13
    %3041 = vperm.xlu0 %3040, %v1585
    %v3042 = vpop.permute.xlu0 %3041
    %3044 = vset.pattern.permute.xlu0 13
    %3045 = vperm.xlu0 %3044, %v1586
    %v3046 = vpop.permute.xlu0 %3045
    %3048 = vset.pattern.permute.xlu0 13
    %3049 = vperm.xlu0 %3048, %v1587
    %v3050 = vpop.permute.xlu0 %3049
    %v3052 = vlaneseq
    %v3053 = vshrl.u32 %v3052, 7
    %v3054 = vsub.s32 5, %v3053
    %v3055 = vrot.slane %v1568, %v3054
    %v3056 = vlaneseq
    %v3057 = vshrl.u32 %v3056, 7
    %v3058 = vsub.s32 5, %v3057
    %v3059 = vrot.slane %v1569, %v3058
    %v3060 = vlaneseq
    %v3061 = vshrl.u32 %v3060, 7
    %v3062 = vsub.s32 5, %v3061
    %v3063 = vrot.slane %v1570, %v3062
    %v3064 = vlaneseq
    %v3065 = vshrl.u32 %v3064, 7
    %v3066 = vsub.s32 5, %v3065
    %v3067 = vrot.slane %v1571, %v3066
    %v3068 = vmul.f32 %v3022, %v3055
    %v3069 = vmul.f32 %v3022, %v3059
    %v3070 = vmul.f32 %v3022, %v3063
    %v3071 = vmul.f32 %v3022, %v3067
    %v3072 = vmul.f32 %v3026, %v3055
    %v3073 = vmul.f32 %v3026, %v3059
    %v3074 = vmul.f32 %v3026, %v3063
    %v3075 = vmul.f32 %v3026, %v3067
    %v3076 = vmul.f32 %v3030, %v3055
    %v3077 = vmul.f32 %v3030, %v3059
    %v3078 = vmul.f32 %v3030, %v3063
    %v3079 = vmul.f32 %v3030, %v3067
    %v3080 = vmul.f32 %v3034, %v3055
    %v3081 = vmul.f32 %v3034, %v3059
    %v3082 = vmul.f32 %v3034, %v3063
    %v3083 = vmul.f32 %v3034, %v3067
    %v3084 = vmul.f32 %v3038, %v3055
    %v3085 = vmul.f32 %v3038, %v3059
    %v3086 = vmul.f32 %v3038, %v3063
    %v3087 = vmul.f32 %v3038, %v3067
    %v3088 = vmul.f32 %v3042, %v3055
    %v3089 = vmul.f32 %v3042, %v3059
    %v3090 = vmul.f32 %v3042, %v3063
    %v3091 = vmul.f32 %v3042, %v3067
    %v3092 = vmul.f32 %v3046, %v3055
    %v3093 = vmul.f32 %v3046, %v3059
    %v3094 = vmul.f32 %v3046, %v3063
    %v3095 = vmul.f32 %v3046, %v3067
    %v3096 = vmul.f32 %v3050, %v3055
    %v3097 = vmul.f32 %v3050, %v3059
    %v3098 = vmul.f32 %v3050, %v3063
    %v3099 = vmul.f32 %v3050, %v3067
    %v3100 = vadd.f32 %v2988, %v3068
    %v3101 = vadd.f32 %v2989, %v3069
    %v3102 = vadd.f32 %v2990, %v3070
    %v3103 = vadd.f32 %v2991, %v3071
    %v3104 = vadd.f32 %v2992, %v3072
    %v3105 = vadd.f32 %v2993, %v3073
    %v3106 = vadd.f32 %v2994, %v3074
    %v3107 = vadd.f32 %v2995, %v3075
    %v3108 = vadd.f32 %v2996, %v3076
    %v3109 = vadd.f32 %v2997, %v3077
    %v3110 = vadd.f32 %v2998, %v3078
    %v3111 = vadd.f32 %v2999, %v3079
    %v3112 = vadd.f32 %v3000, %v3080
    %v3113 = vadd.f32 %v3001, %v3081
    %v3114 = vadd.f32 %v3002, %v3082
    %v3115 = vadd.f32 %v3003, %v3083
    %v3116 = vadd.f32 %v3004, %v3084
    %v3117 = vadd.f32 %v3005, %v3085
    %v3118 = vadd.f32 %v3006, %v3086
    %v3119 = vadd.f32 %v3007, %v3087
    %v3120 = vadd.f32 %v3008, %v3088
    %v3121 = vadd.f32 %v3009, %v3089
    %v3122 = vadd.f32 %v3010, %v3090
    %v3123 = vadd.f32 %v3011, %v3091
    %v3124 = vadd.f32 %v3012, %v3092
    %v3125 = vadd.f32 %v3013, %v3093
    %v3126 = vadd.f32 %v3014, %v3094
    %v3127 = vadd.f32 %v3015, %v3095
    %v3128 = vadd.f32 %v3016, %v3096
    %v3129 = vadd.f32 %v3017, %v3097
    %v3130 = vadd.f32 %v3018, %v3098
    %v3131 = vadd.f32 %v3019, %v3099
    %3132 = vset.pattern.permute.xlu0 14
    %3133 = vperm.xlu0 %3132, %v1580
    %v3134 = vpop.permute.xlu0 %3133
    %3136 = vset.pattern.permute.xlu0 14
    %3137 = vperm.xlu0 %3136, %v1581
    %v3138 = vpop.permute.xlu0 %3137
    %3140 = vset.pattern.permute.xlu0 14
    %3141 = vperm.xlu0 %3140, %v1582
    %v3142 = vpop.permute.xlu0 %3141
    %3144 = vset.pattern.permute.xlu0 14
    %3145 = vperm.xlu0 %3144, %v1583
    %v3146 = vpop.permute.xlu0 %3145
    %3148 = vset.pattern.permute.xlu0 14
    %3149 = vperm.xlu0 %3148, %v1584
    %v3150 = vpop.permute.xlu0 %3149
    %3152 = vset.pattern.permute.xlu0 14
    %3153 = vperm.xlu0 %3152, %v1585
    %v3154 = vpop.permute.xlu0 %3153
    %3156 = vset.pattern.permute.xlu0 14
    %3157 = vperm.xlu0 %3156, %v1586
    %v3158 = vpop.permute.xlu0 %3157
    %3160 = vset.pattern.permute.xlu0 14
    %3161 = vperm.xlu0 %3160, %v1587
    %v3162 = vpop.permute.xlu0 %3161
    %v3164 = vlaneseq
    %v3165 = vshrl.u32 %v3164, 7
    %v3166 = vsub.s32 6, %v3165
    %v3167 = vrot.slane %v1568, %v3166
    %v3168 = vlaneseq
    %v3169 = vshrl.u32 %v3168, 7
    %v3170 = vsub.s32 6, %v3169
    %v3171 = vrot.slane %v1569, %v3170
    %v3172 = vlaneseq
    %v3173 = vshrl.u32 %v3172, 7
    %v3174 = vsub.s32 6, %v3173
    %v3175 = vrot.slane %v1570, %v3174
    %v3176 = vlaneseq
    %v3177 = vshrl.u32 %v3176, 7
    %v3178 = vsub.s32 6, %v3177
    %v3179 = vrot.slane %v1571, %v3178
    %v3180 = vmul.f32 %v3134, %v3167
    %v3181 = vmul.f32 %v3134, %v3171
    %v3182 = vmul.f32 %v3134, %v3175
    %v3183 = vmul.f32 %v3134, %v3179
    %v3184 = vmul.f32 %v3138, %v3167
    %v3185 = vmul.f32 %v3138, %v3171
    %v3186 = vmul.f32 %v3138, %v3175
    %v3187 = vmul.f32 %v3138, %v3179
    %v3188 = vmul.f32 %v3142, %v3167
    %v3189 = vmul.f32 %v3142, %v3171
    %v3190 = vmul.f32 %v3142, %v3175
    %v3191 = vmul.f32 %v3142, %v3179
    %v3192 = vmul.f32 %v3146, %v3167
    %v3193 = vmul.f32 %v3146, %v3171
    %v3194 = vmul.f32 %v3146, %v3175
    %v3195 = vmul.f32 %v3146, %v3179
    %v3196 = vmul.f32 %v3150, %v3167
    %v3197 = vmul.f32 %v3150, %v3171
    %v3198 = vmul.f32 %v3150, %v3175
    %v3199 = vmul.f32 %v3150, %v3179
    %v3200 = vmul.f32 %v3154, %v3167
    %v3201 = vmul.f32 %v3154, %v3171
    %v3202 = vmul.f32 %v3154, %v3175
    %v3203 = vmul.f32 %v3154, %v3179
    %v3204 = vmul.f32 %v3158, %v3167
    %v3205 = vmul.f32 %v3158, %v3171
    %v3206 = vmul.f32 %v3158, %v3175
    %v3207 = vmul.f32 %v3158, %v3179
    %v3208 = vmul.f32 %v3162, %v3167
    %v3209 = vmul.f32 %v3162, %v3171
    %v3210 = vmul.f32 %v3162, %v3175
    %v3211 = vmul.f32 %v3162, %v3179
    %v3212 = vadd.f32 %v3100, %v3180
    %v3213 = vadd.f32 %v3101, %v3181
    %v3214 = vadd.f32 %v3102, %v3182
    %v3215 = vadd.f32 %v3103, %v3183
    %v3216 = vadd.f32 %v3104, %v3184
    %v3217 = vadd.f32 %v3105, %v3185
    %v3218 = vadd.f32 %v3106, %v3186
    %v3219 = vadd.f32 %v3107, %v3187
    %v3220 = vadd.f32 %v3108, %v3188
    %v3221 = vadd.f32 %v3109, %v3189
    %v3222 = vadd.f32 %v3110, %v3190
    %v3223 = vadd.f32 %v3111, %v3191
    %v3224 = vadd.f32 %v3112, %v3192
    %v3225 = vadd.f32 %v3113, %v3193
    %v3226 = vadd.f32 %v3114, %v3194
    %v3227 = vadd.f32 %v3115, %v3195
    %v3228 = vadd.f32 %v3116, %v3196
    %v3229 = vadd.f32 %v3117, %v3197
    %v3230 = vadd.f32 %v3118, %v3198
    %v3231 = vadd.f32 %v3119, %v3199
    %v3232 = vadd.f32 %v3120, %v3200
    %v3233 = vadd.f32 %v3121, %v3201
    %v3234 = vadd.f32 %v3122, %v3202
    %v3235 = vadd.f32 %v3123, %v3203
    %v3236 = vadd.f32 %v3124, %v3204
    %v3237 = vadd.f32 %v3125, %v3205
    %v3238 = vadd.f32 %v3126, %v3206
    %v3239 = vadd.f32 %v3127, %v3207
    %v3240 = vadd.f32 %v3128, %v3208
    %v3241 = vadd.f32 %v3129, %v3209
    %v3242 = vadd.f32 %v3130, %v3210
    %v3243 = vadd.f32 %v3131, %v3211
    %3244 = vset.pattern.permute.xlu0 15
    %3245 = vperm.xlu0 %3244, %v1580
    %v3246 = vpop.permute.xlu0 %3245
    %3248 = vset.pattern.permute.xlu0 15
    %3249 = vperm.xlu0 %3248, %v1581
    %v3250 = vpop.permute.xlu0 %3249
    %3252 = vset.pattern.permute.xlu0 15
    %3253 = vperm.xlu0 %3252, %v1582
    %v3254 = vpop.permute.xlu0 %3253
    %3256 = vset.pattern.permute.xlu0 15
    %3257 = vperm.xlu0 %3256, %v1583
    %v3258 = vpop.permute.xlu0 %3257
    %3260 = vset.pattern.permute.xlu0 15
    %3261 = vperm.xlu0 %3260, %v1584
    %v3262 = vpop.permute.xlu0 %3261
    %3264 = vset.pattern.permute.xlu0 15
    %3265 = vperm.xlu0 %3264, %v1585
    %v3266 = vpop.permute.xlu0 %3265
    %3268 = vset.pattern.permute.xlu0 15
    %3269 = vperm.xlu0 %3268, %v1586
    %v3270 = vpop.permute.xlu0 %3269
    %3272 = vset.pattern.permute.xlu0 15
    %3273 = vperm.xlu0 %3272, %v1587
    %v3274 = vpop.permute.xlu0 %3273
    %v3276 = vlaneseq
    %v3277 = vshrl.u32 %v3276, 7
    %v3278 = vsub.s32 7, %v3277
    %v3279 = vrot.slane %v1568, %v3278
    %v3280 = vlaneseq
    %v3281 = vshrl.u32 %v3280, 7
    %v3282 = vsub.s32 7, %v3281
    %v3283 = vrot.slane %v1569, %v3282
    %v3284 = vlaneseq
    %v3285 = vshrl.u32 %v3284, 7
    %v3286 = vsub.s32 7, %v3285
    %v3287 = vrot.slane %v1570, %v3286
    %v3288 = vlaneseq
    %v3289 = vshrl.u32 %v3288, 7
    %v3290 = vsub.s32 7, %v3289
    %v3291 = vrot.slane %v1571, %v3290
    %v3292 = vmul.f32 %v3246, %v3279
    %v3293 = vmul.f32 %v3246, %v3283
    %v3294 = vmul.f32 %v3246, %v3287
    %v3295 = vmul.f32 %v3246, %v3291
    %v3296 = vmul.f32 %v3250, %v3279
    %v3297 = vmul.f32 %v3250, %v3283
    %v3298 = vmul.f32 %v3250, %v3287
    %v3299 = vmul.f32 %v3250, %v3291
    %v3300 = vmul.f32 %v3254, %v3279
    %v3301 = vmul.f32 %v3254, %v3283
    %v3302 = vmul.f32 %v3254, %v3287
    %v3303 = vmul.f32 %v3254, %v3291
    %v3304 = vmul.f32 %v3258, %v3279
    %v3305 = vmul.f32 %v3258, %v3283
    %v3306 = vmul.f32 %v3258, %v3287
    %v3307 = vmul.f32 %v3258, %v3291
    %v3308 = vmul.f32 %v3262, %v3279
    %v3309 = vmul.f32 %v3262, %v3283
    %v3310 = vmul.f32 %v3262, %v3287
    %v3311 = vmul.f32 %v3262, %v3291
    %v3312 = vmul.f32 %v3266, %v3279
    %v3313 = vmul.f32 %v3266, %v3283
    %v3314 = vmul.f32 %v3266, %v3287
    %v3315 = vmul.f32 %v3266, %v3291
    %v3316 = vmul.f32 %v3270, %v3279
    %v3317 = vmul.f32 %v3270, %v3283
    %v3318 = vmul.f32 %v3270, %v3287
    %v3319 = vmul.f32 %v3270, %v3291
    %v3320 = vmul.f32 %v3274, %v3279
    %v3321 = vmul.f32 %v3274, %v3283
    %v3322 = vmul.f32 %v3274, %v3287
    %v3323 = vmul.f32 %v3274, %v3291
    %v3324 = vadd.f32 %v3212, %v3292
    %v3325 = vadd.f32 %v3213, %v3293
    %v3326 = vadd.f32 %v3214, %v3294
    %v3327 = vadd.f32 %v3215, %v3295
    %v3328 = vadd.f32 %v3216, %v3296
    %v3329 = vadd.f32 %v3217, %v3297
    %v3330 = vadd.f32 %v3218, %v3298
    %v3331 = vadd.f32 %v3219, %v3299
    %v3332 = vadd.f32 %v3220, %v3300
    %v3333 = vadd.f32 %v3221, %v3301
    %v3334 = vadd.f32 %v3222, %v3302
    %v3335 = vadd.f32 %v3223, %v3303
    %v3336 = vadd.f32 %v3224, %v3304
    %v3337 = vadd.f32 %v3225, %v3305
    %v3338 = vadd.f32 %v3226, %v3306
    %v3339 = vadd.f32 %v3227, %v3307
    %v3340 = vadd.f32 %v3228, %v3308
    %v3341 = vadd.f32 %v3229, %v3309
    %v3342 = vadd.f32 %v3230, %v3310
    %v3343 = vadd.f32 %v3231, %v3311
    %v3344 = vadd.f32 %v3232, %v3312
    %v3345 = vadd.f32 %v3233, %v3313
    %v3346 = vadd.f32 %v3234, %v3314
    %v3347 = vadd.f32 %v3235, %v3315
    %v3348 = vadd.f32 %v3236, %v3316
    %v3349 = vadd.f32 %v3237, %v3317
    %v3350 = vadd.f32 %v3238, %v3318
    %v3351 = vadd.f32 %v3239, %v3319
    %v3352 = vadd.f32 %v3240, %v3320
    %v3353 = vadd.f32 %v3241, %v3321
    %v3354 = vadd.f32 %v3242, %v3322
    %v3355 = vadd.f32 %v3243, %v3323
    %3356 = vset.pattern.permute.xlu0 16
    %3357 = vperm.xlu0 %3356, %v1580
    %v3358 = vpop.permute.xlu0 %3357
    %3360 = vset.pattern.permute.xlu0 16
    %3361 = vperm.xlu0 %3360, %v1581
    %v3362 = vpop.permute.xlu0 %3361
    %3364 = vset.pattern.permute.xlu0 16
    %3365 = vperm.xlu0 %3364, %v1582
    %v3366 = vpop.permute.xlu0 %3365
    %3368 = vset.pattern.permute.xlu0 16
    %3369 = vperm.xlu0 %3368, %v1583
    %v3370 = vpop.permute.xlu0 %3369
    %3372 = vset.pattern.permute.xlu0 16
    %3373 = vperm.xlu0 %3372, %v1584
    %v3374 = vpop.permute.xlu0 %3373
    %3376 = vset.pattern.permute.xlu0 16
    %3377 = vperm.xlu0 %3376, %v1585
    %v3378 = vpop.permute.xlu0 %3377
    %3380 = vset.pattern.permute.xlu0 16
    %3381 = vperm.xlu0 %3380, %v1586
    %v3382 = vpop.permute.xlu0 %3381
    %3384 = vset.pattern.permute.xlu0 16
    %3385 = vperm.xlu0 %3384, %v1587
    %v3386 = vpop.permute.xlu0 %3385
    %v3388 = vlaneseq
    %v3389 = vshrl.u32 %v3388, 7
    %v3390 = vsub.s32 0, %v3389
    %v3391 = vrot.slane %v1572, %v3390
    %v3392 = vlaneseq
    %v3393 = vshrl.u32 %v3392, 7
    %v3394 = vsub.s32 0, %v3393
    %v3395 = vrot.slane %v1573, %v3394
    %v3396 = vlaneseq
    %v3397 = vshrl.u32 %v3396, 7
    %v3398 = vsub.s32 0, %v3397
    %v3399 = vrot.slane %v1574, %v3398
    %v3400 = vlaneseq
    %v3401 = vshrl.u32 %v3400, 7
    %v3402 = vsub.s32 0, %v3401
    %v3403 = vrot.slane %v1575, %v3402
    %v3404 = vmul.f32 %v3358, %v3391
    %v3405 = vmul.f32 %v3358, %v3395
    %v3406 = vmul.f32 %v3358, %v3399
    %v3407 = vmul.f32 %v3358, %v3403
    %v3408 = vmul.f32 %v3362, %v3391
    %v3409 = vmul.f32 %v3362, %v3395
    %v3410 = vmul.f32 %v3362, %v3399
    %v3411 = vmul.f32 %v3362, %v3403
    %v3412 = vmul.f32 %v3366, %v3391
    %v3413 = vmul.f32 %v3366, %v3395
    %v3414 = vmul.f32 %v3366, %v3399
    %v3415 = vmul.f32 %v3366, %v3403
    %v3416 = vmul.f32 %v3370, %v3391
    %v3417 = vmul.f32 %v3370, %v3395
    %v3418 = vmul.f32 %v3370, %v3399
    %v3419 = vmul.f32 %v3370, %v3403
    %v3420 = vmul.f32 %v3374, %v3391
    %v3421 = vmul.f32 %v3374, %v3395
    %v3422 = vmul.f32 %v3374, %v3399
    %v3423 = vmul.f32 %v3374, %v3403
    %v3424 = vmul.f32 %v3378, %v3391
    %v3425 = vmul.f32 %v3378, %v3395
    %v3426 = vmul.f32 %v3378, %v3399
    %v3427 = vmul.f32 %v3378, %v3403
    %v3428 = vmul.f32 %v3382, %v3391
    %v3429 = vmul.f32 %v3382, %v3395
    %v3430 = vmul.f32 %v3382, %v3399
    %v3431 = vmul.f32 %v3382, %v3403
    %v3432 = vmul.f32 %v3386, %v3391
    %v3433 = vmul.f32 %v3386, %v3395
    %v3434 = vmul.f32 %v3386, %v3399
    %v3435 = vmul.f32 %v3386, %v3403
    %v3436 = vadd.f32 %v3324, %v3404
    %v3437 = vadd.f32 %v3325, %v3405
    %v3438 = vadd.f32 %v3326, %v3406
    %v3439 = vadd.f32 %v3327, %v3407
    %v3440 = vadd.f32 %v3328, %v3408
    %v3441 = vadd.f32 %v3329, %v3409
    %v3442 = vadd.f32 %v3330, %v3410
    %v3443 = vadd.f32 %v3331, %v3411
    %v3444 = vadd.f32 %v3332, %v3412
    %v3445 = vadd.f32 %v3333, %v3413
    %v3446 = vadd.f32 %v3334, %v3414
    %v3447 = vadd.f32 %v3335, %v3415
    %v3448 = vadd.f32 %v3336, %v3416
    %v3449 = vadd.f32 %v3337, %v3417
    %v3450 = vadd.f32 %v3338, %v3418
    %v3451 = vadd.f32 %v3339, %v3419
    %v3452 = vadd.f32 %v3340, %v3420
    %v3453 = vadd.f32 %v3341, %v3421
    %v3454 = vadd.f32 %v3342, %v3422
    %v3455 = vadd.f32 %v3343, %v3423
    %v3456 = vadd.f32 %v3344, %v3424
    %v3457 = vadd.f32 %v3345, %v3425
    %v3458 = vadd.f32 %v3346, %v3426
    %v3459 = vadd.f32 %v3347, %v3427
    %v3460 = vadd.f32 %v3348, %v3428
    %v3461 = vadd.f32 %v3349, %v3429
    %v3462 = vadd.f32 %v3350, %v3430
    %v3463 = vadd.f32 %v3351, %v3431
    %v3464 = vadd.f32 %v3352, %v3432
    %v3465 = vadd.f32 %v3353, %v3433
    %v3466 = vadd.f32 %v3354, %v3434
    %v3467 = vadd.f32 %v3355, %v3435
    %3468 = vset.pattern.permute.xlu0 17
    %3469 = vperm.xlu0 %3468, %v1580
    %v3470 = vpop.permute.xlu0 %3469
    %3472 = vset.pattern.permute.xlu0 17
    %3473 = vperm.xlu0 %3472, %v1581
    %v3474 = vpop.permute.xlu0 %3473
    %3476 = vset.pattern.permute.xlu0 17
    %3477 = vperm.xlu0 %3476, %v1582
    %v3478 = vpop.permute.xlu0 %3477
    %3480 = vset.pattern.permute.xlu0 17
    %3481 = vperm.xlu0 %3480, %v1583
    %v3482 = vpop.permute.xlu0 %3481
    %3484 = vset.pattern.permute.xlu0 17
    %3485 = vperm.xlu0 %3484, %v1584
    %v3486 = vpop.permute.xlu0 %3485
    %3488 = vset.pattern.permute.xlu0 17
    %3489 = vperm.xlu0 %3488, %v1585
    %v3490 = vpop.permute.xlu0 %3489
    %3492 = vset.pattern.permute.xlu0 17
    %3493 = vperm.xlu0 %3492, %v1586
    %v3494 = vpop.permute.xlu0 %3493
    %3496 = vset.pattern.permute.xlu0 17
    %3497 = vperm.xlu0 %3496, %v1587
    %v3498 = vpop.permute.xlu0 %3497
    %v3500 = vlaneseq
    %v3501 = vshrl.u32 %v3500, 7
    %v3502 = vsub.s32 1, %v3501
    %v3503 = vrot.slane %v1572, %v3502
    %v3504 = vlaneseq
    %v3505 = vshrl.u32 %v3504, 7
    %v3506 = vsub.s32 1, %v3505
    %v3507 = vrot.slane %v1573, %v3506
    %v3508 = vlaneseq
    %v3509 = vshrl.u32 %v3508, 7
    %v3510 = vsub.s32 1, %v3509
    %v3511 = vrot.slane %v1574, %v3510
    %v3512 = vlaneseq
    %v3513 = vshrl.u32 %v3512, 7
    %v3514 = vsub.s32 1, %v3513
    %v3515 = vrot.slane %v1575, %v3514
    %v3516 = vmul.f32 %v3470, %v3503
    %v3517 = vmul.f32 %v3470, %v3507
    %v3518 = vmul.f32 %v3470, %v3511
    %v3519 = vmul.f32 %v3470, %v3515
    %v3520 = vmul.f32 %v3474, %v3503
    %v3521 = vmul.f32 %v3474, %v3507
    %v3522 = vmul.f32 %v3474, %v3511
    %v3523 = vmul.f32 %v3474, %v3515
    %v3524 = vmul.f32 %v3478, %v3503
    %v3525 = vmul.f32 %v3478, %v3507
    %v3526 = vmul.f32 %v3478, %v3511
    %v3527 = vmul.f32 %v3478, %v3515
    %v3528 = vmul.f32 %v3482, %v3503
    %v3529 = vmul.f32 %v3482, %v3507
    %v3530 = vmul.f32 %v3482, %v3511
    %v3531 = vmul.f32 %v3482, %v3515
    %v3532 = vmul.f32 %v3486, %v3503
    %v3533 = vmul.f32 %v3486, %v3507
    %v3534 = vmul.f32 %v3486, %v3511
    %v3535 = vmul.f32 %v3486, %v3515
    %v3536 = vmul.f32 %v3490, %v3503
    %v3537 = vmul.f32 %v3490, %v3507
    %v3538 = vmul.f32 %v3490, %v3511
    %v3539 = vmul.f32 %v3490, %v3515
    %v3540 = vmul.f32 %v3494, %v3503
    %v3541 = vmul.f32 %v3494, %v3507
    %v3542 = vmul.f32 %v3494, %v3511
    %v3543 = vmul.f32 %v3494, %v3515
    %v3544 = vmul.f32 %v3498, %v3503
    %v3545 = vmul.f32 %v3498, %v3507
    %v3546 = vmul.f32 %v3498, %v3511
    %v3547 = vmul.f32 %v3498, %v3515
    %v3548 = vadd.f32 %v3436, %v3516
    %v3549 = vadd.f32 %v3437, %v3517
    %v3550 = vadd.f32 %v3438, %v3518
    %v3551 = vadd.f32 %v3439, %v3519
    %v3552 = vadd.f32 %v3440, %v3520
    %v3553 = vadd.f32 %v3441, %v3521
    %v3554 = vadd.f32 %v3442, %v3522
    %v3555 = vadd.f32 %v3443, %v3523
    %v3556 = vadd.f32 %v3444, %v3524
    %v3557 = vadd.f32 %v3445, %v3525
    %v3558 = vadd.f32 %v3446, %v3526
    %v3559 = vadd.f32 %v3447, %v3527
    %v3560 = vadd.f32 %v3448, %v3528
    %v3561 = vadd.f32 %v3449, %v3529
    %v3562 = vadd.f32 %v3450, %v3530
    %v3563 = vadd.f32 %v3451, %v3531
    %v3564 = vadd.f32 %v3452, %v3532
    %v3565 = vadd.f32 %v3453, %v3533
    %v3566 = vadd.f32 %v3454, %v3534
    %v3567 = vadd.f32 %v3455, %v3535
    %v3568 = vadd.f32 %v3456, %v3536
    %v3569 = vadd.f32 %v3457, %v3537
    %v3570 = vadd.f32 %v3458, %v3538
    %v3571 = vadd.f32 %v3459, %v3539
    %v3572 = vadd.f32 %v3460, %v3540
    %v3573 = vadd.f32 %v3461, %v3541
    %v3574 = vadd.f32 %v3462, %v3542
    %v3575 = vadd.f32 %v3463, %v3543
    %v3576 = vadd.f32 %v3464, %v3544
    %v3577 = vadd.f32 %v3465, %v3545
    %v3578 = vadd.f32 %v3466, %v3546
    %v3579 = vadd.f32 %v3467, %v3547
    %3580 = vset.pattern.permute.xlu0 18
    %3581 = vperm.xlu0 %3580, %v1580
    %v3582 = vpop.permute.xlu0 %3581
    %3584 = vset.pattern.permute.xlu0 18
    %3585 = vperm.xlu0 %3584, %v1581
    %v3586 = vpop.permute.xlu0 %3585
    %3588 = vset.pattern.permute.xlu0 18
    %3589 = vperm.xlu0 %3588, %v1582
    %v3590 = vpop.permute.xlu0 %3589
    %3592 = vset.pattern.permute.xlu0 18
    %3593 = vperm.xlu0 %3592, %v1583
    %v3594 = vpop.permute.xlu0 %3593
    %3596 = vset.pattern.permute.xlu0 18
    %3597 = vperm.xlu0 %3596, %v1584
    %v3598 = vpop.permute.xlu0 %3597
    %3600 = vset.pattern.permute.xlu0 18
    %3601 = vperm.xlu0 %3600, %v1585
    %v3602 = vpop.permute.xlu0 %3601
    %3604 = vset.pattern.permute.xlu0 18
    %3605 = vperm.xlu0 %3604, %v1586
    %v3606 = vpop.permute.xlu0 %3605
    %3608 = vset.pattern.permute.xlu0 18
    %3609 = vperm.xlu0 %3608, %v1587
    %v3610 = vpop.permute.xlu0 %3609
    %v3612 = vlaneseq
    %v3613 = vshrl.u32 %v3612, 7
    %v3614 = vsub.s32 2, %v3613
    %v3615 = vrot.slane %v1572, %v3614
    %v3616 = vlaneseq
    %v3617 = vshrl.u32 %v3616, 7
    %v3618 = vsub.s32 2, %v3617
    %v3619 = vrot.slane %v1573, %v3618
    %v3620 = vlaneseq
    %v3621 = vshrl.u32 %v3620, 7
    %v3622 = vsub.s32 2, %v3621
    %v3623 = vrot.slane %v1574, %v3622
    %v3624 = vlaneseq
    %v3625 = vshrl.u32 %v3624, 7
    %v3626 = vsub.s32 2, %v3625
    %v3627 = vrot.slane %v1575, %v3626
    %v3628 = vmul.f32 %v3582, %v3615
    %v3629 = vmul.f32 %v3582, %v3619
    %v3630 = vmul.f32 %v3582, %v3623
    %v3631 = vmul.f32 %v3582, %v3627
    %v3632 = vmul.f32 %v3586, %v3615
    %v3633 = vmul.f32 %v3586, %v3619
    %v3634 = vmul.f32 %v3586, %v3623
    %v3635 = vmul.f32 %v3586, %v3627
    %v3636 = vmul.f32 %v3590, %v3615
    %v3637 = vmul.f32 %v3590, %v3619
    %v3638 = vmul.f32 %v3590, %v3623
    %v3639 = vmul.f32 %v3590, %v3627
    %v3640 = vmul.f32 %v3594, %v3615
    %v3641 = vmul.f32 %v3594, %v3619
    %v3642 = vmul.f32 %v3594, %v3623
    %v3643 = vmul.f32 %v3594, %v3627
    %v3644 = vmul.f32 %v3598, %v3615
    %v3645 = vmul.f32 %v3598, %v3619
    %v3646 = vmul.f32 %v3598, %v3623
    %v3647 = vmul.f32 %v3598, %v3627
    %v3648 = vmul.f32 %v3602, %v3615
    %v3649 = vmul.f32 %v3602, %v3619
    %v3650 = vmul.f32 %v3602, %v3623
    %v3651 = vmul.f32 %v3602, %v3627
    %v3652 = vmul.f32 %v3606, %v3615
    %v3653 = vmul.f32 %v3606, %v3619
    %v3654 = vmul.f32 %v3606, %v3623
    %v3655 = vmul.f32 %v3606, %v3627
    %v3656 = vmul.f32 %v3610, %v3615
    %v3657 = vmul.f32 %v3610, %v3619
    %v3658 = vmul.f32 %v3610, %v3623
    %v3659 = vmul.f32 %v3610, %v3627
    %v3660 = vadd.f32 %v3548, %v3628
    %v3661 = vadd.f32 %v3549, %v3629
    %v3662 = vadd.f32 %v3550, %v3630
    %v3663 = vadd.f32 %v3551, %v3631
    %v3664 = vadd.f32 %v3552, %v3632
    %v3665 = vadd.f32 %v3553, %v3633
    %v3666 = vadd.f32 %v3554, %v3634
    %v3667 = vadd.f32 %v3555, %v3635
    %v3668 = vadd.f32 %v3556, %v3636
    %v3669 = vadd.f32 %v3557, %v3637
    %v3670 = vadd.f32 %v3558, %v3638
    %v3671 = vadd.f32 %v3559, %v3639
    %v3672 = vadd.f32 %v3560, %v3640
    %v3673 = vadd.f32 %v3561, %v3641
    %v3674 = vadd.f32 %v3562, %v3642
    %v3675 = vadd.f32 %v3563, %v3643
    %v3676 = vadd.f32 %v3564, %v3644
    %v3677 = vadd.f32 %v3565, %v3645
    %v3678 = vadd.f32 %v3566, %v3646
    %v3679 = vadd.f32 %v3567, %v3647
    %v3680 = vadd.f32 %v3568, %v3648
    %v3681 = vadd.f32 %v3569, %v3649
    %v3682 = vadd.f32 %v3570, %v3650
    %v3683 = vadd.f32 %v3571, %v3651
    %v3684 = vadd.f32 %v3572, %v3652
    %v3685 = vadd.f32 %v3573, %v3653
    %v3686 = vadd.f32 %v3574, %v3654
    %v3687 = vadd.f32 %v3575, %v3655
    %v3688 = vadd.f32 %v3576, %v3656
    %v3689 = vadd.f32 %v3577, %v3657
    %v3690 = vadd.f32 %v3578, %v3658
    %v3691 = vadd.f32 %v3579, %v3659
    %3692 = vset.pattern.permute.xlu0 19
    %3693 = vperm.xlu0 %3692, %v1580
    %v3694 = vpop.permute.xlu0 %3693
    %3696 = vset.pattern.permute.xlu0 19
    %3697 = vperm.xlu0 %3696, %v1581
    %v3698 = vpop.permute.xlu0 %3697
    %3700 = vset.pattern.permute.xlu0 19
    %3701 = vperm.xlu0 %3700, %v1582
    %v3702 = vpop.permute.xlu0 %3701
    %3704 = vset.pattern.permute.xlu0 19
    %3705 = vperm.xlu0 %3704, %v1583
    %v3706 = vpop.permute.xlu0 %3705
    %3708 = vset.pattern.permute.xlu0 19
    %3709 = vperm.xlu0 %3708, %v1584
    %v3710 = vpop.permute.xlu0 %3709
    %3712 = vset.pattern.permute.xlu0 19
    %3713 = vperm.xlu0 %3712, %v1585
    %v3714 = vpop.permute.xlu0 %3713
    %3716 = vset.pattern.permute.xlu0 19
    %3717 = vperm.xlu0 %3716, %v1586
    %v3718 = vpop.permute.xlu0 %3717
    %3720 = vset.pattern.permute.xlu0 19
    %3721 = vperm.xlu0 %3720, %v1587
    %v3722 = vpop.permute.xlu0 %3721
    %v3724 = vlaneseq
    %v3725 = vshrl.u32 %v3724, 7
    %v3726 = vsub.s32 3, %v3725
    %v3727 = vrot.slane %v1572, %v3726
    %v3728 = vlaneseq
    %v3729 = vshrl.u32 %v3728, 7
    %v3730 = vsub.s32 3, %v3729
    %v3731 = vrot.slane %v1573, %v3730
    %v3732 = vlaneseq
    %v3733 = vshrl.u32 %v3732, 7
    %v3734 = vsub.s32 3, %v3733
    %v3735 = vrot.slane %v1574, %v3734
    %v3736 = vlaneseq
    %v3737 = vshrl.u32 %v3736, 7
    %v3738 = vsub.s32 3, %v3737
    %v3739 = vrot.slane %v1575, %v3738
    %v3740 = vmul.f32 %v3694, %v3727
    %v3741 = vmul.f32 %v3694, %v3731
    %v3742 = vmul.f32 %v3694, %v3735
    %v3743 = vmul.f32 %v3694, %v3739
    %v3744 = vmul.f32 %v3698, %v3727
    %v3745 = vmul.f32 %v3698, %v3731
    %v3746 = vmul.f32 %v3698, %v3735
    %v3747 = vmul.f32 %v3698, %v3739
    %v3748 = vmul.f32 %v3702, %v3727
    %v3749 = vmul.f32 %v3702, %v3731
    %v3750 = vmul.f32 %v3702, %v3735
    %v3751 = vmul.f32 %v3702, %v3739
    %v3752 = vmul.f32 %v3706, %v3727
    %v3753 = vmul.f32 %v3706, %v3731
    %v3754 = vmul.f32 %v3706, %v3735
    %v3755 = vmul.f32 %v3706, %v3739
    %v3756 = vmul.f32 %v3710, %v3727
    %v3757 = vmul.f32 %v3710, %v3731
    %v3758 = vmul.f32 %v3710, %v3735
    %v3759 = vmul.f32 %v3710, %v3739
    %v3760 = vmul.f32 %v3714, %v3727
    %v3761 = vmul.f32 %v3714, %v3731
    %v3762 = vmul.f32 %v3714, %v3735
    %v3763 = vmul.f32 %v3714, %v3739
    %v3764 = vmul.f32 %v3718, %v3727
    %v3765 = vmul.f32 %v3718, %v3731
    %v3766 = vmul.f32 %v3718, %v3735
    %v3767 = vmul.f32 %v3718, %v3739
    %v3768 = vmul.f32 %v3722, %v3727
    %v3769 = vmul.f32 %v3722, %v3731
    %v3770 = vmul.f32 %v3722, %v3735
    %v3771 = vmul.f32 %v3722, %v3739
    %v3772 = vadd.f32 %v3660, %v3740
    %v3773 = vadd.f32 %v3661, %v3741
    %v3774 = vadd.f32 %v3662, %v3742
    %v3775 = vadd.f32 %v3663, %v3743
    %v3776 = vadd.f32 %v3664, %v3744
    %v3777 = vadd.f32 %v3665, %v3745
    %v3778 = vadd.f32 %v3666, %v3746
    %v3779 = vadd.f32 %v3667, %v3747
    %v3780 = vadd.f32 %v3668, %v3748
    %v3781 = vadd.f32 %v3669, %v3749
    %v3782 = vadd.f32 %v3670, %v3750
    %v3783 = vadd.f32 %v3671, %v3751
    %v3784 = vadd.f32 %v3672, %v3752
    %v3785 = vadd.f32 %v3673, %v3753
    %v3786 = vadd.f32 %v3674, %v3754
    %v3787 = vadd.f32 %v3675, %v3755
    %v3788 = vadd.f32 %v3676, %v3756
    %v3789 = vadd.f32 %v3677, %v3757
    %v3790 = vadd.f32 %v3678, %v3758
    %v3791 = vadd.f32 %v3679, %v3759
    %v3792 = vadd.f32 %v3680, %v3760
    %v3793 = vadd.f32 %v3681, %v3761
    %v3794 = vadd.f32 %v3682, %v3762
    %v3795 = vadd.f32 %v3683, %v3763
    %v3796 = vadd.f32 %v3684, %v3764
    %v3797 = vadd.f32 %v3685, %v3765
    %v3798 = vadd.f32 %v3686, %v3766
    %v3799 = vadd.f32 %v3687, %v3767
    %v3800 = vadd.f32 %v3688, %v3768
    %v3801 = vadd.f32 %v3689, %v3769
    %v3802 = vadd.f32 %v3690, %v3770
    %v3803 = vadd.f32 %v3691, %v3771
    %3804 = vset.pattern.permute.xlu0 20
    %3805 = vperm.xlu0 %3804, %v1580
    %v3806 = vpop.permute.xlu0 %3805
    %3808 = vset.pattern.permute.xlu0 20
    %3809 = vperm.xlu0 %3808, %v1581
    %v3810 = vpop.permute.xlu0 %3809
    %3812 = vset.pattern.permute.xlu0 20
    %3813 = vperm.xlu0 %3812, %v1582
    %v3814 = vpop.permute.xlu0 %3813
    %3816 = vset.pattern.permute.xlu0 20
    %3817 = vperm.xlu0 %3816, %v1583
    %v3818 = vpop.permute.xlu0 %3817
    %3820 = vset.pattern.permute.xlu0 20
    %3821 = vperm.xlu0 %3820, %v1584
    %v3822 = vpop.permute.xlu0 %3821
    %3824 = vset.pattern.permute.xlu0 20
    %3825 = vperm.xlu0 %3824, %v1585
    %v3826 = vpop.permute.xlu0 %3825
    %3828 = vset.pattern.permute.xlu0 20
    %3829 = vperm.xlu0 %3828, %v1586
    %v3830 = vpop.permute.xlu0 %3829
    %3832 = vset.pattern.permute.xlu0 20
    %3833 = vperm.xlu0 %3832, %v1587
    %v3834 = vpop.permute.xlu0 %3833
    %v3836 = vlaneseq
    %v3837 = vshrl.u32 %v3836, 7
    %v3838 = vsub.s32 4, %v3837
    %v3839 = vrot.slane %v1572, %v3838
    %v3840 = vlaneseq
    %v3841 = vshrl.u32 %v3840, 7
    %v3842 = vsub.s32 4, %v3841
    %v3843 = vrot.slane %v1573, %v3842
    %v3844 = vlaneseq
    %v3845 = vshrl.u32 %v3844, 7
    %v3846 = vsub.s32 4, %v3845
    %v3847 = vrot.slane %v1574, %v3846
    %v3848 = vlaneseq
    %v3849 = vshrl.u32 %v3848, 7
    %v3850 = vsub.s32 4, %v3849
    %v3851 = vrot.slane %v1575, %v3850
    %v3852 = vmul.f32 %v3806, %v3839
    %v3853 = vmul.f32 %v3806, %v3843
    %v3854 = vmul.f32 %v3806, %v3847
    %v3855 = vmul.f32 %v3806, %v3851
    %v3856 = vmul.f32 %v3810, %v3839
    %v3857 = vmul.f32 %v3810, %v3843
    %v3858 = vmul.f32 %v3810, %v3847
    %v3859 = vmul.f32 %v3810, %v3851
    %v3860 = vmul.f32 %v3814, %v3839
    %v3861 = vmul.f32 %v3814, %v3843
    %v3862 = vmul.f32 %v3814, %v3847
    %v3863 = vmul.f32 %v3814, %v3851
    %v3864 = vmul.f32 %v3818, %v3839
    %v3865 = vmul.f32 %v3818, %v3843
    %v3866 = vmul.f32 %v3818, %v3847
    %v3867 = vmul.f32 %v3818, %v3851
    %v3868 = vmul.f32 %v3822, %v3839
    %v3869 = vmul.f32 %v3822, %v3843
    %v3870 = vmul.f32 %v3822, %v3847
    %v3871 = vmul.f32 %v3822, %v3851
    %v3872 = vmul.f32 %v3826, %v3839
    %v3873 = vmul.f32 %v3826, %v3843
    %v3874 = vmul.f32 %v3826, %v3847
    %v3875 = vmul.f32 %v3826, %v3851
    %v3876 = vmul.f32 %v3830, %v3839
    %v3877 = vmul.f32 %v3830, %v3843
    %v3878 = vmul.f32 %v3830, %v3847
    %v3879 = vmul.f32 %v3830, %v3851
    %v3880 = vmul.f32 %v3834, %v3839
    %v3881 = vmul.f32 %v3834, %v3843
    %v3882 = vmul.f32 %v3834, %v3847
    %v3883 = vmul.f32 %v3834, %v3851
    %v3884 = vadd.f32 %v3772, %v3852
    %v3885 = vadd.f32 %v3773, %v3853
    %v3886 = vadd.f32 %v3774, %v3854
    %v3887 = vadd.f32 %v3775, %v3855
    %v3888 = vadd.f32 %v3776, %v3856
    %v3889 = vadd.f32 %v3777, %v3857
    %v3890 = vadd.f32 %v3778, %v3858
    %v3891 = vadd.f32 %v3779, %v3859
    %v3892 = vadd.f32 %v3780, %v3860
    %v3893 = vadd.f32 %v3781, %v3861
    %v3894 = vadd.f32 %v3782, %v3862
    %v3895 = vadd.f32 %v3783, %v3863
    %v3896 = vadd.f32 %v3784, %v3864
    %v3897 = vadd.f32 %v3785, %v3865
    %v3898 = vadd.f32 %v3786, %v3866
    %v3899 = vadd.f32 %v3787, %v3867
    %v3900 = vadd.f32 %v3788, %v3868
    %v3901 = vadd.f32 %v3789, %v3869
    %v3902 = vadd.f32 %v3790, %v3870
    %v3903 = vadd.f32 %v3791, %v3871
    %v3904 = vadd.f32 %v3792, %v3872
    %v3905 = vadd.f32 %v3793, %v3873
    %v3906 = vadd.f32 %v3794, %v3874
    %v3907 = vadd.f32 %v3795, %v3875
    %v3908 = vadd.f32 %v3796, %v3876
    %v3909 = vadd.f32 %v3797, %v3877
    %v3910 = vadd.f32 %v3798, %v3878
    %v3911 = vadd.f32 %v3799, %v3879
    %v3912 = vadd.f32 %v3800, %v3880
    %v3913 = vadd.f32 %v3801, %v3881
    %v3914 = vadd.f32 %v3802, %v3882
    %v3915 = vadd.f32 %v3803, %v3883
    %3916 = vset.pattern.permute.xlu0 21
    %3917 = vperm.xlu0 %3916, %v1580
    %v3918 = vpop.permute.xlu0 %3917
    %3920 = vset.pattern.permute.xlu0 21
    %3921 = vperm.xlu0 %3920, %v1581
    %v3922 = vpop.permute.xlu0 %3921
    %3924 = vset.pattern.permute.xlu0 21
    %3925 = vperm.xlu0 %3924, %v1582
    %v3926 = vpop.permute.xlu0 %3925
    %3928 = vset.pattern.permute.xlu0 21
    %3929 = vperm.xlu0 %3928, %v1583
    %v3930 = vpop.permute.xlu0 %3929
    %3932 = vset.pattern.permute.xlu0 21
    %3933 = vperm.xlu0 %3932, %v1584
    %v3934 = vpop.permute.xlu0 %3933
    %3936 = vset.pattern.permute.xlu0 21
    %3937 = vperm.xlu0 %3936, %v1585
    %v3938 = vpop.permute.xlu0 %3937
    %3940 = vset.pattern.permute.xlu0 21
    %3941 = vperm.xlu0 %3940, %v1586
    %v3942 = vpop.permute.xlu0 %3941
    %3944 = vset.pattern.permute.xlu0 21
    %3945 = vperm.xlu0 %3944, %v1587
    %v3946 = vpop.permute.xlu0 %3945
    %v3948 = vlaneseq
    %v3949 = vshrl.u32 %v3948, 7
    %v3950 = vsub.s32 5, %v3949
    %v3951 = vrot.slane %v1572, %v3950
    %v3952 = vlaneseq
    %v3953 = vshrl.u32 %v3952, 7
    %v3954 = vsub.s32 5, %v3953
    %v3955 = vrot.slane %v1573, %v3954
    %v3956 = vlaneseq
    %v3957 = vshrl.u32 %v3956, 7
    %v3958 = vsub.s32 5, %v3957
    %v3959 = vrot.slane %v1574, %v3958
    %v3960 = vlaneseq
    %v3961 = vshrl.u32 %v3960, 7
    %v3962 = vsub.s32 5, %v3961
    %v3963 = vrot.slane %v1575, %v3962
    %v3964 = vmul.f32 %v3918, %v3951
    %v3965 = vmul.f32 %v3918, %v3955
    %v3966 = vmul.f32 %v3918, %v3959
    %v3967 = vmul.f32 %v3918, %v3963
    %v3968 = vmul.f32 %v3922, %v3951
    %v3969 = vmul.f32 %v3922, %v3955
    %v3970 = vmul.f32 %v3922, %v3959
    %v3971 = vmul.f32 %v3922, %v3963
    %v3972 = vmul.f32 %v3926, %v3951
    %v3973 = vmul.f32 %v3926, %v3955
    %v3974 = vmul.f32 %v3926, %v3959
    %v3975 = vmul.f32 %v3926, %v3963
    %v3976 = vmul.f32 %v3930, %v3951
    %v3977 = vmul.f32 %v3930, %v3955
    %v3978 = vmul.f32 %v3930, %v3959
    %v3979 = vmul.f32 %v3930, %v3963
    %v3980 = vmul.f32 %v3934, %v3951
    %v3981 = vmul.f32 %v3934, %v3955
    %v3982 = vmul.f32 %v3934, %v3959
    %v3983 = vmul.f32 %v3934, %v3963
    %v3984 = vmul.f32 %v3938, %v3951
    %v3985 = vmul.f32 %v3938, %v3955
    %v3986 = vmul.f32 %v3938, %v3959
    %v3987 = vmul.f32 %v3938, %v3963
    %v3988 = vmul.f32 %v3942, %v3951
    %v3989 = vmul.f32 %v3942, %v3955
    %v3990 = vmul.f32 %v3942, %v3959
    %v3991 = vmul.f32 %v3942, %v3963
    %v3992 = vmul.f32 %v3946, %v3951
    %v3993 = vmul.f32 %v3946, %v3955
    %v3994 = vmul.f32 %v3946, %v3959
    %v3995 = vmul.f32 %v3946, %v3963
    %v3996 = vadd.f32 %v3884, %v3964
    %v3997 = vadd.f32 %v3885, %v3965
    %v3998 = vadd.f32 %v3886, %v3966
    %v3999 = vadd.f32 %v3887, %v3967
    %v4000 = vadd.f32 %v3888, %v3968
    %v4001 = vadd.f32 %v3889, %v3969
    %v4002 = vadd.f32 %v3890, %v3970
    %v4003 = vadd.f32 %v3891, %v3971
    %v4004 = vadd.f32 %v3892, %v3972
    %v4005 = vadd.f32 %v3893, %v3973
    %v4006 = vadd.f32 %v3894, %v3974
    %v4007 = vadd.f32 %v3895, %v3975
    %v4008 = vadd.f32 %v3896, %v3976
    %v4009 = vadd.f32 %v3897, %v3977
    %v4010 = vadd.f32 %v3898, %v3978
    %v4011 = vadd.f32 %v3899, %v3979
    %v4012 = vadd.f32 %v3900, %v3980
    %v4013 = vadd.f32 %v3901, %v3981
    %v4014 = vadd.f32 %v3902, %v3982
    %v4015 = vadd.f32 %v3903, %v3983
    %v4016 = vadd.f32 %v3904, %v3984
    %v4017 = vadd.f32 %v3905, %v3985
    %v4018 = vadd.f32 %v3906, %v3986
    %v4019 = vadd.f32 %v3907, %v3987
    %v4020 = vadd.f32 %v3908, %v3988
    %v4021 = vadd.f32 %v3909, %v3989
    %v4022 = vadd.f32 %v3910, %v3990
    %v4023 = vadd.f32 %v3911, %v3991
    %v4024 = vadd.f32 %v3912, %v3992
    %v4025 = vadd.f32 %v3913, %v3993
    %v4026 = vadd.f32 %v3914, %v3994
    %v4027 = vadd.f32 %v3915, %v3995
    %4028 = vset.pattern.permute.xlu0 22
    %4029 = vperm.xlu0 %4028, %v1580
    %v4030 = vpop.permute.xlu0 %4029
    %4032 = vset.pattern.permute.xlu0 22
    %4033 = vperm.xlu0 %4032, %v1581
    %v4034 = vpop.permute.xlu0 %4033
    %4036 = vset.pattern.permute.xlu0 22
    %4037 = vperm.xlu0 %4036, %v1582
    %v4038 = vpop.permute.xlu0 %4037
    %4040 = vset.pattern.permute.xlu0 22
    %4041 = vperm.xlu0 %4040, %v1583
    %v4042 = vpop.permute.xlu0 %4041
    %4044 = vset.pattern.permute.xlu0 22
    %4045 = vperm.xlu0 %4044, %v1584
    %v4046 = vpop.permute.xlu0 %4045
    %4048 = vset.pattern.permute.xlu0 22
    %4049 = vperm.xlu0 %4048, %v1585
    %v4050 = vpop.permute.xlu0 %4049
    %4052 = vset.pattern.permute.xlu0 22
    %4053 = vperm.xlu0 %4052, %v1586
    %v4054 = vpop.permute.xlu0 %4053
    %4056 = vset.pattern.permute.xlu0 22
    %4057 = vperm.xlu0 %4056, %v1587
    %v4058 = vpop.permute.xlu0 %4057
    %v4060 = vlaneseq
    %v4061 = vshrl.u32 %v4060, 7
    %v4062 = vsub.s32 6, %v4061
    %v4063 = vrot.slane %v1572, %v4062
    %v4064 = vlaneseq
    %v4065 = vshrl.u32 %v4064, 7
    %v4066 = vsub.s32 6, %v4065
    %v4067 = vrot.slane %v1573, %v4066
    %v4068 = vlaneseq
    %v4069 = vshrl.u32 %v4068, 7
    %v4070 = vsub.s32 6, %v4069
    %v4071 = vrot.slane %v1574, %v4070
    %v4072 = vlaneseq
    %v4073 = vshrl.u32 %v4072, 7
    %v4074 = vsub.s32 6, %v4073
    %v4075 = vrot.slane %v1575, %v4074
    %v4076 = vmul.f32 %v4030, %v4063
    %v4077 = vmul.f32 %v4030, %v4067
    %v4078 = vmul.f32 %v4030, %v4071
    %v4079 = vmul.f32 %v4030, %v4075
    %v4080 = vmul.f32 %v4034, %v4063
    %v4081 = vmul.f32 %v4034, %v4067
    %v4082 = vmul.f32 %v4034, %v4071
    %v4083 = vmul.f32 %v4034, %v4075
    %v4084 = vmul.f32 %v4038, %v4063
    %v4085 = vmul.f32 %v4038, %v4067
    %v4086 = vmul.f32 %v4038, %v4071
    %v4087 = vmul.f32 %v4038, %v4075
    %v4088 = vmul.f32 %v4042, %v4063
    %v4089 = vmul.f32 %v4042, %v4067
    %v4090 = vmul.f32 %v4042, %v4071
    %v4091 = vmul.f32 %v4042, %v4075
    %v4092 = vmul.f32 %v4046, %v4063
    %v4093 = vmul.f32 %v4046, %v4067
    %v4094 = vmul.f32 %v4046, %v4071
    %v4095 = vmul.f32 %v4046, %v4075
    %v4096 = vmul.f32 %v4050, %v4063
    %v4097 = vmul.f32 %v4050, %v4067
    %v4098 = vmul.f32 %v4050, %v4071
    %v4099 = vmul.f32 %v4050, %v4075
    %v4100 = vmul.f32 %v4054, %v4063
    %v4101 = vmul.f32 %v4054, %v4067
    %v4102 = vmul.f32 %v4054, %v4071
    %v4103 = vmul.f32 %v4054, %v4075
    %v4104 = vmul.f32 %v4058, %v4063
    %v4105 = vmul.f32 %v4058, %v4067
    %v4106 = vmul.f32 %v4058, %v4071
    %v4107 = vmul.f32 %v4058, %v4075
    %v4108 = vadd.f32 %v3996, %v4076
    %v4109 = vadd.f32 %v3997, %v4077
    %v4110 = vadd.f32 %v3998, %v4078
    %v4111 = vadd.f32 %v3999, %v4079
    %v4112 = vadd.f32 %v4000, %v4080
    %v4113 = vadd.f32 %v4001, %v4081
    %v4114 = vadd.f32 %v4002, %v4082
    %v4115 = vadd.f32 %v4003, %v4083
    %v4116 = vadd.f32 %v4004, %v4084
    %v4117 = vadd.f32 %v4005, %v4085
    %v4118 = vadd.f32 %v4006, %v4086
    %v4119 = vadd.f32 %v4007, %v4087
    %v4120 = vadd.f32 %v4008, %v4088
    %v4121 = vadd.f32 %v4009, %v4089
    %v4122 = vadd.f32 %v4010, %v4090
    %v4123 = vadd.f32 %v4011, %v4091
    %v4124 = vadd.f32 %v4012, %v4092
    %v4125 = vadd.f32 %v4013, %v4093
    %v4126 = vadd.f32 %v4014, %v4094
    %v4127 = vadd.f32 %v4015, %v4095
    %v4128 = vadd.f32 %v4016, %v4096
    %v4129 = vadd.f32 %v4017, %v4097
    %v4130 = vadd.f32 %v4018, %v4098
    %v4131 = vadd.f32 %v4019, %v4099
    %v4132 = vadd.f32 %v4020, %v4100
    %v4133 = vadd.f32 %v4021, %v4101
    %v4134 = vadd.f32 %v4022, %v4102
    %v4135 = vadd.f32 %v4023, %v4103
    %v4136 = vadd.f32 %v4024, %v4104
    %v4137 = vadd.f32 %v4025, %v4105
    %v4138 = vadd.f32 %v4026, %v4106
    %v4139 = vadd.f32 %v4027, %v4107
    %4140 = vset.pattern.permute.xlu0 23
    %4141 = vperm.xlu0 %4140, %v1580
    %v4142 = vpop.permute.xlu0 %4141
    %4144 = vset.pattern.permute.xlu0 23
    %4145 = vperm.xlu0 %4144, %v1581
    %v4146 = vpop.permute.xlu0 %4145
    %4148 = vset.pattern.permute.xlu0 23
    %4149 = vperm.xlu0 %4148, %v1582
    %v4150 = vpop.permute.xlu0 %4149
    %4152 = vset.pattern.permute.xlu0 23
    %4153 = vperm.xlu0 %4152, %v1583
    %v4154 = vpop.permute.xlu0 %4153
    %4156 = vset.pattern.permute.xlu0 23
    %4157 = vperm.xlu0 %4156, %v1584
    %v4158 = vpop.permute.xlu0 %4157
    %4160 = vset.pattern.permute.xlu0 23
    %4161 = vperm.xlu0 %4160, %v1585
    %v4162 = vpop.permute.xlu0 %4161
    %4164 = vset.pattern.permute.xlu0 23
    %4165 = vperm.xlu0 %4164, %v1586
    %v4166 = vpop.permute.xlu0 %4165
    %4168 = vset.pattern.permute.xlu0 23
    %4169 = vperm.xlu0 %4168, %v1587
    %v4170 = vpop.permute.xlu0 %4169
    %v4172 = vlaneseq
    %v4173 = vshrl.u32 %v4172, 7
    %v4174 = vsub.s32 7, %v4173
    %v4175 = vrot.slane %v1572, %v4174
    %v4176 = vlaneseq
    %v4177 = vshrl.u32 %v4176, 7
    %v4178 = vsub.s32 7, %v4177
    %v4179 = vrot.slane %v1573, %v4178
    %v4180 = vlaneseq
    %v4181 = vshrl.u32 %v4180, 7
    %v4182 = vsub.s32 7, %v4181
    %v4183 = vrot.slane %v1574, %v4182
    %v4184 = vlaneseq
    %v4185 = vshrl.u32 %v4184, 7
    %v4186 = vsub.s32 7, %v4185
    %v4187 = vrot.slane %v1575, %v4186
    %v4188 = vmul.f32 %v4142, %v4175
    %v4189 = vmul.f32 %v4142, %v4179
    %v4190 = vmul.f32 %v4142, %v4183
    %v4191 = vmul.f32 %v4142, %v4187
    %v4192 = vmul.f32 %v4146, %v4175
    %v4193 = vmul.f32 %v4146, %v4179
    %v4194 = vmul.f32 %v4146, %v4183
    %v4195 = vmul.f32 %v4146, %v4187
    %v4196 = vmul.f32 %v4150, %v4175
    %v4197 = vmul.f32 %v4150, %v4179
    %v4198 = vmul.f32 %v4150, %v4183
    %v4199 = vmul.f32 %v4150, %v4187
    %v4200 = vmul.f32 %v4154, %v4175
    %v4201 = vmul.f32 %v4154, %v4179
    %v4202 = vmul.f32 %v4154, %v4183
    %v4203 = vmul.f32 %v4154, %v4187
    %v4204 = vmul.f32 %v4158, %v4175
    %v4205 = vmul.f32 %v4158, %v4179
    %v4206 = vmul.f32 %v4158, %v4183
    %v4207 = vmul.f32 %v4158, %v4187
    %v4208 = vmul.f32 %v4162, %v4175
    %v4209 = vmul.f32 %v4162, %v4179
    %v4210 = vmul.f32 %v4162, %v4183
    %v4211 = vmul.f32 %v4162, %v4187
    %v4212 = vmul.f32 %v4166, %v4175
    %v4213 = vmul.f32 %v4166, %v4179
    %v4214 = vmul.f32 %v4166, %v4183
    %v4215 = vmul.f32 %v4166, %v4187
    %v4216 = vmul.f32 %v4170, %v4175
    %v4217 = vmul.f32 %v4170, %v4179
    %v4218 = vmul.f32 %v4170, %v4183
    %v4219 = vmul.f32 %v4170, %v4187
    %v4220 = vadd.f32 %v4108, %v4188
    %v4221 = vadd.f32 %v4109, %v4189
    %v4222 = vadd.f32 %v4110, %v4190
    %v4223 = vadd.f32 %v4111, %v4191
    %v4224 = vadd.f32 %v4112, %v4192
    %v4225 = vadd.f32 %v4113, %v4193
    %v4226 = vadd.f32 %v4114, %v4194
    %v4227 = vadd.f32 %v4115, %v4195
    %v4228 = vadd.f32 %v4116, %v4196
    %v4229 = vadd.f32 %v4117, %v4197
    %v4230 = vadd.f32 %v4118, %v4198
    %v4231 = vadd.f32 %v4119, %v4199
    %v4232 = vadd.f32 %v4120, %v4200
    %v4233 = vadd.f32 %v4121, %v4201
    %v4234 = vadd.f32 %v4122, %v4202
    %v4235 = vadd.f32 %v4123, %v4203
    %v4236 = vadd.f32 %v4124, %v4204
    %v4237 = vadd.f32 %v4125, %v4205
    %v4238 = vadd.f32 %v4126, %v4206
    %v4239 = vadd.f32 %v4127, %v4207
    %v4240 = vadd.f32 %v4128, %v4208
    %v4241 = vadd.f32 %v4129, %v4209
    %v4242 = vadd.f32 %v4130, %v4210
    %v4243 = vadd.f32 %v4131, %v4211
    %v4244 = vadd.f32 %v4132, %v4212
    %v4245 = vadd.f32 %v4133, %v4213
    %v4246 = vadd.f32 %v4134, %v4214
    %v4247 = vadd.f32 %v4135, %v4215
    %v4248 = vadd.f32 %v4136, %v4216
    %v4249 = vadd.f32 %v4137, %v4217
    %v4250 = vadd.f32 %v4138, %v4218
    %v4251 = vadd.f32 %v4139, %v4219
    %4252 = vset.pattern.permute.xlu0 24
    %4253 = vperm.xlu0 %4252, %v1580
    %v4254 = vpop.permute.xlu0 %4253
    %4256 = vset.pattern.permute.xlu0 24
    %4257 = vperm.xlu0 %4256, %v1581
    %v4258 = vpop.permute.xlu0 %4257
    %4260 = vset.pattern.permute.xlu0 24
    %4261 = vperm.xlu0 %4260, %v1582
    %v4262 = vpop.permute.xlu0 %4261
    %4264 = vset.pattern.permute.xlu0 24
    %4265 = vperm.xlu0 %4264, %v1583
    %v4266 = vpop.permute.xlu0 %4265
    %4268 = vset.pattern.permute.xlu0 24
    %4269 = vperm.xlu0 %4268, %v1584
    %v4270 = vpop.permute.xlu0 %4269
    %4272 = vset.pattern.permute.xlu0 24
    %4273 = vperm.xlu0 %4272, %v1585
    %v4274 = vpop.permute.xlu0 %4273
    %4276 = vset.pattern.permute.xlu0 24
    %4277 = vperm.xlu0 %4276, %v1586
    %v4278 = vpop.permute.xlu0 %4277
    %4280 = vset.pattern.permute.xlu0 24
    %4281 = vperm.xlu0 %4280, %v1587
    %v4282 = vpop.permute.xlu0 %4281
    %v4284 = vlaneseq
    %v4285 = vshrl.u32 %v4284, 7
    %v4286 = vsub.s32 0, %v4285
    %v4287 = vrot.slane %v1576, %v4286
    %v4288 = vlaneseq
    %v4289 = vshrl.u32 %v4288, 7
    %v4290 = vsub.s32 0, %v4289
    %v4291 = vrot.slane %v1577, %v4290
    %v4292 = vlaneseq
    %v4293 = vshrl.u32 %v4292, 7
    %v4294 = vsub.s32 0, %v4293
    %v4295 = vrot.slane %v1578, %v4294
    %v4296 = vlaneseq
    %v4297 = vshrl.u32 %v4296, 7
    %v4298 = vsub.s32 0, %v4297
    %v4299 = vrot.slane %v1579, %v4298
    %v4300 = vmul.f32 %v4254, %v4287
    %v4301 = vmul.f32 %v4254, %v4291
    %v4302 = vmul.f32 %v4254, %v4295
    %v4303 = vmul.f32 %v4254, %v4299
    %v4304 = vmul.f32 %v4258, %v4287
    %v4305 = vmul.f32 %v4258, %v4291
    %v4306 = vmul.f32 %v4258, %v4295
    %v4307 = vmul.f32 %v4258, %v4299
    %v4308 = vmul.f32 %v4262, %v4287
    %v4309 = vmul.f32 %v4262, %v4291
    %v4310 = vmul.f32 %v4262, %v4295
    %v4311 = vmul.f32 %v4262, %v4299
    %v4312 = vmul.f32 %v4266, %v4287
    %v4313 = vmul.f32 %v4266, %v4291
    %v4314 = vmul.f32 %v4266, %v4295
    %v4315 = vmul.f32 %v4266, %v4299
    %v4316 = vmul.f32 %v4270, %v4287
    %v4317 = vmul.f32 %v4270, %v4291
    %v4318 = vmul.f32 %v4270, %v4295
    %v4319 = vmul.f32 %v4270, %v4299
    %v4320 = vmul.f32 %v4274, %v4287
    %v4321 = vmul.f32 %v4274, %v4291
    %v4322 = vmul.f32 %v4274, %v4295
    %v4323 = vmul.f32 %v4274, %v4299
    %v4324 = vmul.f32 %v4278, %v4287
    %v4325 = vmul.f32 %v4278, %v4291
    %v4326 = vmul.f32 %v4278, %v4295
    %v4327 = vmul.f32 %v4278, %v4299
    %v4328 = vmul.f32 %v4282, %v4287
    %v4329 = vmul.f32 %v4282, %v4291
    %v4330 = vmul.f32 %v4282, %v4295
    %v4331 = vmul.f32 %v4282, %v4299
    %v4332 = vadd.f32 %v4220, %v4300
    %v4333 = vadd.f32 %v4221, %v4301
    %v4334 = vadd.f32 %v4222, %v4302
    %v4335 = vadd.f32 %v4223, %v4303
    %v4336 = vadd.f32 %v4224, %v4304
    %v4337 = vadd.f32 %v4225, %v4305
    %v4338 = vadd.f32 %v4226, %v4306
    %v4339 = vadd.f32 %v4227, %v4307
    %v4340 = vadd.f32 %v4228, %v4308
    %v4341 = vadd.f32 %v4229, %v4309
    %v4342 = vadd.f32 %v4230, %v4310
    %v4343 = vadd.f32 %v4231, %v4311
    %v4344 = vadd.f32 %v4232, %v4312
    %v4345 = vadd.f32 %v4233, %v4313
    %v4346 = vadd.f32 %v4234, %v4314
    %v4347 = vadd.f32 %v4235, %v4315
    %v4348 = vadd.f32 %v4236, %v4316
    %v4349 = vadd.f32 %v4237, %v4317
    %v4350 = vadd.f32 %v4238, %v4318
    %v4351 = vadd.f32 %v4239, %v4319
    %v4352 = vadd.f32 %v4240, %v4320
    %v4353 = vadd.f32 %v4241, %v4321
    %v4354 = vadd.f32 %v4242, %v4322
    %v4355 = vadd.f32 %v4243, %v4323
    %v4356 = vadd.f32 %v4244, %v4324
    %v4357 = vadd.f32 %v4245, %v4325
    %v4358 = vadd.f32 %v4246, %v4326
    %v4359 = vadd.f32 %v4247, %v4327
    %v4360 = vadd.f32 %v4248, %v4328
    %v4361 = vadd.f32 %v4249, %v4329
    %v4362 = vadd.f32 %v4250, %v4330
    %v4363 = vadd.f32 %v4251, %v4331
    %4364 = vset.pattern.permute.xlu0 25
    %4365 = vperm.xlu0 %4364, %v1580
    %v4366 = vpop.permute.xlu0 %4365
    %4368 = vset.pattern.permute.xlu0 25
    %4369 = vperm.xlu0 %4368, %v1581
    %v4370 = vpop.permute.xlu0 %4369
    %4372 = vset.pattern.permute.xlu0 25
    %4373 = vperm.xlu0 %4372, %v1582
    %v4374 = vpop.permute.xlu0 %4373
    %4376 = vset.pattern.permute.xlu0 25
    %4377 = vperm.xlu0 %4376, %v1583
    %v4378 = vpop.permute.xlu0 %4377
    %4380 = vset.pattern.permute.xlu0 25
    %4381 = vperm.xlu0 %4380, %v1584
    %v4382 = vpop.permute.xlu0 %4381
    %4384 = vset.pattern.permute.xlu0 25
    %4385 = vperm.xlu0 %4384, %v1585
    %v4386 = vpop.permute.xlu0 %4385
    %4388 = vset.pattern.permute.xlu0 25
    %4389 = vperm.xlu0 %4388, %v1586
    %v4390 = vpop.permute.xlu0 %4389
    %4392 = vset.pattern.permute.xlu0 25
    %4393 = vperm.xlu0 %4392, %v1587
    %v4394 = vpop.permute.xlu0 %4393
    %v4396 = vlaneseq
    %v4397 = vshrl.u32 %v4396, 7
    %v4398 = vsub.s32 1, %v4397
    %v4399 = vrot.slane %v1576, %v4398
    %v4400 = vlaneseq
    %v4401 = vshrl.u32 %v4400, 7
    %v4402 = vsub.s32 1, %v4401
    %v4403 = vrot.slane %v1577, %v4402
    %v4404 = vlaneseq
    %v4405 = vshrl.u32 %v4404, 7
    %v4406 = vsub.s32 1, %v4405
    %v4407 = vrot.slane %v1578, %v4406
    %v4408 = vlaneseq
    %v4409 = vshrl.u32 %v4408, 7
    %v4410 = vsub.s32 1, %v4409
    %v4411 = vrot.slane %v1579, %v4410
    %v4412 = vmul.f32 %v4366, %v4399
    %v4413 = vmul.f32 %v4366, %v4403
    %v4414 = vmul.f32 %v4366, %v4407
    %v4415 = vmul.f32 %v4366, %v4411
    %v4416 = vmul.f32 %v4370, %v4399
    %v4417 = vmul.f32 %v4370, %v4403
    %v4418 = vmul.f32 %v4370, %v4407
    %v4419 = vmul.f32 %v4370, %v4411
    %v4420 = vmul.f32 %v4374, %v4399
    %v4421 = vmul.f32 %v4374, %v4403
    %v4422 = vmul.f32 %v4374, %v4407
    %v4423 = vmul.f32 %v4374, %v4411
    %v4424 = vmul.f32 %v4378, %v4399
    %v4425 = vmul.f32 %v4378, %v4403
    %v4426 = vmul.f32 %v4378, %v4407
    %v4427 = vmul.f32 %v4378, %v4411
    %v4428 = vmul.f32 %v4382, %v4399
    %v4429 = vmul.f32 %v4382, %v4403
    %v4430 = vmul.f32 %v4382, %v4407
    %v4431 = vmul.f32 %v4382, %v4411
    %v4432 = vmul.f32 %v4386, %v4399
    %v4433 = vmul.f32 %v4386, %v4403
    %v4434 = vmul.f32 %v4386, %v4407
    %v4435 = vmul.f32 %v4386, %v4411
    %v4436 = vmul.f32 %v4390, %v4399
    %v4437 = vmul.f32 %v4390, %v4403
    %v4438 = vmul.f32 %v4390, %v4407
    %v4439 = vmul.f32 %v4390, %v4411
    %v4440 = vmul.f32 %v4394, %v4399
    %v4441 = vmul.f32 %v4394, %v4403
    %v4442 = vmul.f32 %v4394, %v4407
    %v4443 = vmul.f32 %v4394, %v4411
    %v4444 = vadd.f32 %v4332, %v4412
    %v4445 = vadd.f32 %v4333, %v4413
    %v4446 = vadd.f32 %v4334, %v4414
    %v4447 = vadd.f32 %v4335, %v4415
    %v4448 = vadd.f32 %v4336, %v4416
    %v4449 = vadd.f32 %v4337, %v4417
    %v4450 = vadd.f32 %v4338, %v4418
    %v4451 = vadd.f32 %v4339, %v4419
    %v4452 = vadd.f32 %v4340, %v4420
    %v4453 = vadd.f32 %v4341, %v4421
    %v4454 = vadd.f32 %v4342, %v4422
    %v4455 = vadd.f32 %v4343, %v4423
    %v4456 = vadd.f32 %v4344, %v4424
    %v4457 = vadd.f32 %v4345, %v4425
    %v4458 = vadd.f32 %v4346, %v4426
    %v4459 = vadd.f32 %v4347, %v4427
    %v4460 = vadd.f32 %v4348, %v4428
    %v4461 = vadd.f32 %v4349, %v4429
    %v4462 = vadd.f32 %v4350, %v4430
    %v4463 = vadd.f32 %v4351, %v4431
    %v4464 = vadd.f32 %v4352, %v4432
    %v4465 = vadd.f32 %v4353, %v4433
    %v4466 = vadd.f32 %v4354, %v4434
    %v4467 = vadd.f32 %v4355, %v4435
    %v4468 = vadd.f32 %v4356, %v4436
    %v4469 = vadd.f32 %v4357, %v4437
    %v4470 = vadd.f32 %v4358, %v4438
    %v4471 = vadd.f32 %v4359, %v4439
    %v4472 = vadd.f32 %v4360, %v4440
    %v4473 = vadd.f32 %v4361, %v4441
    %v4474 = vadd.f32 %v4362, %v4442
    %v4475 = vadd.f32 %v4363, %v4443
    %4476 = vset.pattern.permute.xlu0 26
    %4477 = vperm.xlu0 %4476, %v1580
    %v4478 = vpop.permute.xlu0 %4477
    %4480 = vset.pattern.permute.xlu0 26
    %4481 = vperm.xlu0 %4480, %v1581
    %v4482 = vpop.permute.xlu0 %4481
    %4484 = vset.pattern.permute.xlu0 26
    %4485 = vperm.xlu0 %4484, %v1582
    %v4486 = vpop.permute.xlu0 %4485
    %4488 = vset.pattern.permute.xlu0 26
    %4489 = vperm.xlu0 %4488, %v1583
    %v4490 = vpop.permute.xlu0 %4489
    %4492 = vset.pattern.permute.xlu0 26
    %4493 = vperm.xlu0 %4492, %v1584
    %v4494 = vpop.permute.xlu0 %4493
    %4496 = vset.pattern.permute.xlu0 26
    %4497 = vperm.xlu0 %4496, %v1585
    %v4498 = vpop.permute.xlu0 %4497
    %4500 = vset.pattern.permute.xlu0 26
    %4501 = vperm.xlu0 %4500, %v1586
    %v4502 = vpop.permute.xlu0 %4501
    %4504 = vset.pattern.permute.xlu0 26
    %4505 = vperm.xlu0 %4504, %v1587
    %v4506 = vpop.permute.xlu0 %4505
    %v4508 = vlaneseq
    %v4509 = vshrl.u32 %v4508, 7
    %v4510 = vsub.s32 2, %v4509
    %v4511 = vrot.slane %v1576, %v4510
    %v4512 = vlaneseq
    %v4513 = vshrl.u32 %v4512, 7
    %v4514 = vsub.s32 2, %v4513
    %v4515 = vrot.slane %v1577, %v4514
    %v4516 = vlaneseq
    %v4517 = vshrl.u32 %v4516, 7
    %v4518 = vsub.s32 2, %v4517
    %v4519 = vrot.slane %v1578, %v4518
    %v4520 = vlaneseq
    %v4521 = vshrl.u32 %v4520, 7
    %v4522 = vsub.s32 2, %v4521
    %v4523 = vrot.slane %v1579, %v4522
    %v4524 = vmul.f32 %v4478, %v4511
    %v4525 = vmul.f32 %v4478, %v4515
    %v4526 = vmul.f32 %v4478, %v4519
    %v4527 = vmul.f32 %v4478, %v4523
    %v4528 = vmul.f32 %v4482, %v4511
    %v4529 = vmul.f32 %v4482, %v4515
    %v4530 = vmul.f32 %v4482, %v4519
    %v4531 = vmul.f32 %v4482, %v4523
    %v4532 = vmul.f32 %v4486, %v4511
    %v4533 = vmul.f32 %v4486, %v4515
    %v4534 = vmul.f32 %v4486, %v4519
    %v4535 = vmul.f32 %v4486, %v4523
    %v4536 = vmul.f32 %v4490, %v4511
    %v4537 = vmul.f32 %v4490, %v4515
    %v4538 = vmul.f32 %v4490, %v4519
    %v4539 = vmul.f32 %v4490, %v4523
    %v4540 = vmul.f32 %v4494, %v4511
    %v4541 = vmul.f32 %v4494, %v4515
    %v4542 = vmul.f32 %v4494, %v4519
    %v4543 = vmul.f32 %v4494, %v4523
    %v4544 = vmul.f32 %v4498, %v4511
    %v4545 = vmul.f32 %v4498, %v4515
    %v4546 = vmul.f32 %v4498, %v4519
    %v4547 = vmul.f32 %v4498, %v4523
    %v4548 = vmul.f32 %v4502, %v4511
    %v4549 = vmul.f32 %v4502, %v4515
    %v4550 = vmul.f32 %v4502, %v4519
    %v4551 = vmul.f32 %v4502, %v4523
    %v4552 = vmul.f32 %v4506, %v4511
    %v4553 = vmul.f32 %v4506, %v4515
    %v4554 = vmul.f32 %v4506, %v4519
    %v4555 = vmul.f32 %v4506, %v4523
    %v4556 = vadd.f32 %v4444, %v4524
    %v4557 = vadd.f32 %v4445, %v4525
    %v4558 = vadd.f32 %v4446, %v4526
    %v4559 = vadd.f32 %v4447, %v4527
    %v4560 = vadd.f32 %v4448, %v4528
    %v4561 = vadd.f32 %v4449, %v4529
    %v4562 = vadd.f32 %v4450, %v4530
    %v4563 = vadd.f32 %v4451, %v4531
    %v4564 = vadd.f32 %v4452, %v4532
    %v4565 = vadd.f32 %v4453, %v4533
    %v4566 = vadd.f32 %v4454, %v4534
    %v4567 = vadd.f32 %v4455, %v4535
    %v4568 = vadd.f32 %v4456, %v4536
    %v4569 = vadd.f32 %v4457, %v4537
    %v4570 = vadd.f32 %v4458, %v4538
    %v4571 = vadd.f32 %v4459, %v4539
    %v4572 = vadd.f32 %v4460, %v4540
    %v4573 = vadd.f32 %v4461, %v4541
    %v4574 = vadd.f32 %v4462, %v4542
    %v4575 = vadd.f32 %v4463, %v4543
    %v4576 = vadd.f32 %v4464, %v4544
    %v4577 = vadd.f32 %v4465, %v4545
    %v4578 = vadd.f32 %v4466, %v4546
    %v4579 = vadd.f32 %v4467, %v4547
    %v4580 = vadd.f32 %v4468, %v4548
    %v4581 = vadd.f32 %v4469, %v4549
    %v4582 = vadd.f32 %v4470, %v4550
    %v4583 = vadd.f32 %v4471, %v4551
    %v4584 = vadd.f32 %v4472, %v4552
    %v4585 = vadd.f32 %v4473, %v4553
    %v4586 = vadd.f32 %v4474, %v4554
    %v4587 = vadd.f32 %v4475, %v4555
    %4588 = vset.pattern.permute.xlu0 27
    %4589 = vperm.xlu0 %4588, %v1580
    %v4590 = vpop.permute.xlu0 %4589
    %4592 = vset.pattern.permute.xlu0 27
    %4593 = vperm.xlu0 %4592, %v1581
    %v4594 = vpop.permute.xlu0 %4593
    %4596 = vset.pattern.permute.xlu0 27
    %4597 = vperm.xlu0 %4596, %v1582
    %v4598 = vpop.permute.xlu0 %4597
    %4600 = vset.pattern.permute.xlu0 27
    %4601 = vperm.xlu0 %4600, %v1583
    %v4602 = vpop.permute.xlu0 %4601
    %4604 = vset.pattern.permute.xlu0 27
    %4605 = vperm.xlu0 %4604, %v1584
    %v4606 = vpop.permute.xlu0 %4605
    %4608 = vset.pattern.permute.xlu0 27
    %4609 = vperm.xlu0 %4608, %v1585
    %v4610 = vpop.permute.xlu0 %4609
    %4612 = vset.pattern.permute.xlu0 27
    %4613 = vperm.xlu0 %4612, %v1586
    %v4614 = vpop.permute.xlu0 %4613
    %4616 = vset.pattern.permute.xlu0 27
    %4617 = vperm.xlu0 %4616, %v1587
    %v4618 = vpop.permute.xlu0 %4617
    %v4620 = vlaneseq
    %v4621 = vshrl.u32 %v4620, 7
    %v4622 = vsub.s32 3, %v4621
    %v4623 = vrot.slane %v1576, %v4622
    %v4624 = vlaneseq
    %v4625 = vshrl.u32 %v4624, 7
    %v4626 = vsub.s32 3, %v4625
    %v4627 = vrot.slane %v1577, %v4626
    %v4628 = vlaneseq
    %v4629 = vshrl.u32 %v4628, 7
    %v4630 = vsub.s32 3, %v4629
    %v4631 = vrot.slane %v1578, %v4630
    %v4632 = vlaneseq
    %v4633 = vshrl.u32 %v4632, 7
    %v4634 = vsub.s32 3, %v4633
    %v4635 = vrot.slane %v1579, %v4634
    %v4636 = vmul.f32 %v4590, %v4623
    %v4637 = vmul.f32 %v4590, %v4627
    %v4638 = vmul.f32 %v4590, %v4631
    %v4639 = vmul.f32 %v4590, %v4635
    %v4640 = vmul.f32 %v4594, %v4623
    %v4641 = vmul.f32 %v4594, %v4627
    %v4642 = vmul.f32 %v4594, %v4631
    %v4643 = vmul.f32 %v4594, %v4635
    %v4644 = vmul.f32 %v4598, %v4623
    %v4645 = vmul.f32 %v4598, %v4627
    %v4646 = vmul.f32 %v4598, %v4631
    %v4647 = vmul.f32 %v4598, %v4635
    %v4648 = vmul.f32 %v4602, %v4623
    %v4649 = vmul.f32 %v4602, %v4627
    %v4650 = vmul.f32 %v4602, %v4631
    %v4651 = vmul.f32 %v4602, %v4635
    %v4652 = vmul.f32 %v4606, %v4623
    %v4653 = vmul.f32 %v4606, %v4627
    %v4654 = vmul.f32 %v4606, %v4631
    %v4655 = vmul.f32 %v4606, %v4635
    %v4656 = vmul.f32 %v4610, %v4623
    %v4657 = vmul.f32 %v4610, %v4627
    %v4658 = vmul.f32 %v4610, %v4631
    %v4659 = vmul.f32 %v4610, %v4635
    %v4660 = vmul.f32 %v4614, %v4623
    %v4661 = vmul.f32 %v4614, %v4627
    %v4662 = vmul.f32 %v4614, %v4631
    %v4663 = vmul.f32 %v4614, %v4635
    %v4664 = vmul.f32 %v4618, %v4623
    %v4665 = vmul.f32 %v4618, %v4627
    %v4666 = vmul.f32 %v4618, %v4631
    %v4667 = vmul.f32 %v4618, %v4635
    %v4668 = vadd.f32 %v4556, %v4636
    %v4669 = vadd.f32 %v4557, %v4637
    %v4670 = vadd.f32 %v4558, %v4638
    %v4671 = vadd.f32 %v4559, %v4639
    %v4672 = vadd.f32 %v4560, %v4640
    %v4673 = vadd.f32 %v4561, %v4641
    %v4674 = vadd.f32 %v4562, %v4642
    %v4675 = vadd.f32 %v4563, %v4643
    %v4676 = vadd.f32 %v4564, %v4644
    %v4677 = vadd.f32 %v4565, %v4645
    %v4678 = vadd.f32 %v4566, %v4646
    %v4679 = vadd.f32 %v4567, %v4647
    %v4680 = vadd.f32 %v4568, %v4648
    %v4681 = vadd.f32 %v4569, %v4649
    %v4682 = vadd.f32 %v4570, %v4650
    %v4683 = vadd.f32 %v4571, %v4651
    %v4684 = vadd.f32 %v4572, %v4652
    %v4685 = vadd.f32 %v4573, %v4653
    %v4686 = vadd.f32 %v4574, %v4654
    %v4687 = vadd.f32 %v4575, %v4655
    %v4688 = vadd.f32 %v4576, %v4656
    %v4689 = vadd.f32 %v4577, %v4657
    %v4690 = vadd.f32 %v4578, %v4658
    %v4691 = vadd.f32 %v4579, %v4659
    %v4692 = vadd.f32 %v4580, %v4660
    %v4693 = vadd.f32 %v4581, %v4661
    %v4694 = vadd.f32 %v4582, %v4662
    %v4695 = vadd.f32 %v4583, %v4663
    %v4696 = vadd.f32 %v4584, %v4664
    %v4697 = vadd.f32 %v4585, %v4665
    %v4698 = vadd.f32 %v4586, %v4666
    %v4699 = vadd.f32 %v4587, %v4667
    %4700 = vset.pattern.permute.xlu0 28
    %4701 = vperm.xlu0 %4700, %v1580
    %v4702 = vpop.permute.xlu0 %4701
    %4704 = vset.pattern.permute.xlu0 28
    %4705 = vperm.xlu0 %4704, %v1581
    %v4706 = vpop.permute.xlu0 %4705
    %4708 = vset.pattern.permute.xlu0 28
    %4709 = vperm.xlu0 %4708, %v1582
    %v4710 = vpop.permute.xlu0 %4709
    %4712 = vset.pattern.permute.xlu0 28
    %4713 = vperm.xlu0 %4712, %v1583
    %v4714 = vpop.permute.xlu0 %4713
    %4716 = vset.pattern.permute.xlu0 28
    %4717 = vperm.xlu0 %4716, %v1584
    %v4718 = vpop.permute.xlu0 %4717
    %4720 = vset.pattern.permute.xlu0 28
    %4721 = vperm.xlu0 %4720, %v1585
    %v4722 = vpop.permute.xlu0 %4721
    %4724 = vset.pattern.permute.xlu0 28
    %4725 = vperm.xlu0 %4724, %v1586
    %v4726 = vpop.permute.xlu0 %4725
    %4728 = vset.pattern.permute.xlu0 28
    %4729 = vperm.xlu0 %4728, %v1587
    %v4730 = vpop.permute.xlu0 %4729
    %v4732 = vlaneseq
    %v4733 = vshrl.u32 %v4732, 7
    %v4734 = vsub.s32 4, %v4733
    %v4735 = vrot.slane %v1576, %v4734
    %v4736 = vlaneseq
    %v4737 = vshrl.u32 %v4736, 7
    %v4738 = vsub.s32 4, %v4737
    %v4739 = vrot.slane %v1577, %v4738
    %v4740 = vlaneseq
    %v4741 = vshrl.u32 %v4740, 7
    %v4742 = vsub.s32 4, %v4741
    %v4743 = vrot.slane %v1578, %v4742
    %v4744 = vlaneseq
    %v4745 = vshrl.u32 %v4744, 7
    %v4746 = vsub.s32 4, %v4745
    %v4747 = vrot.slane %v1579, %v4746
    %v4748 = vmul.f32 %v4702, %v4735
    %v4749 = vmul.f32 %v4702, %v4739
    %v4750 = vmul.f32 %v4702, %v4743
    %v4751 = vmul.f32 %v4702, %v4747
    %v4752 = vmul.f32 %v4706, %v4735
    %v4753 = vmul.f32 %v4706, %v4739
    %v4754 = vmul.f32 %v4706, %v4743
    %v4755 = vmul.f32 %v4706, %v4747
    %v4756 = vmul.f32 %v4710, %v4735
    %v4757 = vmul.f32 %v4710, %v4739
    %v4758 = vmul.f32 %v4710, %v4743
    %v4759 = vmul.f32 %v4710, %v4747
    %v4760 = vmul.f32 %v4714, %v4735
    %v4761 = vmul.f32 %v4714, %v4739
    %v4762 = vmul.f32 %v4714, %v4743
    %v4763 = vmul.f32 %v4714, %v4747
    %v4764 = vmul.f32 %v4718, %v4735
    %v4765 = vmul.f32 %v4718, %v4739
    %v4766 = vmul.f32 %v4718, %v4743
    %v4767 = vmul.f32 %v4718, %v4747
    %v4768 = vmul.f32 %v4722, %v4735
    %v4769 = vmul.f32 %v4722, %v4739
    %v4770 = vmul.f32 %v4722, %v4743
    %v4771 = vmul.f32 %v4722, %v4747
    %v4772 = vmul.f32 %v4726, %v4735
    %v4773 = vmul.f32 %v4726, %v4739
    %v4774 = vmul.f32 %v4726, %v4743
    %v4775 = vmul.f32 %v4726, %v4747
    %v4776 = vmul.f32 %v4730, %v4735
    %v4777 = vmul.f32 %v4730, %v4739
    %v4778 = vmul.f32 %v4730, %v4743
    %v4779 = vmul.f32 %v4730, %v4747
    %v4780 = vadd.f32 %v4668, %v4748
    %v4781 = vadd.f32 %v4669, %v4749
    %v4782 = vadd.f32 %v4670, %v4750
    %v4783 = vadd.f32 %v4671, %v4751
    %v4784 = vadd.f32 %v4672, %v4752
    %v4785 = vadd.f32 %v4673, %v4753
    %v4786 = vadd.f32 %v4674, %v4754
    %v4787 = vadd.f32 %v4675, %v4755
    %v4788 = vadd.f32 %v4676, %v4756
    %v4789 = vadd.f32 %v4677, %v4757
    %v4790 = vadd.f32 %v4678, %v4758
    %v4791 = vadd.f32 %v4679, %v4759
    %v4792 = vadd.f32 %v4680, %v4760
    %v4793 = vadd.f32 %v4681, %v4761
    %v4794 = vadd.f32 %v4682, %v4762
    %v4795 = vadd.f32 %v4683, %v4763
    %v4796 = vadd.f32 %v4684, %v4764
    %v4797 = vadd.f32 %v4685, %v4765
    %v4798 = vadd.f32 %v4686, %v4766
    %v4799 = vadd.f32 %v4687, %v4767
    %v4800 = vadd.f32 %v4688, %v4768
    %v4801 = vadd.f32 %v4689, %v4769
    %v4802 = vadd.f32 %v4690, %v4770
    %v4803 = vadd.f32 %v4691, %v4771
    %v4804 = vadd.f32 %v4692, %v4772
    %v4805 = vadd.f32 %v4693, %v4773
    %v4806 = vadd.f32 %v4694, %v4774
    %v4807 = vadd.f32 %v4695, %v4775
    %v4808 = vadd.f32 %v4696, %v4776
    %v4809 = vadd.f32 %v4697, %v4777
    %v4810 = vadd.f32 %v4698, %v4778
    %v4811 = vadd.f32 %v4699, %v4779
    %4812 = vset.pattern.permute.xlu0 29
    %4813 = vperm.xlu0 %4812, %v1580
    %v4814 = vpop.permute.xlu0 %4813
    %4816 = vset.pattern.permute.xlu0 29
    %4817 = vperm.xlu0 %4816, %v1581
    %v4818 = vpop.permute.xlu0 %4817
    %4820 = vset.pattern.permute.xlu0 29
    %4821 = vperm.xlu0 %4820, %v1582
    %v4822 = vpop.permute.xlu0 %4821
    %4824 = vset.pattern.permute.xlu0 29
    %4825 = vperm.xlu0 %4824, %v1583
    %v4826 = vpop.permute.xlu0 %4825
    %4828 = vset.pattern.permute.xlu0 29
    %4829 = vperm.xlu0 %4828, %v1584
    %v4830 = vpop.permute.xlu0 %4829
    %4832 = vset.pattern.permute.xlu0 29
    %4833 = vperm.xlu0 %4832, %v1585
    %v4834 = vpop.permute.xlu0 %4833
    %4836 = vset.pattern.permute.xlu0 29
    %4837 = vperm.xlu0 %4836, %v1586
    %v4838 = vpop.permute.xlu0 %4837
    %4840 = vset.pattern.permute.xlu0 29
    %4841 = vperm.xlu0 %4840, %v1587
    %v4842 = vpop.permute.xlu0 %4841
    %v4844 = vlaneseq
    %v4845 = vshrl.u32 %v4844, 7
    %v4846 = vsub.s32 5, %v4845
    %v4847 = vrot.slane %v1576, %v4846
    %v4848 = vlaneseq
    %v4849 = vshrl.u32 %v4848, 7
    %v4850 = vsub.s32 5, %v4849
    %v4851 = vrot.slane %v1577, %v4850
    %v4852 = vlaneseq
    %v4853 = vshrl.u32 %v4852, 7
    %v4854 = vsub.s32 5, %v4853
    %v4855 = vrot.slane %v1578, %v4854
    %v4856 = vlaneseq
    %v4857 = vshrl.u32 %v4856, 7
    %v4858 = vsub.s32 5, %v4857
    %v4859 = vrot.slane %v1579, %v4858
    %v4860 = vmul.f32 %v4814, %v4847
    %v4861 = vmul.f32 %v4814, %v4851
    %v4862 = vmul.f32 %v4814, %v4855
    %v4863 = vmul.f32 %v4814, %v4859
    %v4864 = vmul.f32 %v4818, %v4847
    %v4865 = vmul.f32 %v4818, %v4851
    %v4866 = vmul.f32 %v4818, %v4855
    %v4867 = vmul.f32 %v4818, %v4859
    %v4868 = vmul.f32 %v4822, %v4847
    %v4869 = vmul.f32 %v4822, %v4851
    %v4870 = vmul.f32 %v4822, %v4855
    %v4871 = vmul.f32 %v4822, %v4859
    %v4872 = vmul.f32 %v4826, %v4847
    %v4873 = vmul.f32 %v4826, %v4851
    %v4874 = vmul.f32 %v4826, %v4855
    %v4875 = vmul.f32 %v4826, %v4859
    %v4876 = vmul.f32 %v4830, %v4847
    %v4877 = vmul.f32 %v4830, %v4851
    %v4878 = vmul.f32 %v4830, %v4855
    %v4879 = vmul.f32 %v4830, %v4859
    %v4880 = vmul.f32 %v4834, %v4847
    %v4881 = vmul.f32 %v4834, %v4851
    %v4882 = vmul.f32 %v4834, %v4855
    %v4883 = vmul.f32 %v4834, %v4859
    %v4884 = vmul.f32 %v4838, %v4847
    %v4885 = vmul.f32 %v4838, %v4851
    %v4886 = vmul.f32 %v4838, %v4855
    %v4887 = vmul.f32 %v4838, %v4859
    %v4888 = vmul.f32 %v4842, %v4847
    %v4889 = vmul.f32 %v4842, %v4851
    %v4890 = vmul.f32 %v4842, %v4855
    %v4891 = vmul.f32 %v4842, %v4859
    %v4892 = vadd.f32 %v4780, %v4860
    %v4893 = vadd.f32 %v4781, %v4861
    %v4894 = vadd.f32 %v4782, %v4862
    %v4895 = vadd.f32 %v4783, %v4863
    %v4896 = vadd.f32 %v4784, %v4864
    %v4897 = vadd.f32 %v4785, %v4865
    %v4898 = vadd.f32 %v4786, %v4866
    %v4899 = vadd.f32 %v4787, %v4867
    %v4900 = vadd.f32 %v4788, %v4868
    %v4901 = vadd.f32 %v4789, %v4869
    %v4902 = vadd.f32 %v4790, %v4870
    %v4903 = vadd.f32 %v4791, %v4871
    %v4904 = vadd.f32 %v4792, %v4872
    %v4905 = vadd.f32 %v4793, %v4873
    %v4906 = vadd.f32 %v4794, %v4874
    %v4907 = vadd.f32 %v4795, %v4875
    %v4908 = vadd.f32 %v4796, %v4876
    %v4909 = vadd.f32 %v4797, %v4877
    %v4910 = vadd.f32 %v4798, %v4878
    %v4911 = vadd.f32 %v4799, %v4879
    %v4912 = vadd.f32 %v4800, %v4880
    %v4913 = vadd.f32 %v4801, %v4881
    %v4914 = vadd.f32 %v4802, %v4882
    %v4915 = vadd.f32 %v4803, %v4883
    %v4916 = vadd.f32 %v4804, %v4884
    %v4917 = vadd.f32 %v4805, %v4885
    %v4918 = vadd.f32 %v4806, %v4886
    %v4919 = vadd.f32 %v4807, %v4887
    %v4920 = vadd.f32 %v4808, %v4888
    %v4921 = vadd.f32 %v4809, %v4889
    %v4922 = vadd.f32 %v4810, %v4890
    %v4923 = vadd.f32 %v4811, %v4891
    %4924 = vset.pattern.permute.xlu0 30
    %4925 = vperm.xlu0 %4924, %v1580
    %v4926 = vpop.permute.xlu0 %4925
    %4928 = vset.pattern.permute.xlu0 30
    %4929 = vperm.xlu0 %4928, %v1581
    %v4930 = vpop.permute.xlu0 %4929
    %4932 = vset.pattern.permute.xlu0 30
    %4933 = vperm.xlu0 %4932, %v1582
    %v4934 = vpop.permute.xlu0 %4933
    %4936 = vset.pattern.permute.xlu0 30
    %4937 = vperm.xlu0 %4936, %v1583
    %v4938 = vpop.permute.xlu0 %4937
    %4940 = vset.pattern.permute.xlu0 30
    %4941 = vperm.xlu0 %4940, %v1584
    %v4942 = vpop.permute.xlu0 %4941
    %4944 = vset.pattern.permute.xlu0 30
    %4945 = vperm.xlu0 %4944, %v1585
    %v4946 = vpop.permute.xlu0 %4945
    %4948 = vset.pattern.permute.xlu0 30
    %4949 = vperm.xlu0 %4948, %v1586
    %v4950 = vpop.permute.xlu0 %4949
    %4952 = vset.pattern.permute.xlu0 30
    %4953 = vperm.xlu0 %4952, %v1587
    %v4954 = vpop.permute.xlu0 %4953
    %v4956 = vlaneseq
    %v4957 = vshrl.u32 %v4956, 7
    %v4958 = vsub.s32 6, %v4957
    %v4959 = vrot.slane %v1576, %v4958
    %v4960 = vlaneseq
    %v4961 = vshrl.u32 %v4960, 7
    %v4962 = vsub.s32 6, %v4961
    %v4963 = vrot.slane %v1577, %v4962
    %v4964 = vlaneseq
    %v4965 = vshrl.u32 %v4964, 7
    %v4966 = vsub.s32 6, %v4965
    %v4967 = vrot.slane %v1578, %v4966
    %v4968 = vlaneseq
    %v4969 = vshrl.u32 %v4968, 7
    %v4970 = vsub.s32 6, %v4969
    %v4971 = vrot.slane %v1579, %v4970
    %v4972 = vmul.f32 %v4926, %v4959
    %v4973 = vmul.f32 %v4926, %v4963
    %v4974 = vmul.f32 %v4926, %v4967
    %v4975 = vmul.f32 %v4926, %v4971
    %v4976 = vmul.f32 %v4930, %v4959
    %v4977 = vmul.f32 %v4930, %v4963
    %v4978 = vmul.f32 %v4930, %v4967
    %v4979 = vmul.f32 %v4930, %v4971
    %v4980 = vmul.f32 %v4934, %v4959
    %v4981 = vmul.f32 %v4934, %v4963
    %v4982 = vmul.f32 %v4934, %v4967
    %v4983 = vmul.f32 %v4934, %v4971
    %v4984 = vmul.f32 %v4938, %v4959
    %v4985 = vmul.f32 %v4938, %v4963
    %v4986 = vmul.f32 %v4938, %v4967
    %v4987 = vmul.f32 %v4938, %v4971
    %v4988 = vmul.f32 %v4942, %v4959
    %v4989 = vmul.f32 %v4942, %v4963
    %v4990 = vmul.f32 %v4942, %v4967
    %v4991 = vmul.f32 %v4942, %v4971
    %v4992 = vmul.f32 %v4946, %v4959
    %v4993 = vmul.f32 %v4946, %v4963
    %v4994 = vmul.f32 %v4946, %v4967
    %v4995 = vmul.f32 %v4946, %v4971
    %v4996 = vmul.f32 %v4950, %v4959
    %v4997 = vmul.f32 %v4950, %v4963
    %v4998 = vmul.f32 %v4950, %v4967
    %v4999 = vmul.f32 %v4950, %v4971
    %v5000 = vmul.f32 %v4954, %v4959
    %v5001 = vmul.f32 %v4954, %v4963
    %v5002 = vmul.f32 %v4954, %v4967
    %v5003 = vmul.f32 %v4954, %v4971
    %v5004 = vadd.f32 %v4892, %v4972
    %v5005 = vadd.f32 %v4893, %v4973
    %v5006 = vadd.f32 %v4894, %v4974
    %v5007 = vadd.f32 %v4895, %v4975
    %v5008 = vadd.f32 %v4896, %v4976
    %v5009 = vadd.f32 %v4897, %v4977
    %v5010 = vadd.f32 %v4898, %v4978
    %v5011 = vadd.f32 %v4899, %v4979
    %v5012 = vadd.f32 %v4900, %v4980
    %v5013 = vadd.f32 %v4901, %v4981
    %v5014 = vadd.f32 %v4902, %v4982
    %v5015 = vadd.f32 %v4903, %v4983
    %v5016 = vadd.f32 %v4904, %v4984
    %v5017 = vadd.f32 %v4905, %v4985
    %v5018 = vadd.f32 %v4906, %v4986
    %v5019 = vadd.f32 %v4907, %v4987
    %v5020 = vadd.f32 %v4908, %v4988
    %v5021 = vadd.f32 %v4909, %v4989
    %v5022 = vadd.f32 %v4910, %v4990
    %v5023 = vadd.f32 %v4911, %v4991
    %v5024 = vadd.f32 %v4912, %v4992
    %v5025 = vadd.f32 %v4913, %v4993
    %v5026 = vadd.f32 %v4914, %v4994
    %v5027 = vadd.f32 %v4915, %v4995
    %v5028 = vadd.f32 %v4916, %v4996
    %v5029 = vadd.f32 %v4917, %v4997
    %v5030 = vadd.f32 %v4918, %v4998
    %v5031 = vadd.f32 %v4919, %v4999
    %v5032 = vadd.f32 %v4920, %v5000
    %v5033 = vadd.f32 %v4921, %v5001
    %v5034 = vadd.f32 %v4922, %v5002
    %v5035 = vadd.f32 %v4923, %v5003
    %5036 = vset.pattern.permute.xlu0 31
    %5037 = vperm.xlu0 %5036, %v1580
    %v5038 = vpop.permute.xlu0 %5037
    %5040 = vset.pattern.permute.xlu0 31
    %5041 = vperm.xlu0 %5040, %v1581
    %v5042 = vpop.permute.xlu0 %5041
    %5044 = vset.pattern.permute.xlu0 31
    %5045 = vperm.xlu0 %5044, %v1582
    %v5046 = vpop.permute.xlu0 %5045
    %5048 = vset.pattern.permute.xlu0 31
    %5049 = vperm.xlu0 %5048, %v1583
    %v5050 = vpop.permute.xlu0 %5049
    %5052 = vset.pattern.permute.xlu0 31
    %5053 = vperm.xlu0 %5052, %v1584
    %v5054 = vpop.permute.xlu0 %5053
    %5056 = vset.pattern.permute.xlu0 31
    %5057 = vperm.xlu0 %5056, %v1585
    %v5058 = vpop.permute.xlu0 %5057
    %5060 = vset.pattern.permute.xlu0 31
    %5061 = vperm.xlu0 %5060, %v1586
    %v5062 = vpop.permute.xlu0 %5061
    %5064 = vset.pattern.permute.xlu0 31
    %5065 = vperm.xlu0 %5064, %v1587
    %v5066 = vpop.permute.xlu0 %5065
    %v5068 = vlaneseq
    %v5069 = vshrl.u32 %v5068, 7
    %v5070 = vsub.s32 7, %v5069
    %v5071 = vrot.slane %v1576, %v5070
    %v5072 = vlaneseq
    %v5073 = vshrl.u32 %v5072, 7
    %v5074 = vsub.s32 7, %v5073
    %v5075 = vrot.slane %v1577, %v5074
    %v5076 = vlaneseq
    %v5077 = vshrl.u32 %v5076, 7
    %v5078 = vsub.s32 7, %v5077
    %v5079 = vrot.slane %v1578, %v5078
    %v5080 = vlaneseq
    %v5081 = vshrl.u32 %v5080, 7
    %v5082 = vsub.s32 7, %v5081
    %v5083 = vrot.slane %v1579, %v5082
    %v5084 = vmul.f32 %v5038, %v5071
    %v5085 = vmul.f32 %v5038, %v5075
    %v5086 = vmul.f32 %v5038, %v5079
    %v5087 = vmul.f32 %v5038, %v5083
    %v5088 = vmul.f32 %v5042, %v5071
    %v5089 = vmul.f32 %v5042, %v5075
    %v5090 = vmul.f32 %v5042, %v5079
    %v5091 = vmul.f32 %v5042, %v5083
    %v5092 = vmul.f32 %v5046, %v5071
    %v5093 = vmul.f32 %v5046, %v5075
    %v5094 = vmul.f32 %v5046, %v5079
    %v5095 = vmul.f32 %v5046, %v5083
    %v5096 = vmul.f32 %v5050, %v5071
    %v5097 = vmul.f32 %v5050, %v5075
    %v5098 = vmul.f32 %v5050, %v5079
    %v5099 = vmul.f32 %v5050, %v5083
    %v5100 = vmul.f32 %v5054, %v5071
    %v5101 = vmul.f32 %v5054, %v5075
    %v5102 = vmul.f32 %v5054, %v5079
    %v5103 = vmul.f32 %v5054, %v5083
    %v5104 = vmul.f32 %v5058, %v5071
    %v5105 = vmul.f32 %v5058, %v5075
    %v5106 = vmul.f32 %v5058, %v5079
    %v5107 = vmul.f32 %v5058, %v5083
    %v5108 = vmul.f32 %v5062, %v5071
    %v5109 = vmul.f32 %v5062, %v5075
    %v5110 = vmul.f32 %v5062, %v5079
    %v5111 = vmul.f32 %v5062, %v5083
    %v5112 = vmul.f32 %v5066, %v5071
    %v5113 = vmul.f32 %v5066, %v5075
    %v5114 = vmul.f32 %v5066, %v5079
    %v5115 = vmul.f32 %v5066, %v5083
    %v5116 = vadd.f32 %v5004, %v5084
    %v5117 = vadd.f32 %v5005, %v5085
    %v5118 = vadd.f32 %v5006, %v5086
    %v5119 = vadd.f32 %v5007, %v5087
    %v5120 = vadd.f32 %v5008, %v5088
    %v5121 = vadd.f32 %v5009, %v5089
    %v5122 = vadd.f32 %v5010, %v5090
    %v5123 = vadd.f32 %v5011, %v5091
    %v5124 = vadd.f32 %v5012, %v5092
    %v5125 = vadd.f32 %v5013, %v5093
    %v5126 = vadd.f32 %v5014, %v5094
    %v5127 = vadd.f32 %v5015, %v5095
    %v5128 = vadd.f32 %v5016, %v5096
    %v5129 = vadd.f32 %v5017, %v5097
    %v5130 = vadd.f32 %v5018, %v5098
    %v5131 = vadd.f32 %v5019, %v5099
    %v5132 = vadd.f32 %v5020, %v5100
    %v5133 = vadd.f32 %v5021, %v5101
    %v5134 = vadd.f32 %v5022, %v5102
    %v5135 = vadd.f32 %v5023, %v5103
    %v5136 = vadd.f32 %v5024, %v5104
    %v5137 = vadd.f32 %v5025, %v5105
    %v5138 = vadd.f32 %v5026, %v5106
    %v5139 = vadd.f32 %v5027, %v5107
    %v5140 = vadd.f32 %v5028, %v5108
    %v5141 = vadd.f32 %v5029, %v5109
    %v5142 = vadd.f32 %v5030, %v5110
    %v5143 = vadd.f32 %v5031, %v5111
    %v5144 = vadd.f32 %v5032, %v5112
    %v5145 = vadd.f32 %v5033, %v5113
    %v5146 = vadd.f32 %v5034, %v5114
    %v5147 = vadd.f32 %v5035, %v5115
    %v5148 = vld [vmem:[%s8] sm:$0xff]
    %v5149 = vld [vmem:[%s8 + $0x8] sm:$0xff]
    %v5150 = vld [vmem:[%s8 + $0x10] sm:$0xff]
    %v5151 = vld [vmem:[%s8 + $0x18] sm:$0xff]
    %v5152 = vld [vmem:[%s8 + $0x20] sm:$0xff]
    %v5153 = vld [vmem:[%s8 + $0x28] sm:$0xff]
    %v5154 = vld [vmem:[%s8 + $0x30] sm:$0xff]
    %v5155 = vld [vmem:[%s8 + $0x38] sm:$0xff]
    %v5156 = vld [vmem:[%s9] sm:$0xff]
    %v5157 = vld [vmem:[%s9 + $0x8] sm:$0xff]
    %v5158 = vld [vmem:[%s9 + $0x10] sm:$0xff]
    %v5159 = vld [vmem:[%s9 + $0x18] sm:$0xff]
    %v5160 = vld [vmem:[%s9 + $0x20] sm:$0xff]
    %v5161 = vld [vmem:[%s9 + $0x28] sm:$0xff]
    %v5162 = vld [vmem:[%s9 + $0x30] sm:$0xff]
    %v5163 = vld [vmem:[%s9 + $0x38] sm:$0xff]
    %v5164 = vadd.f32 %v5116, %v5117
    %v5165 = vadd.f32 %v5164, %v5118
    %v5166 = vadd.f32 %v5165, %v5119
    %5167 = vadd.xlane.f32.xlu0 %v5166
    %v5168 = vpop.xlane.xlu0 %5167
    %v5169 = vadd.f32 %v5120, %v5121
    %v5170 = vadd.f32 %v5169, %v5122
    %v5171 = vadd.f32 %v5170, %v5123
    %5172 = vadd.xlane.f32.xlu0 %v5171
    %v5173 = vpop.xlane.xlu0 %5172
    %v5174 = vadd.f32 %v5124, %v5125
    %v5175 = vadd.f32 %v5174, %v5126
    %v5176 = vadd.f32 %v5175, %v5127
    %5177 = vadd.xlane.f32.xlu0 %v5176
    %v5178 = vpop.xlane.xlu0 %5177
    %v5179 = vadd.f32 %v5128, %v5129
    %v5180 = vadd.f32 %v5179, %v5130
    %v5181 = vadd.f32 %v5180, %v5131
    %5182 = vadd.xlane.f32.xlu0 %v5181
    %v5183 = vpop.xlane.xlu0 %5182
    %v5184 = vadd.f32 %v5132, %v5133
    %v5185 = vadd.f32 %v5184, %v5134
    %v5186 = vadd.f32 %v5185, %v5135
    %5187 = vadd.xlane.f32.xlu0 %v5186
    %v5188 = vpop.xlane.xlu0 %5187
    %v5189 = vadd.f32 %v5136, %v5137
    %v5190 = vadd.f32 %v5189, %v5138
    %v5191 = vadd.f32 %v5190, %v5139
    %5192 = vadd.xlane.f32.xlu0 %v5191
    %v5193 = vpop.xlane.xlu0 %5192
    %v5194 = vadd.f32 %v5140, %v5141
    %v5195 = vadd.f32 %v5194, %v5142
    %v5196 = vadd.f32 %v5195, %v5143
    %5197 = vadd.xlane.f32.xlu0 %v5196
    %v5198 = vpop.xlane.xlu0 %5197
    %v5199 = vadd.f32 %v5144, %v5145
    %v5200 = vadd.f32 %v5199, %v5146
    %v5201 = vadd.f32 %v5200, %v5147
    %5202 = vadd.xlane.f32.xlu0 %v5201
    %v5203 = vpop.xlane.xlu0 %5202
    %v5204 = vmul.f32 %v5168, 0.001953125
    %v5205 = vmul.f32 %v5173, 0.001953125
    %v5206 = vmul.f32 %v5178, 0.001953125
    %v5207 = vmul.f32 %v5183, 0.001953125
    %v5208 = vmul.f32 %v5188, 0.001953125
    %v5209 = vmul.f32 %v5193, 0.001953125
    %v5210 = vmul.f32 %v5198, 0.001953125
    %v5211 = vmul.f32 %v5203, 0.001953125
    %v5212 = vmul.f32 %v5116, %v5116
    %v5213 = vmul.f32 %v5117, %v5117
    %v5214 = vmul.f32 %v5118, %v5118
    %v5215 = vmul.f32 %v5119, %v5119
    %v5216 = vmul.f32 %v5120, %v5120
    %v5217 = vmul.f32 %v5121, %v5121
    %v5218 = vmul.f32 %v5122, %v5122
    %v5219 = vmul.f32 %v5123, %v5123
    %v5220 = vmul.f32 %v5124, %v5124
    %v5221 = vmul.f32 %v5125, %v5125
    %v5222 = vmul.f32 %v5126, %v5126
    %v5223 = vmul.f32 %v5127, %v5127
    %v5224 = vmul.f32 %v5128, %v5128
    %v5225 = vmul.f32 %v5129, %v5129
    %v5226 = vmul.f32 %v5130, %v5130
    %v5227 = vmul.f32 %v5131, %v5131
    %v5228 = vmul.f32 %v5132, %v5132
    %v5229 = vmul.f32 %v5133, %v5133
    %v5230 = vmul.f32 %v5134, %v5134
    %v5231 = vmul.f32 %v5135, %v5135
    %v5232 = vmul.f32 %v5136, %v5136
    %v5233 = vmul.f32 %v5137, %v5137
    %v5234 = vmul.f32 %v5138, %v5138
    %v5235 = vmul.f32 %v5139, %v5139
    %v5236 = vmul.f32 %v5140, %v5140
    %v5237 = vmul.f32 %v5141, %v5141
    %v5238 = vmul.f32 %v5142, %v5142
    %v5239 = vmul.f32 %v5143, %v5143
    %v5240 = vmul.f32 %v5144, %v5144
    %v5241 = vmul.f32 %v5145, %v5145
    %v5242 = vmul.f32 %v5146, %v5146
    %v5243 = vmul.f32 %v5147, %v5147
    %v5244 = vadd.f32 %v5212, %v5213
    %v5245 = vadd.f32 %v5244, %v5214
    %v5246 = vadd.f32 %v5245, %v5215
    %5247 = vadd.xlane.f32.xlu0 %v5246
    %v5248 = vpop.xlane.xlu0 %5247
    %v5249 = vadd.f32 %v5216, %v5217
    %v5250 = vadd.f32 %v5249, %v5218
    %v5251 = vadd.f32 %v5250, %v5219
    %5252 = vadd.xlane.f32.xlu0 %v5251
    %v5253 = vpop.xlane.xlu0 %5252
    %v5254 = vadd.f32 %v5220, %v5221
    %v5255 = vadd.f32 %v5254, %v5222
    %v5256 = vadd.f32 %v5255, %v5223
    %5257 = vadd.xlane.f32.xlu0 %v5256
    %v5258 = vpop.xlane.xlu0 %5257
    %v5259 = vadd.f32 %v5224, %v5225
    %v5260 = vadd.f32 %v5259, %v5226
    %v5261 = vadd.f32 %v5260, %v5227
    %5262 = vadd.xlane.f32.xlu0 %v5261
    %v5263 = vpop.xlane.xlu0 %5262
    %v5264 = vadd.f32 %v5228, %v5229
    %v5265 = vadd.f32 %v5264, %v5230
    %v5266 = vadd.f32 %v5265, %v5231
    %5267 = vadd.xlane.f32.xlu0 %v5266
    %v5268 = vpop.xlane.xlu0 %5267
    %v5269 = vadd.f32 %v5232, %v5233
    %v5270 = vadd.f32 %v5269, %v5234
    %v5271 = vadd.f32 %v5270, %v5235
    %5272 = vadd.xlane.f32.xlu0 %v5271
    %v5273 = vpop.xlane.xlu0 %5272
    %v5274 = vadd.f32 %v5236, %v5237
    %v5275 = vadd.f32 %v5274, %v5238
    %v5276 = vadd.f32 %v5275, %v5239
    %5277 = vadd.xlane.f32.xlu0 %v5276
    %v5278 = vpop.xlane.xlu0 %5277
    %v5279 = vadd.f32 %v5240, %v5241
    %v5280 = vadd.f32 %v5279, %v5242
    %v5281 = vadd.f32 %v5280, %v5243
    %5282 = vadd.xlane.f32.xlu0 %v5281
    %v5283 = vpop.xlane.xlu0 %5282
    %v5284 = vmul.f32 %v5248, 0.001953125
    %v5285 = vmul.f32 %v5253, 0.001953125
    %v5286 = vmul.f32 %v5258, 0.001953125
    %v5287 = vmul.f32 %v5263, 0.001953125
    %v5288 = vmul.f32 %v5268, 0.001953125
    %v5289 = vmul.f32 %v5273, 0.001953125
    %v5290 = vmul.f32 %v5278, 0.001953125
    %v5291 = vmul.f32 %v5283, 0.001953125
    %v5292 = vmul.f32 %v5204, %v5204
    %v5293 = vmul.f32 %v5205, %v5205
    %v5294 = vmul.f32 %v5206, %v5206
    %v5295 = vmul.f32 %v5207, %v5207
    %v5296 = vmul.f32 %v5208, %v5208
    %v5297 = vmul.f32 %v5209, %v5209
    %v5298 = vmul.f32 %v5210, %v5210
    %v5299 = vmul.f32 %v5211, %v5211
    %v5300 = vsub.f32 %v5284, %v5292
    %v5301 = vsub.f32 %v5285, %v5293
    %v5302 = vsub.f32 %v5286, %v5294
    %v5303 = vsub.f32 %v5287, %v5295
    %v5304 = vsub.f32 %v5288, %v5296
    %v5305 = vsub.f32 %v5289, %v5297
    %v5306 = vsub.f32 %v5290, %v5298
    %v5307 = vsub.f32 %v5291, %v5299
    %v5308 = vmax.f32 %v5300, 0.0
    %v5309 = vmax.f32 %v5301, 0.0
    %v5310 = vmax.f32 %v5302, 0.0
    %v5311 = vmax.f32 %v5303, 0.0
    %v5312 = vmax.f32 %v5304, 0.0
    %v5313 = vmax.f32 %v5305, 0.0
    %v5314 = vmax.f32 %v5306, 0.0
    %v5315 = vmax.f32 %v5307, 0.0
    %v5316 = vadd.f32 %v5308, 1e-05
    %v5317 = vadd.f32 %v5309, 1e-05
    %v5318 = vadd.f32 %v5310, 1e-05
    %v5319 = vadd.f32 %v5311, 1e-05
    %v5320 = vadd.f32 %v5312, 1e-05
    %v5321 = vadd.f32 %v5313, 1e-05
    %v5322 = vadd.f32 %v5314, 1e-05
    %v5323 = vadd.f32 %v5315, 1e-05
    %v5324 = vrsqrt.pop %v5316
    %v5325 = vrsqrt.pop %v5317
    %v5326 = vrsqrt.pop %v5318
    %v5327 = vrsqrt.pop %v5319
    %v5328 = vrsqrt.pop %v5320
    %v5329 = vrsqrt.pop %v5321
    %v5330 = vrsqrt.pop %v5322
    %v5331 = vrsqrt.pop %v5323
    %v5332 = vmul.f32 %v5148, %v5324
    %v5333 = vmul.f32 %v5149, %v5325
    %v5334 = vmul.f32 %v5150, %v5326
    %v5335 = vmul.f32 %v5151, %v5327
    %v5336 = vmul.f32 %v5152, %v5328
    %v5337 = vmul.f32 %v5153, %v5329
    %v5338 = vmul.f32 %v5154, %v5330
    %v5339 = vmul.f32 %v5155, %v5331
    %v5340 = vmul.f32 %v5204, %v5332
    %v5341 = vmul.f32 %v5205, %v5333
    %v5342 = vmul.f32 %v5206, %v5334
    %v5343 = vmul.f32 %v5207, %v5335
    %v5344 = vmul.f32 %v5208, %v5336
    %v5345 = vmul.f32 %v5209, %v5337
    %v5346 = vmul.f32 %v5210, %v5338
    %v5347 = vmul.f32 %v5211, %v5339
    %v5348 = vsub.f32 %v5156, %v5340
    %v5349 = vsub.f32 %v5157, %v5341
    %v5350 = vsub.f32 %v5158, %v5342
    %v5351 = vsub.f32 %v5159, %v5343
    %v5352 = vsub.f32 %v5160, %v5344
    %v5353 = vsub.f32 %v5161, %v5345
    %v5354 = vsub.f32 %v5162, %v5346
    %v5355 = vsub.f32 %v5163, %v5347
    %5357 = vset.pattern.permute.xlu0 0
    %5358 = vperm.xlu0 %5357, %v5332
    %v5359 = vpop.permute.xlu0 %5358
    %5362 = vset.pattern.permute.xlu0 0
    %5363 = vperm.xlu0 %5362, %v5333
    %v5364 = vpop.permute.xlu0 %5363
    %5367 = vset.pattern.permute.xlu0 0
    %5368 = vperm.xlu0 %5367, %v5334
    %v5369 = vpop.permute.xlu0 %5368
    %5372 = vset.pattern.permute.xlu0 0
    %5373 = vperm.xlu0 %5372, %v5335
    %v5374 = vpop.permute.xlu0 %5373
    %5377 = vset.pattern.permute.xlu0 0
    %5378 = vperm.xlu0 %5377, %v5336
    %v5379 = vpop.permute.xlu0 %5378
    %5382 = vset.pattern.permute.xlu0 0
    %5383 = vperm.xlu0 %5382, %v5337
    %v5384 = vpop.permute.xlu0 %5383
    %5387 = vset.pattern.permute.xlu0 0
    %5388 = vperm.xlu0 %5387, %v5338
    %v5389 = vpop.permute.xlu0 %5388
    %5392 = vset.pattern.permute.xlu0 0
    %5393 = vperm.xlu0 %5392, %v5339
    %v5394 = vpop.permute.xlu0 %5393
    %v5396 = vmul.f32 %v5116, %v5359
    %v5397 = vmul.f32 %v5117, %v5359
    %v5398 = vmul.f32 %v5118, %v5359
    %v5399 = vmul.f32 %v5119, %v5359
    %v5400 = vmul.f32 %v5120, %v5364
    %v5401 = vmul.f32 %v5121, %v5364
    %v5402 = vmul.f32 %v5122, %v5364
    %v5403 = vmul.f32 %v5123, %v5364
    %v5404 = vmul.f32 %v5124, %v5369
    %v5405 = vmul.f32 %v5125, %v5369
    %v5406 = vmul.f32 %v5126, %v5369
    %v5407 = vmul.f32 %v5127, %v5369
    %v5408 = vmul.f32 %v5128, %v5374
    %v5409 = vmul.f32 %v5129, %v5374
    %v5410 = vmul.f32 %v5130, %v5374
    %v5411 = vmul.f32 %v5131, %v5374
    %v5412 = vmul.f32 %v5132, %v5379
    %v5413 = vmul.f32 %v5133, %v5379
    %v5414 = vmul.f32 %v5134, %v5379
    %v5415 = vmul.f32 %v5135, %v5379
    %v5416 = vmul.f32 %v5136, %v5384
    %v5417 = vmul.f32 %v5137, %v5384
    %v5418 = vmul.f32 %v5138, %v5384
    %v5419 = vmul.f32 %v5139, %v5384
    %v5420 = vmul.f32 %v5140, %v5389
    %v5421 = vmul.f32 %v5141, %v5389
    %v5422 = vmul.f32 %v5142, %v5389
    %v5423 = vmul.f32 %v5143, %v5389
    %v5424 = vmul.f32 %v5144, %v5394
    %v5425 = vmul.f32 %v5145, %v5394
    %v5426 = vmul.f32 %v5146, %v5394
    %v5427 = vmul.f32 %v5147, %v5394
    %5429 = vset.pattern.permute.xlu0 0
    %5430 = vperm.xlu0 %5429, %v5348
    %v5431 = vpop.permute.xlu0 %5430
    %5434 = vset.pattern.permute.xlu0 0
    %5435 = vperm.xlu0 %5434, %v5349
    %v5436 = vpop.permute.xlu0 %5435
    %5439 = vset.pattern.permute.xlu0 0
    %5440 = vperm.xlu0 %5439, %v5350
    %v5441 = vpop.permute.xlu0 %5440
    %5444 = vset.pattern.permute.xlu0 0
    %5445 = vperm.xlu0 %5444, %v5351
    %v5446 = vpop.permute.xlu0 %5445
    %5449 = vset.pattern.permute.xlu0 0
    %5450 = vperm.xlu0 %5449, %v5352
    %v5451 = vpop.permute.xlu0 %5450
    %5454 = vset.pattern.permute.xlu0 0
    %5455 = vperm.xlu0 %5454, %v5353
    %v5456 = vpop.permute.xlu0 %5455
    %5459 = vset.pattern.permute.xlu0 0
    %5460 = vperm.xlu0 %5459, %v5354
    %v5461 = vpop.permute.xlu0 %5460
    %5464 = vset.pattern.permute.xlu0 0
    %5465 = vperm.xlu0 %5464, %v5355
    %v5466 = vpop.permute.xlu0 %5465
    %v5468 = vadd.f32 %v5396, %v5431
    %v5469 = vadd.f32 %v5397, %v5431
    %v5470 = vadd.f32 %v5398, %v5431
    %v5471 = vadd.f32 %v5399, %v5431
    %v5472 = vadd.f32 %v5400, %v5436
    %v5473 = vadd.f32 %v5401, %v5436
    %v5474 = vadd.f32 %v5402, %v5436
    %v5475 = vadd.f32 %v5403, %v5436
    %v5476 = vadd.f32 %v5404, %v5441
    %v5477 = vadd.f32 %v5405, %v5441
    %v5478 = vadd.f32 %v5406, %v5441
    %v5479 = vadd.f32 %v5407, %v5441
    %v5480 = vadd.f32 %v5408, %v5446
    %v5481 = vadd.f32 %v5409, %v5446
    %v5482 = vadd.f32 %v5410, %v5446
    %v5483 = vadd.f32 %v5411, %v5446
    %v5484 = vadd.f32 %v5412, %v5451
    %v5485 = vadd.f32 %v5413, %v5451
    %v5486 = vadd.f32 %v5414, %v5451
    %v5487 = vadd.f32 %v5415, %v5451
    %v5488 = vadd.f32 %v5416, %v5456
    %v5489 = vadd.f32 %v5417, %v5456
    %v5490 = vadd.f32 %v5418, %v5456
    %v5491 = vadd.f32 %v5419, %v5456
    %v5492 = vadd.f32 %v5420, %v5461
    %v5493 = vadd.f32 %v5421, %v5461
    %v5494 = vadd.f32 %v5422, %v5461
    %v5495 = vadd.f32 %v5423, %v5461
    %v5496 = vadd.f32 %v5424, %v5466
    %v5497 = vadd.f32 %v5425, %v5466
    %v5498 = vadd.f32 %v5426, %v5466
    %v5499 = vadd.f32 %v5427, %v5466
    %v5500 = vmax.f32 %v5468, 0.0
    %v5501 = vmax.f32 %v5469, 0.0
    %v5502 = vmax.f32 %v5470, 0.0
    %v5503 = vmax.f32 %v5471, 0.0
    %v5504 = vmax.f32 %v5472, 0.0
    %v5505 = vmax.f32 %v5473, 0.0
    %v5506 = vmax.f32 %v5474, 0.0
    %v5507 = vmax.f32 %v5475, 0.0
    %v5508 = vmax.f32 %v5476, 0.0
    %v5509 = vmax.f32 %v5477, 0.0
    %v5510 = vmax.f32 %v5478, 0.0
    %v5511 = vmax.f32 %v5479, 0.0
    %v5512 = vmax.f32 %v5480, 0.0
    %v5513 = vmax.f32 %v5481, 0.0
    %v5514 = vmax.f32 %v5482, 0.0
    %v5515 = vmax.f32 %v5483, 0.0
    %v5516 = vmax.f32 %v5484, 0.0
    %v5517 = vmax.f32 %v5485, 0.0
    %v5518 = vmax.f32 %v5486, 0.0
    %v5519 = vmax.f32 %v5487, 0.0
    %v5520 = vmax.f32 %v5488, 0.0
    %v5521 = vmax.f32 %v5489, 0.0
    %v5522 = vmax.f32 %v5490, 0.0
    %v5523 = vmax.f32 %v5491, 0.0
    %v5524 = vmax.f32 %v5492, 0.0
    %v5525 = vmax.f32 %v5493, 0.0
    %v5526 = vmax.f32 %v5494, 0.0
    %v5527 = vmax.f32 %v5495, 0.0
    %v5528 = vmax.f32 %v5496, 0.0
    %v5529 = vmax.f32 %v5497, 0.0
    %v5530 = vmax.f32 %v5498, 0.0
    %v5531 = vmax.f32 %v5499, 0.0
    %5532 = vst [vmem:[#allocation2] sm:$0xff] %v5500
    %5533 = vst [vmem:[#allocation2 + $0x8] sm:$0xff] %v5501
    %5534 = vst [vmem:[#allocation2 + $0x10] sm:$0xff] %v5502
    %5535 = vst [vmem:[#allocation2 + $0x18] sm:$0xff] %v5503
    %5536 = vst [vmem:[#allocation2 + $0x20] sm:$0xff] %v5504
    %5537 = vst [vmem:[#allocation2 + $0x28] sm:$0xff] %v5505
    %5538 = vst [vmem:[#allocation2 + $0x30] sm:$0xff] %v5506
    %5539 = vst [vmem:[#allocation2 + $0x38] sm:$0xff] %v5507
    %5540 = vst [vmem:[#allocation2 + $0x40] sm:$0xff] %v5508
    %5541 = vst [vmem:[#allocation2 + $0x48] sm:$0xff] %v5509
    %5542 = vst [vmem:[#allocation2 + $0x50] sm:$0xff] %v5510
    %5543 = vst [vmem:[#allocation2 + $0x58] sm:$0xff] %v5511
    %5544 = vst [vmem:[#allocation2 + $0x60] sm:$0xff] %v5512
    %5545 = vst [vmem:[#allocation2 + $0x68] sm:$0xff] %v5513
    %5546 = vst [vmem:[#allocation2 + $0x70] sm:$0xff] %v5514
    %5547 = vst [vmem:[#allocation2 + $0x78] sm:$0xff] %v5515
    %5548 = vst [vmem:[#allocation2 + $0x80] sm:$0xff] %v5516
    %5549 = vst [vmem:[#allocation2 + $0x88] sm:$0xff] %v5517
    %5550 = vst [vmem:[#allocation2 + $0x90] sm:$0xff] %v5518
    %5551 = vst [vmem:[#allocation2 + $0x98] sm:$0xff] %v5519
    %5552 = vst [vmem:[#allocation2 + $0xa0] sm:$0xff] %v5520
    %5553 = vst [vmem:[#allocation2 + $0xa8] sm:$0xff] %v5521
    %5554 = vst [vmem:[#allocation2 + $0xb0] sm:$0xff] %v5522
    %5555 = vst [vmem:[#allocation2 + $0xb8] sm:$0xff] %v5523
    %5556 = vst [vmem:[#allocation2 + $0xc0] sm:$0xff] %v5524
    %5557 = vst [vmem:[#allocation2 + $0xc8] sm:$0xff] %v5525
    %5558 = vst [vmem:[#allocation2 + $0xd0] sm:$0xff] %v5526
    %5559 = vst [vmem:[#allocation2 + $0xd8] sm:$0xff] %v5527
    %5560 = vst [vmem:[#allocation2 + $0xe0] sm:$0xff] %v5528
    %5561 = vst [vmem:[#allocation2 + $0xe8] sm:$0xff] %v5529
    %5562 = vst [vmem:[#allocation2 + $0xf0] sm:$0xff] %v5530
    %5563 = vst [vmem:[#allocation2 + $0xf8] sm:$0xff] %v5531
    // Predicated region
    $region42: #{tpu_custom_call.1} parent=1 // pred_check
      _
    $region43: #{tpu_custom_call.1} parent=1 // pred_check_branch
      %5565 = sbr.rel (0) target = $region45
    $region44: #{tpu_custom_call.1} parent=1 // pred_region
      %s5567 = ssub.s32 4096, 4096
      %5568 = vsyncadd [#allocation3], %s5567
      %s5569 = sshll.u32 [#allocation2], 4
      %s5570 = int_to_ptr.vmem [resolvable:$true] %s5569
      %5575 = dma.vmem_to_hbm [thread:$0]  %s5570, 4096, %s10, [#allocation3], 512, 512, 32
    $region45: #{tpu_custom_call.1} parent=1 // pred_fallthru
      _
    // Predicated region
    $region46: #{tpu_custom_call.1} parent=1 // pred_check
      _
    $region47: #{tpu_custom_call.1} parent=1 // pred_check_branch
      %5577 = sbr.rel (0) target = $region49
    $region48: #{tpu_custom_call.1} parent=1 // pred_region
      %5578 = dma.done [#allocation3], 4096
    $region49: #{tpu_custom_call.1} parent=1 // pred_fallthru
      _
    %5579 = vsyncpa [#allocation3], 1

</llo_original>
